<compile_context>
chip_gen: v7x
topology: tpu7x:2x2x1
jax: 0.10.0
libtpu: 0.0.40
codegen_flags: <defaults>
</compile_context>

<pallas_src>
import functools
import math

import jax
import jax.numpy as jnp
from jax import lax
from jax.experimental import pallas as pl
from jax.experimental.pallas import tpu as pltpu


# MXU operand dtype (v6e/v7x fast path, halves weight VMEM/DMA bytes).
# Accumulation is always f32; elementwise math is always f32 (v5e-safe).
MATMUL_DTYPE = jnp.bfloat16


def _vmem_specs(n):
    return [pl.BlockSpec(memory_space=pltpu.MemorySpace.VMEM) for _ in range(n)]


# ----------------------------------------------------------------------------
# LSTM kernel: serial recurrence only.  The per-step input contribution
# (x_t @ W_ih + b) arrives pre-computed as `xp_ref`:
#   time_varying=True  -> xp_ref is (T, B, 4H)   (encoder)
#   time_varying=False -> xp_ref is (B, 4H)      (decoder: constant input)
# ----------------------------------------------------------------------------
def _lstm_kernel(time_varying, xp_ref, whh_ref, out_ref, h_sc, c_sc):
    T, B, H = out_ref.shape
    H4 = 4 * H

    h_sc[...] = jnp.zeros_like(h_sc)
    c_sc[...] = jnp.zeros_like(c_sc)

    # Hoisted lane mask: the 'g' gate (lanes [2H, 3H)) gets tanh, the rest
    # sigmoid.  Lets us run the nonlinearities on the packed 4H-lane vreg.
    lane = lax.broadcasted_iota(jnp.int32, (B, H4), 1)
    g_mask = (lane >= 2 * H) & (lane < 3 * H)

    # For the decoder the input projection is loop-invariant: read it once.
    xp_const = None if time_varying else xp_ref[...]

    def step(t, carry):
        xp_t = xp_ref[t] if time_varying else xp_const          # (B, 4H)
        h = h_sc[...]
        c = c_sc[...]
        # Only the recurrence matmul sits on the serial path.
        gates = xp_t + jnp.dot(h.astype(whh_ref.dtype), whh_ref[...],
                               preferred_element_type=jnp.float32)
        # Packed nonlinearities: 2 EUP pushes + 1 select (PyTorch order i,f,g,o).
        acts = jnp.where(g_mask, jnp.tanh(gates), jax.nn.sigmoid(gates))
        i = acts[:, 0:H]
        f = acts[:, H:2 * H]
        g = acts[:, 2 * H:3 * H]
        o = acts[:, 3 * H:4 * H]
        c_new = f * c + i * g
        h_new = o * jnp.tanh(c_new)
        h_sc[...] = h_new
        c_sc[...] = c_new
        out_ref[t] = h_new
        return carry

    # Static T: fully unroll so consecutive steps can overlap in the scheduler.
    lax.fori_loop(0, T, step, 0, unroll=True)


def _lstm_gate_matrices(w_ih, w_hh, b_ih, b_hh):
    """PyTorch (4H, D)/(4H, H)/(4H,)x2 -> transposed bf16 weights + fused bias."""
    wih_t = jnp.asarray(w_ih, jnp.float32).T.astype(MATMUL_DTYPE)   # (D, 4H)
    whh_t = jnp.asarray(w_hh, jnp.float32).T.astype(MATMUL_DTYPE)   # (H, 4H)
    bias = (b_ih + b_hh).reshape(1, -1).astype(jnp.float32)          # (1, 4H)
    return wih_t, whh_t, bias


def lstm_seq_forward(x_tbd, w_ih, w_hh, b_ih, b_hh):
    """Full-sequence LSTM (zero initial state).  x_tbd: (T, B, D) -> (T, B, H)."""
    T, B, D = x_tbd.shape
    H = w_hh.shape[1]
    H4 = 4 * H
    wih_t, whh_t, bias = _lstm_gate_matrices(w_ih, w_hh, b_ih, b_hh)

    # Hoisted input projection: one (T*B, D) x (D, 4H) matmul for the whole
    # sequence feeds the kernel; the serial loop only does h @ W_hh.
    xp = (jnp.dot(x_tbd.reshape(T * B, D).astype(MATMUL_DTYPE), wih_t,
                  preferred_element_type=jnp.float32) + bias).reshape(T, B, H4)

    cost = pl.CostEstimate(
        flops=2 * T * B * H * H4,
        transcendentals=3 * T * B * H4,
        bytes_accessed=4 * T * B * (H4 + H) + 2 * H * H4)

    return pl.pallas_call(
        functools.partial(_lstm_kernel, True),
        out_shape=jax.ShapeDtypeStruct((T, B, H), jnp.float32),
        in_specs=_vmem_specs(2),
        out_specs=pl.BlockSpec(memory_space=pltpu.MemorySpace.VMEM),
        scratch_shapes=[pltpu.VMEM((B, H), jnp.float32),
                        pltpu.VMEM((B, H), jnp.float32)],
        cost_estimate=cost,
    )(xp, whh_t)


def lstm_const_forward(x_const, T, w_ih, w_hh, b_ih, b_hh):
    """LSTM over T steps whose input is the same (B, D) vector every step."""
    B, _ = x_const.shape
    H = w_hh.shape[1]
    H4 = 4 * H
    wih_t, whh_t, bias = _lstm_gate_matrices(w_ih, w_hh, b_ih, b_hh)

    # Time-invariant input: project once; no (T, B, D) broadcast is ever built.
    xp = jnp.dot(x_const.astype(MATMUL_DTYPE), wih_t,
                 preferred_element_type=jnp.float32) + bias          # (B, 4H)

    cost = pl.CostEstimate(
        flops=2 * T * B * H * H4,
        transcendentals=3 * T * B * H4,
        bytes_accessed=4 * (B * H4 + T * B * H) + 2 * H * H4)

    return pl.pallas_call(
        functools.partial(_lstm_kernel, False),
        out_shape=jax.ShapeDtypeStruct((T, B, H), jnp.float32),
        in_specs=_vmem_specs(2),
        out_specs=pl.BlockSpec(memory_space=pltpu.MemorySpace.VMEM),
        scratch_shapes=[pltpu.VMEM((B, H), jnp.float32),
                        pltpu.VMEM((B, H), jnp.float32)],
        cost_estimate=cost,
    )(xp, whh_t)


# ----------------------------------------------------------------------------
# TransformerEncoderLayer (post-norm, ReLU FFN, eval mode), emitting only the
# time-mean (B, E) that the decoder consumes.  src arrives as (B*T, E) with
# rows ordered batch-major (row = b*T + t); with T a multiple of 8 the
# (B*T, .) <-> (B, T, .) reshapes are tile-aligned (no relayout).
# ----------------------------------------------------------------------------
def _layer_norm(x, gamma, beta, eps=1e-5):
    mu = jnp.mean(x, axis=-1, keepdims=True)
    var = jnp.mean((x - mu) ** 2, axis=-1, keepdims=True)
    return (x - mu) * lax.rsqrt(var + eps) * gamma + beta


def _transformer_mean_kernel(nhead, seq_len,
                             src_ref, wqkv_ref, bqkv_ref, wout_ref, bout_ref,
                             g1_ref, be1_ref, w1_ref, bf1_ref, w2_ref, bf2_ref,
                             g2_ref, be2_ref,
                             mean_ref, attn_sc):
    rows, E = src_ref.shape
    T = seq_len
    B = rows // T
    hd = E // nhead
    scale = 1.0 / math.sqrt(hd)

    # Batch folded into matmul rows for QKV / out-proj / FFN.
    s2 = src_ref[...]                                              # (B*T, E)
    qkv = jnp.dot(s2.astype(wqkv_ref.dtype), wqkv_ref[...],
                  preferred_element_type=jnp.float32) + bqkv_ref[...]

    # Self-attention: per-head (nhead is tiny & static), batched over B via a
    # single einsum; head outputs land in lane-aligned slices of a VMEM
    # scratch (no concatenates).
    for h in range(nhead):
        qh = (qkv[:, h * hd:(h + 1) * hd] * scale).reshape(B, T, hd)
        kh = qkv[:, E + h * hd:E + (h + 1) * hd].reshape(B, T, hd)
        vh = qkv[:, 2 * E + h * hd:2 * E + (h + 1) * hd].reshape(B, T, hd)
        sc = jnp.einsum("btd,bsd->bts", qh, kh,
                        preferred_element_type=jnp.float32)        # (B, T, T)
        sc = sc - jnp.max(sc, axis=-1, keepdims=True)
        p = jnp.exp(sc)
        p = p / jnp.sum(p, axis=-1, keepdims=True)
        ctx = jnp.einsum("bts,bsd->btd", p, vh,
                         preferred_element_type=jnp.float32)       # (B, T, hd)
        attn_sc[:, h * hd:(h + 1) * hd] = ctx.reshape(rows, hd)

    attn = jnp.dot(attn_sc[...].astype(wout_ref.dtype), wout_ref[...],
                   preferred_element_type=jnp.float32) + bout_ref[...]

    x1 = _layer_norm(s2 + attn, g1_ref[...], be1_ref[...])

    ff = jnp.maximum(
        jnp.dot(x1.astype(w1_ref.dtype), w1_ref[...],
                preferred_element_type=jnp.float32) + bf1_ref[...], 0.0)
    ff = jnp.dot(ff.astype(w2_ref.dtype), w2_ref[...],
                 preferred_element_type=jnp.float32) + bf2_ref[...]

    x2 = _layer_norm(x1 + ff, g2_ref[...], be2_ref[...])           # (B*T, E)

    # Only the time-mean leaves the kernel (that is all the decoder needs).
    mean_ref[...] = jnp.mean(x2.reshape(B, T, E), axis=1)


def transformer_time_mean(src_bte, p, nhead):
    """Post-norm TransformerEncoderLayer (eval); returns time-mean (B, E)."""
    B, T, E = src_bte.shape
    F = p["lin1_w"].shape[0]
    rows = B * T
    hd = E // nhead

    args = (
        src_bte.reshape(rows, E).astype(jnp.float32),
        jnp.asarray(p["in_proj_w"], jnp.float32).T.astype(MATMUL_DTYPE),   # (E, 3E)
        p["in_proj_b"].reshape(1, 3 * E).astype(jnp.float32),
        jnp.asarray(p["out_proj_w"], jnp.float32).T.astype(MATMUL_DTYPE),  # (E, E)
        p["out_proj_b"].reshape(1, E).astype(jnp.float32),
        p["ln1_g"].reshape(1, E).astype(jnp.float32),
        p["ln1_b"].reshape(1, E).astype(jnp.float32),
        jnp.asarray(p["lin1_w"], jnp.float32).T.astype(MATMUL_DTYPE),      # (E, F)
        p["lin1_b"].reshape(1, F).astype(jnp.float32),
        jnp.asarray(p["lin2_w"], jnp.float32).T.astype(MATMUL_DTYPE),      # (F, E)
        p["lin2_b"].reshape(1, E).astype(jnp.float32),
        p["ln2_g"].reshape(1, E).astype(jnp.float32),
        p["ln2_b"].reshape(1, E).astype(jnp.float32),
    )

    cost = pl.CostEstimate(
        flops=2 * rows * E * (4 * E + 2 * F) + 4 * B * nhead * T * T * hd,
        transcendentals=B * nhead * T * T,
        bytes_accessed=8 * rows * E + 2 * E * (4 * E + 2 * F))

    return pl.pallas_call(
        functools.partial(_transformer_mean_kernel, nhead, T),
        out_shape=jax.ShapeDtypeStruct((B, E), jnp.float32),
        in_specs=_vmem_specs(len(args)),
        out_specs=pl.BlockSpec(memory_space=pltpu.MemorySpace.VMEM),
        scratch_shapes=[pltpu.VMEM((rows, E), jnp.float32)],
        cost_estimate=cost,
    )(*args)


# ----------------------------------------------------------------------------
# Full model
# ----------------------------------------------------------------------------
def init_params(key, input_dim, hidden_dim, nhead, dff=2048):
    ks = iter(jax.random.split(key, 32))

    def u(shape, scale):
        return jax.random.uniform(next(ks), shape, jnp.float32, -scale, scale)

    s_enc = 1.0 / math.sqrt(hidden_dim)
    s_dec = 1.0 / math.sqrt(input_dim)
    return {
        "lstm_enc": (u((4 * hidden_dim, input_dim), s_enc),
                     u((4 * hidden_dim, hidden_dim), s_enc),
                     u((4 * hidden_dim,), s_enc),
                     u((4 * hidden_dim,), s_enc)),
        "lstm_dec": (u((4 * input_dim, hidden_dim), s_dec),
                     u((4 * input_dim, input_dim), s_dec),
                     u((4 * input_dim,), s_dec),
                     u((4 * input_dim,), s_dec)),
        "transformer": {
            "in_proj_w": u((3 * hidden_dim, hidden_dim), 1.0 / math.sqrt(hidden_dim)),
            "in_proj_b": jnp.zeros((3 * hidden_dim,), jnp.float32),
            "out_proj_w": u((hidden_dim, hidden_dim), 1.0 / math.sqrt(hidden_dim)),
            "out_proj_b": jnp.zeros((hidden_dim,), jnp.float32),
            "ln1_g": jnp.ones((hidden_dim,), jnp.float32),
            "ln1_b": jnp.zeros((hidden_dim,), jnp.float32),
            "lin1_w": u((dff, hidden_dim), 1.0 / math.sqrt(hidden_dim)),
            "lin1_b": jnp.zeros((dff,), jnp.float32),
            "lin2_w": u((hidden_dim, dff), 1.0 / math.sqrt(dff)),
            "lin2_b": jnp.zeros((hidden_dim,), jnp.float32),
            "ln2_g": jnp.ones((hidden_dim,), jnp.float32),
            "ln2_b": jnp.zeros((hidden_dim,), jnp.float32),
        },
    }


def lstm_transformer_ae(x_btd, params, nhead):
    """Forward pass of LSTMTransformerAE (eval mode).  x_btd: (B, T, input_dim)."""
    _, T, _ = x_btd.shape
    x_tbd = jnp.transpose(x_btd, (1, 0, 2))                     # (T, B, Din)
    enc = lstm_seq_forward(x_tbd, *params["lstm_enc"])          # (T, B, H)
    enc_bte = jnp.transpose(enc, (1, 0, 2))                     # (B, T, H)
    dec_seed = transformer_time_mean(enc_bte, params["transformer"], nhead)  # (B, H)
    rec = lstm_const_forward(dec_seed, T, *params["lstm_dec"])  # (T, B, Din)
    return jnp.transpose(rec, (1, 0, 2))                        # (B, T, Din)


# ----------------------------------------------------------------------------
# Pure-JAX f32 reference (mirrors the PyTorch eval forward), for validation.
# ----------------------------------------------------------------------------
def _reference_forward(x_btd, params, nhead):
    def lstm(x_tbd, w_ih, w_hh, b_ih, b_hh):
        _, B, _ = x_tbd.shape
        H = w_hh.shape[1]

        def step(carry, x_t):
            h, c = carry
            gates = x_t @ w_ih.T + h @ w_hh.T + b_ih + b_hh
            i = jax.nn.sigmoid(gates[:, :H])
            f = jax.nn.sigmoid(gates[:, H:2 * H])
            g = jnp.tanh(gates[:, 2 * H:3 * H])
            o = jax.nn.sigmoid(gates[:, 3 * H:])
            c = f * c + i * g
            h = o * jnp.tanh(c)
            return (h, c), h

        init = (jnp.zeros((B, H), jnp.float32), jnp.zeros((B, H), jnp.float32))
        _, ys = lax.scan(step, init, x_tbd)
        return ys

    def ln(z, g, b):
        mu = z.mean(-1, keepdims=True)
        var = ((z - mu) ** 2).mean(-1, keepdims=True)
        return (z - mu) / jnp.sqrt(var + 1e-5) * g + b

    p = params["transformer"]
    x_tbd = jnp.transpose(x_btd, (1, 0, 2))
    enc = lstm(x_tbd, *params["lstm_enc"])                       # (T, B, E)
    T, B, E = enc.shape
    hd = E // nhead

    qkv = enc @ p["in_proj_w"].T + p["in_proj_b"]
    q, k, v = qkv[..., :E], qkv[..., E:2 * E], qkv[..., 2 * E:]

    def split(z):  # (T, B, E) -> (B, nhead, T, hd)
        return jnp.transpose(z.reshape(T, B, nhead, hd), (1, 2, 0, 3))

    qh, kh, vh = split(q), split(k), split(v)
    sc = jnp.einsum("bhtd,bhsd->bhts", qh, kh) / math.sqrt(hd)
    pr = jax.nn.softmax(sc, axis=-1)
    ctx = jnp.einsum("bhts,bhsd->bhtd", pr, vh)
    ctx = jnp.transpose(ctx, (2, 0, 1, 3)).reshape(T, B, E)
    attn = ctx @ p["out_proj_w"].T + p["out_proj_b"]

    x1 = ln(enc + attn, p["ln1_g"], p["ln1_b"])
    ff = jax.nn.relu(x1 @ p["lin1_w"].T + p["lin1_b"]) @ p["lin2_w"].T + p["lin2_b"]
    x2 = ln(x1 + ff, p["ln2_g"], p["ln2_b"])                     # (T, B, E)

    dec_in = jnp.broadcast_to(x2.mean(axis=0)[None, :, :], (T, B, E))
    rec = lstm(dec_in, *params["lstm_dec"])                      # (T, B, Din)
    return jnp.transpose(rec, (1, 0, 2))


if __name__ == "__main__":
    B, T = 2, 8
    input_dim, hidden_dim, nhead = 16, 32, 2

    key = jax.random.PRNGKey(0)
    kx, kp = jax.random.split(key)
    x = jax.random.normal(kx, (B, T, input_dim), jnp.float32)
    params = init_params(kp, input_dim, hidden_dim, nhead)

    fwd = jax.jit(functools.partial(lstm_transformer_ae, nhead=nhead))
    out = jax.block_until_ready(fwd(x, params))

    assert out.shape == (B, T, input_dim)
    assert bool(jnp.all(jnp.isfinite(out)))

    # Validate against the f32 pure-JAX reference (bf16 MXU operands -> loose tol).
    ref = _reference_forward(x, params, nhead)
    max_err = float(jnp.max(jnp.abs(out - ref)))
    assert max_err < 5e-2, f"mismatch vs reference: max_err={max_err}"

    print("KERNEL_OK")
</pallas_src>

<mosaic_0001>
module attributes {stable_mosaic.version = 11 : i64} {
  func.func @_lstm_kernel(%arg0: memref<8x2x128xf32, #tpu.memory_space<vmem>>, %arg1: memref<32x128xbf16, #tpu.memory_space<vmem>>, %arg2: memref<8x2x32xf32, #tpu.memory_space<vmem>>, %arg3: memref<2x32xf32, #tpu.memory_space<vmem>>, %arg4: memref<2x32xf32, #tpu.memory_space<vmem>>) attributes {dimension_semantics = [], scalar_prefetch = 0 : i64, scratch_operands = 2 : i64, tpu.core_type = #tpu.core_type<tc>} {
    %cst = arith.constant 0.000000e+00 : f32
    %0 = vector.broadcast %cst : f32 to vector<2x32xf32>
    %c0 = arith.constant 0 : index
    %c0_0 = arith.constant 0 : index
    %1 = vector.load %arg3[%c0, %c0_0] : memref<2x32xf32, #tpu.memory_space<vmem>>, vector<2x32xf32>
    tpu.vector_store %arg3[%c0, %c0_0], %0 {strides = array<i32>} : memref<2x32xf32, #tpu.memory_space<vmem>>, vector<2x32xf32>,
    %cst_1 = arith.constant 0.000000e+00 : f32
    %2 = vector.broadcast %cst_1 : f32 to vector<2x32xf32>
    %c0_2 = arith.constant 0 : index
    %c0_3 = arith.constant 0 : index
    %3 = vector.load %arg4[%c0_2, %c0_3] : memref<2x32xf32, #tpu.memory_space<vmem>>, vector<2x32xf32>
    tpu.vector_store %arg4[%c0_2, %c0_3], %2 {strides = array<i32>} : memref<2x32xf32, #tpu.memory_space<vmem>>, vector<2x32xf32>,
    %4 = tpu.iota {dimensions = array<i32: 1>} : vector<2x128xi32>
    %c64_i32 = arith.constant 64 : i32
    %5 = vector.broadcast %c64_i32 : i32 to vector<2x128xi32>
    %6 = arith.cmpi sge, %4, %5 : vector<2x128xi32>
    %c96_i32 = arith.constant 96 : i32
    %7 = vector.broadcast %c96_i32 : i32 to vector<2x128xi32>
    %8 = arith.cmpi slt, %4, %7 : vector<2x128xi32>
    %9 = arith.andi %6, %8 : vector<2x128xi1>
    %c0_i32 = arith.constant 0 : i32
    %10 = arith.index_cast %c0_i32 : i32 to index
    %c0_4 = arith.constant 0 : index
    %c0_5 = arith.constant 0 : index
    %11 = vector.load %arg0[%10, %c0_4, %c0_5] : memref<8x2x128xf32, #tpu.memory_space<vmem>>, vector<1x2x128xf32>
    %12 = vector.shape_cast %11 : vector<1x2x128xf32> to vector<2x128xf32>
    %c0_6 = arith.constant 0 : index
    %c0_7 = arith.constant 0 : index
    %13 = vector.load %arg3[%c0_6, %c0_7] : memref<2x32xf32, #tpu.memory_space<vmem>>, vector<2x32xf32>
    %c0_8 = arith.constant 0 : index
    %c0_9 = arith.constant 0 : index
    %14 = vector.load %arg4[%c0_8, %c0_9] : memref<2x32xf32, #tpu.memory_space<vmem>>, vector<2x32xf32>
    %15 = arith.truncf %13 : vector<2x32xf32> to vector<2x32xbf16>
    %c0_10 = arith.constant 0 : index
    %c0_11 = arith.constant 0 : index
    %16 = vector.load %arg1[%c0_10, %c0_11] : memref<32x128xbf16, #tpu.memory_space<vmem>>, vector<32x128xbf16>
    %cst_12 = arith.constant dense<0.000000e+00> : vector<2x128xf32>
    %17 = tpu.matmul %15, %16, %cst_12 {dimension_numbers = #tpu.dot_dimension_numbers<[1], [0], [0], [1], [0, 0, 1, 1], [], []>} : vector<2x32xbf16>, vector<32x128xbf16>, vector<2x128xf32> -> vector<2x128xf32>
    %18 = arith.addf %12, %17 : vector<2x128xf32>
    %19 = math.tanh %18 : vector<2x128xf32>
    %20 = arith.negf %18 : vector<2x128xf32>
    %21 = math.exp %20 : vector<2x128xf32>
    %cst_13 = arith.constant 1.000000e+00 : f32
    %22 = vector.broadcast %cst_13 : f32 to vector<2x128xf32>
    %23 = arith.addf %22, %21 : vector<2x128xf32>
    %24 = arith.divf %22, %23 : vector<2x128xf32>
    %25 = arith.select %9, %19, %24 : vector<2x128xi1>, vector<2x128xf32>
    %26 = vector.extract_strided_slice %25 {offsets = [0, 0], sizes = [2, 32], strides = [1, 1]} : vector<2x128xf32> to vector<2x32xf32>
    %27 = vector.extract_strided_slice %25 {offsets = [0, 32], sizes = [2, 32], strides = [1, 1]} : vector<2x128xf32> to vector<2x32xf32>
    %28 = vector.extract_strided_slice %25 {offsets = [0, 64], sizes = [2, 32], strides = [1, 1]} : vector<2x128xf32> to vector<2x32xf32>
    %29 = vector.extract_strided_slice %25 {offsets = [0, 96], sizes = [2, 32], strides = [1, 1]} : vector<2x128xf32> to vector<2x32xf32>
    %30 = arith.mulf %27, %14 : vector<2x32xf32>
    %31 = arith.mulf %26, %28 : vector<2x32xf32>
    %32 = arith.addf %30, %31 : vector<2x32xf32>
    %33 = math.tanh %32 : vector<2x32xf32>
    %34 = arith.mulf %29, %33 : vector<2x32xf32>
    %c0_14 = arith.constant 0 : index
    %c0_15 = arith.constant 0 : index
    %35 = vector.load %arg3[%c0_14, %c0_15] : memref<2x32xf32, #tpu.memory_space<vmem>>, vector<2x32xf32>
    tpu.vector_store %arg3[%c0_14, %c0_15], %34 {strides = array<i32>} : memref<2x32xf32, #tpu.memory_space<vmem>>, vector<2x32xf32>,
    %c0_16 = arith.constant 0 : index
    %c0_17 = arith.constant 0 : index
    %36 = vector.load %arg4[%c0_16, %c0_17] : memref<2x32xf32, #tpu.memory_space<vmem>>, vector<2x32xf32>
    tpu.vector_store %arg4[%c0_16, %c0_17], %32 {strides = array<i32>} : memref<2x32xf32, #tpu.memory_space<vmem>>, vector<2x32xf32>,
    %37 = arith.index_cast %c0_i32 : i32 to index
    %c0_18 = arith.constant 0 : index
    %c0_19 = arith.constant 0 : index
    %38 = vector.load %arg2[%37, %c0_18, %c0_19] : memref<8x2x32xf32, #tpu.memory_space<vmem>>, vector<1x2x32xf32>
    %39 = vector.shape_cast %38 : vector<1x2x32xf32> to vector<2x32xf32>
    %40 = vector.shape_cast %34 : vector<2x32xf32> to vector<1x2x32xf32>
    tpu.vector_store %arg2[%37, %c0_18, %c0_19], %40 {strides = array<i32>} : memref<8x2x32xf32, #tpu.memory_space<vmem>>, vector<1x2x32xf32>,
    %c1_i32 = arith.constant 1 : i32
    %41 = arith.index_cast %c1_i32 : i32 to index
    %c0_20 = arith.constant 0 : index
    %c0_21 = arith.constant 0 : index
    %42 = vector.load %arg0[%41, %c0_20, %c0_21] : memref<8x2x128xf32, #tpu.memory_space<vmem>>, vector<1x2x128xf32>
    %43 = vector.shape_cast %42 : vector<1x2x128xf32> to vector<2x128xf32>
    %c0_22 = arith.constant 0 : index
    %c0_23 = arith.constant 0 : index
    %44 = vector.load %arg3[%c0_22, %c0_23] : memref<2x32xf32, #tpu.memory_space<vmem>>, vector<2x32xf32>
    %c0_24 = arith.constant 0 : index
    %c0_25 = arith.constant 0 : index
    %45 = vector.load %arg4[%c0_24, %c0_25] : memref<2x32xf32, #tpu.memory_space<vmem>>, vector<2x32xf32>
    %46 = arith.truncf %44 : vector<2x32xf32> to vector<2x32xbf16>
    %c0_26 = arith.constant 0 : index
    %c0_27 = arith.constant 0 : index
    %47 = vector.load %arg1[%c0_26, %c0_27] : memref<32x128xbf16, #tpu.memory_space<vmem>>, vector<32x128xbf16>
    %cst_28 = arith.constant dense<0.000000e+00> : vector<2x128xf32>
    %48 = tpu.matmul %46, %47, %cst_28 {dimension_numbers = #tpu.dot_dimension_numbers<[1], [0], [0], [1], [0, 0, 1, 1], [], []>} : vector<2x32xbf16>, vector<32x128xbf16>, vector<2x128xf32> -> vector<2x128xf32>
    %49 = arith.addf %43, %48 : vector<2x128xf32>
    %50 = math.tanh %49 : vector<2x128xf32>
    %51 = arith.negf %49 : vector<2x128xf32>
    %52 = math.exp %51 : vector<2x128xf32>
    %cst_29 = arith.constant 1.000000e+00 : f32
    %53 = vector.broadcast %cst_29 : f32 to vector<2x128xf32>
    %54 = arith.addf %53, %52 : vector<2x128xf32>
    %55 = arith.divf %53, %54 : vector<2x128xf32>
    %56 = arith.select %9, %50, %55 : vector<2x128xi1>, vector<2x128xf32>
    %57 = vector.extract_strided_slice %56 {offsets = [0, 0], sizes = [2, 32], strides = [1, 1]} : vector<2x128xf32> to vector<2x32xf32>
    %58 = vector.extract_strided_slice %56 {offsets = [0, 32], sizes = [2, 32], strides = [1, 1]} : vector<2x128xf32> to vector<2x32xf32>
    %59 = vector.extract_strided_slice %56 {offsets = [0, 64], sizes = [2, 32], strides = [1, 1]} : vector<2x128xf32> to vector<2x32xf32>
    %60 = vector.extract_strided_slice %56 {offsets = [0, 96], sizes = [2, 32], strides = [1, 1]} : vector<2x128xf32> to vector<2x32xf32>
    %61 = arith.mulf %58, %45 : vector<2x32xf32>
    %62 = arith.mulf %57, %59 : vector<2x32xf32>
    %63 = arith.addf %61, %62 : vector<2x32xf32>
    %64 = math.tanh %63 : vector<2x32xf32>
    %65 = arith.mulf %60, %64 : vector<2x32xf32>
    %c0_30 = arith.constant 0 : index
    %c0_31 = arith.constant 0 : index
    %66 = vector.load %arg3[%c0_30, %c0_31] : memref<2x32xf32, #tpu.memory_space<vmem>>, vector<2x32xf32>
    tpu.vector_store %arg3[%c0_30, %c0_31], %65 {strides = array<i32>} : memref<2x32xf32, #tpu.memory_space<vmem>>, vector<2x32xf32>,
    %c0_32 = arith.constant 0 : index
    %c0_33 = arith.constant 0 : index
    %67 = vector.load %arg4[%c0_32, %c0_33] : memref<2x32xf32, #tpu.memory_space<vmem>>, vector<2x32xf32>
    tpu.vector_store %arg4[%c0_32, %c0_33], %63 {strides = array<i32>} : memref<2x32xf32, #tpu.memory_space<vmem>>, vector<2x32xf32>,
    %68 = arith.index_cast %c1_i32 : i32 to index
    %c0_34 = arith.constant 0 : index
    %c0_35 = arith.constant 0 : index
    %69 = vector.load %arg2[%68, %c0_34, %c0_35] : memref<8x2x32xf32, #tpu.memory_space<vmem>>, vector<1x2x32xf32>
    %70 = vector.shape_cast %69 : vector<1x2x32xf32> to vector<2x32xf32>
    %71 = vector.shape_cast %65 : vector<2x32xf32> to vector<1x2x32xf32>
    tpu.vector_store %arg2[%68, %c0_34, %c0_35], %71 {strides = array<i32>} : memref<8x2x32xf32, #tpu.memory_space<vmem>>, vector<1x2x32xf32>,
    %c2_i32 = arith.constant 2 : i32
    %72 = arith.index_cast %c2_i32 : i32 to index
    %c0_36 = arith.constant 0 : index
    %c0_37 = arith.constant 0 : index
    %73 = vector.load %arg0[%72, %c0_36, %c0_37] : memref<8x2x128xf32, #tpu.memory_space<vmem>>, vector<1x2x128xf32>
    %74 = vector.shape_cast %73 : vector<1x2x128xf32> to vector<2x128xf32>
    %c0_38 = arith.constant 0 : index
    %c0_39 = arith.constant 0 : index
    %75 = vector.load %arg3[%c0_38, %c0_39] : memref<2x32xf32, #tpu.memory_space<vmem>>, vector<2x32xf32>
    %c0_40 = arith.constant 0 : index
    %c0_41 = arith.constant 0 : index
    %76 = vector.load %arg4[%c0_40, %c0_41] : memref<2x32xf32, #tpu.memory_space<vmem>>, vector<2x32xf32>
    %77 = arith.truncf %75 : vector<2x32xf32> to vector<2x32xbf16>
    %c0_42 = arith.constant 0 : index
    %c0_43 = arith.constant 0 : index
    %78 = vector.load %arg1[%c0_42, %c0_43] : memref<32x128xbf16, #tpu.memory_space<vmem>>, vector<32x128xbf16>
    %cst_44 = arith.constant dense<0.000000e+00> : vector<2x128xf32>
    %79 = tpu.matmul %77, %78, %cst_44 {dimension_numbers = #tpu.dot_dimension_numbers<[1], [0], [0], [1], [0, 0, 1, 1], [], []>} : vector<2x32xbf16>, vector<32x128xbf16>, vector<2x128xf32> -> vector<2x128xf32>
    %80 = arith.addf %74, %79 : vector<2x128xf32>
    %81 = math.tanh %80 : vector<2x128xf32>
    %82 = arith.negf %80 : vector<2x128xf32>
    %83 = math.exp %82 : vector<2x128xf32>
    %cst_45 = arith.constant 1.000000e+00 : f32
    %84 = vector.broadcast %cst_45 : f32 to vector<2x128xf32>
    %85 = arith.addf %84, %83 : vector<2x128xf32>
    %86 = arith.divf %84, %85 : vector<2x128xf32>
    %87 = arith.select %9, %81, %86 : vector<2x128xi1>, vector<2x128xf32>
    %88 = vector.extract_strided_slice %87 {offsets = [0, 0], sizes = [2, 32], strides = [1, 1]} : vector<2x128xf32> to vector<2x32xf32>
    %89 = vector.extract_strided_slice %87 {offsets = [0, 32], sizes = [2, 32], strides = [1, 1]} : vector<2x128xf32> to vector<2x32xf32>
    %90 = vector.extract_strided_slice %87 {offsets = [0, 64], sizes = [2, 32], strides = [1, 1]} : vector<2x128xf32> to vector<2x32xf32>
    %91 = vector.extract_strided_slice %87 {offsets = [0, 96], sizes = [2, 32], strides = [1, 1]} : vector<2x128xf32> to vector<2x32xf32>
    %92 = arith.mulf %89, %76 : vector<2x32xf32>
    %93 = arith.mulf %88, %90 : vector<2x32xf32>
    %94 = arith.addf %92, %93 : vector<2x32xf32>
    %95 = math.tanh %94 : vector<2x32xf32>
    %96 = arith.mulf %91, %95 : vector<2x32xf32>
    %c0_46 = arith.constant 0 : index
    %c0_47 = arith.constant 0 : index
    %97 = vector.load %arg3[%c0_46, %c0_47] : memref<2x32xf32, #tpu.memory_space<vmem>>, vector<2x32xf32>
    tpu.vector_store %arg3[%c0_46, %c0_47], %96 {strides = array<i32>} : memref<2x32xf32, #tpu.memory_space<vmem>>, vector<2x32xf32>,
    %c0_48 = arith.constant 0 : index
    %c0_49 = arith.constant 0 : index
    %98 = vector.load %arg4[%c0_48, %c0_49] : memref<2x32xf32, #tpu.memory_space<vmem>>, vector<2x32xf32>
    tpu.vector_store %arg4[%c0_48, %c0_49], %94 {strides = array<i32>} : memref<2x32xf32, #tpu.memory_space<vmem>>, vector<2x32xf32>,
    %99 = arith.index_cast %c2_i32 : i32 to index
    %c0_50 = arith.constant 0 : index
    %c0_51 = arith.constant 0 : index
    %100 = vector.load %arg2[%99, %c0_50, %c0_51] : memref<8x2x32xf32, #tpu.memory_space<vmem>>, vector<1x2x32xf32>
    %101 = vector.shape_cast %100 : vector<1x2x32xf32> to vector<2x32xf32>
    %102 = vector.shape_cast %96 : vector<2x32xf32> to vector<1x2x32xf32>
    tpu.vector_store %arg2[%99, %c0_50, %c0_51], %102 {strides = array<i32>} : memref<8x2x32xf32, #tpu.memory_space<vmem>>, vector<1x2x32xf32>,
    %c3_i32 = arith.constant 3 : i32
    %103 = arith.index_cast %c3_i32 : i32 to index
    %c0_52 = arith.constant 0 : index
    %c0_53 = arith.constant 0 : index
    %104 = vector.load %arg0[%103, %c0_52, %c0_53] : memref<8x2x128xf32, #tpu.memory_space<vmem>>, vector<1x2x128xf32>
    %105 = vector.shape_cast %104 : vector<1x2x128xf32> to vector<2x128xf32>
    %c0_54 = arith.constant 0 : index
    %c0_55 = arith.constant 0 : index
    %106 = vector.load %arg3[%c0_54, %c0_55] : memref<2x32xf32, #tpu.memory_space<vmem>>, vector<2x32xf32>
    %c0_56 = arith.constant 0 : index
    %c0_57 = arith.constant 0 : index
    %107 = vector.load %arg4[%c0_56, %c0_57] : memref<2x32xf32, #tpu.memory_space<vmem>>, vector<2x32xf32>
    %108 = arith.truncf %106 : vector<2x32xf32> to vector<2x32xbf16>
    %c0_58 = arith.constant 0 : index
    %c0_59 = arith.constant 0 : index
    %109 = vector.load %arg1[%c0_58, %c0_59] : memref<32x128xbf16, #tpu.memory_space<vmem>>, vector<32x128xbf16>
    %cst_60 = arith.constant dense<0.000000e+00> : vector<2x128xf32>
    %110 = tpu.matmul %108, %109, %cst_60 {dimension_numbers = #tpu.dot_dimension_numbers<[1], [0], [0], [1], [0, 0, 1, 1], [], []>} : vector<2x32xbf16>, vector<32x128xbf16>, vector<2x128xf32> -> vector<2x128xf32>
    %111 = arith.addf %105, %110 : vector<2x128xf32>
    %112 = math.tanh %111 : vector<2x128xf32>
    %113 = arith.negf %111 : vector<2x128xf32>
    %114 = math.exp %113 : vector<2x128xf32>
    %cst_61 = arith.constant 1.000000e+00 : f32
    %115 = vector.broadcast %cst_61 : f32 to vector<2x128xf32>
    %116 = arith.addf %115, %114 : vector<2x128xf32>
    %117 = arith.divf %115, %116 : vector<2x128xf32>
    %118 = arith.select %9, %112, %117 : vector<2x128xi1>, vector<2x128xf32>
    %119 = vector.extract_strided_slice %118 {offsets = [0, 0], sizes = [2, 32], strides = [1, 1]} : vector<2x128xf32> to vector<2x32xf32>
    %120 = vector.extract_strided_slice %118 {offsets = [0, 32], sizes = [2, 32], strides = [1, 1]} : vector<2x128xf32> to vector<2x32xf32>
    %121 = vector.extract_strided_slice %118 {offsets = [0, 64], sizes = [2, 32], strides = [1, 1]} : vector<2x128xf32> to vector<2x32xf32>
    %122 = vector.extract_strided_slice %118 {offsets = [0, 96], sizes = [2, 32], strides = [1, 1]} : vector<2x128xf32> to vector<2x32xf32>
    %123 = arith.mulf %120, %107 : vector<2x32xf32>
    %124 = arith.mulf %119, %121 : vector<2x32xf32>
    %125 = arith.addf %123, %124 : vector<2x32xf32>
    %126 = math.tanh %125 : vector<2x32xf32>
    %127 = arith.mulf %122, %126 : vector<2x32xf32>
    %c0_62 = arith.constant 0 : index
    %c0_63 = arith.constant 0 : index
    %128 = vector.load %arg3[%c0_62, %c0_63] : memref<2x32xf32, #tpu.memory_space<vmem>>, vector<2x32xf32>
    tpu.vector_store %arg3[%c0_62, %c0_63], %127 {strides = array<i32>} : memref<2x32xf32, #tpu.memory_space<vmem>>, vector<2x32xf32>,
    %c0_64 = arith.constant 0 : index
    %c0_65 = arith.constant 0 : index
    %129 = vector.load %arg4[%c0_64, %c0_65] : memref<2x32xf32, #tpu.memory_space<vmem>>, vector<2x32xf32>
    tpu.vector_store %arg4[%c0_64, %c0_65], %125 {strides = array<i32>} : memref<2x32xf32, #tpu.memory_space<vmem>>, vector<2x32xf32>,
    %130 = arith.index_cast %c3_i32 : i32 to index
    %c0_66 = arith.constant 0 : index
    %c0_67 = arith.constant 0 : index
    %131 = vector.load %arg2[%130, %c0_66, %c0_67] : memref<8x2x32xf32, #tpu.memory_space<vmem>>, vector<1x2x32xf32>
    %132 = vector.shape_cast %131 : vector<1x2x32xf32> to vector<2x32xf32>
    %133 = vector.shape_cast %127 : vector<2x32xf32> to vector<1x2x32xf32>
    tpu.vector_store %arg2[%130, %c0_66, %c0_67], %133 {strides = array<i32>} : memref<8x2x32xf32, #tpu.memory_space<vmem>>, vector<1x2x32xf32>,
    %c4_i32 = arith.constant 4 : i32
    %134 = arith.index_cast %c4_i32 : i32 to index
    %c0_68 = arith.constant 0 : index
    %c0_69 = arith.constant 0 : index
    %135 = vector.load %arg0[%134, %c0_68, %c0_69] : memref<8x2x128xf32, #tpu.memory_space<vmem>>, vector<1x2x128xf32>
    %136 = vector.shape_cast %135 : vector<1x2x128xf32> to vector<2x128xf32>
    %c0_70 = arith.constant 0 : index
    %c0_71 = arith.constant 0 : index
    %137 = vector.load %arg3[%c0_70, %c0_71] : memref<2x32xf32, #tpu.memory_space<vmem>>, vector<2x32xf32>
    %c0_72 = arith.constant 0 : index
    %c0_73 = arith.constant 0 : index
    %138 = vector.load %arg4[%c0_72, %c0_73] : memref<2x32xf32, #tpu.memory_space<vmem>>, vector<2x32xf32>
    %139 = arith.truncf %137 : vector<2x32xf32> to vector<2x32xbf16>
    %c0_74 = arith.constant 0 : index
    %c0_75 = arith.constant 0 : index
    %140 = vector.load %arg1[%c0_74, %c0_75] : memref<32x128xbf16, #tpu.memory_space<vmem>>, vector<32x128xbf16>
    %cst_76 = arith.constant dense<0.000000e+00> : vector<2x128xf32>
    %141 = tpu.matmul %139, %140, %cst_76 {dimension_numbers = #tpu.dot_dimension_numbers<[1], [0], [0], [1], [0, 0, 1, 1], [], []>} : vector<2x32xbf16>, vector<32x128xbf16>, vector<2x128xf32> -> vector<2x128xf32>
    %142 = arith.addf %136, %141 : vector<2x128xf32>
    %143 = math.tanh %142 : vector<2x128xf32>
    %144 = arith.negf %142 : vector<2x128xf32>
    %145 = math.exp %144 : vector<2x128xf32>
    %cst_77 = arith.constant 1.000000e+00 : f32
    %146 = vector.broadcast %cst_77 : f32 to vector<2x128xf32>
    %147 = arith.addf %146, %145 : vector<2x128xf32>
    %148 = arith.divf %146, %147 : vector<2x128xf32>
    %149 = arith.select %9, %143, %148 : vector<2x128xi1>, vector<2x128xf32>
    %150 = vector.extract_strided_slice %149 {offsets = [0, 0], sizes = [2, 32], strides = [1, 1]} : vector<2x128xf32> to vector<2x32xf32>
    %151 = vector.extract_strided_slice %149 {offsets = [0, 32], sizes = [2, 32], strides = [1, 1]} : vector<2x128xf32> to vector<2x32xf32>
    %152 = vector.extract_strided_slice %149 {offsets = [0, 64], sizes = [2, 32], strides = [1, 1]} : vector<2x128xf32> to vector<2x32xf32>
    %153 = vector.extract_strided_slice %149 {offsets = [0, 96], sizes = [2, 32], strides = [1, 1]} : vector<2x128xf32> to vector<2x32xf32>
    %154 = arith.mulf %151, %138 : vector<2x32xf32>
    %155 = arith.mulf %150, %152 : vector<2x32xf32>
    %156 = arith.addf %154, %155 : vector<2x32xf32>
    %157 = math.tanh %156 : vector<2x32xf32>
    %158 = arith.mulf %153, %157 : vector<2x32xf32>
    %c0_78 = arith.constant 0 : index
    %c0_79 = arith.constant 0 : index
    %159 = vector.load %arg3[%c0_78, %c0_79] : memref<2x32xf32, #tpu.memory_space<vmem>>, vector<2x32xf32>
    tpu.vector_store %arg3[%c0_78, %c0_79], %158 {strides = array<i32>} : memref<2x32xf32, #tpu.memory_space<vmem>>, vector<2x32xf32>,
    %c0_80 = arith.constant 0 : index
    %c0_81 = arith.constant 0 : index
    %160 = vector.load %arg4[%c0_80, %c0_81] : memref<2x32xf32, #tpu.memory_space<vmem>>, vector<2x32xf32>
    tpu.vector_store %arg4[%c0_80, %c0_81], %156 {strides = array<i32>} : memref<2x32xf32, #tpu.memory_space<vmem>>, vector<2x32xf32>,
    %161 = arith.index_cast %c4_i32 : i32 to index
    %c0_82 = arith.constant 0 : index
    %c0_83 = arith.constant 0 : index
    %162 = vector.load %arg2[%161, %c0_82, %c0_83] : memref<8x2x32xf32, #tpu.memory_space<vmem>>, vector<1x2x32xf32>
    %163 = vector.shape_cast %162 : vector<1x2x32xf32> to vector<2x32xf32>
    %164 = vector.shape_cast %158 : vector<2x32xf32> to vector<1x2x32xf32>
    tpu.vector_store %arg2[%161, %c0_82, %c0_83], %164 {strides = array<i32>} : memref<8x2x32xf32, #tpu.memory_space<vmem>>, vector<1x2x32xf32>,
    %c5_i32 = arith.constant 5 : i32
    %165 = arith.index_cast %c5_i32 : i32 to index
    %c0_84 = arith.constant 0 : index
    %c0_85 = arith.constant 0 : index
    %166 = vector.load %arg0[%165, %c0_84, %c0_85] : memref<8x2x128xf32, #tpu.memory_space<vmem>>, vector<1x2x128xf32>
    %167 = vector.shape_cast %166 : vector<1x2x128xf32> to vector<2x128xf32>
    %c0_86 = arith.constant 0 : index
    %c0_87 = arith.constant 0 : index
    %168 = vector.load %arg3[%c0_86, %c0_87] : memref<2x32xf32, #tpu.memory_space<vmem>>, vector<2x32xf32>
    %c0_88 = arith.constant 0 : index
    %c0_89 = arith.constant 0 : index
    %169 = vector.load %arg4[%c0_88, %c0_89] : memref<2x32xf32, #tpu.memory_space<vmem>>, vector<2x32xf32>
    %170 = arith.truncf %168 : vector<2x32xf32> to vector<2x32xbf16>
    %c0_90 = arith.constant 0 : index
    %c0_91 = arith.constant 0 : index
    %171 = vector.load %arg1[%c0_90, %c0_91] : memref<32x128xbf16, #tpu.memory_space<vmem>>, vector<32x128xbf16>
    %cst_92 = arith.constant dense<0.000000e+00> : vector<2x128xf32>
    %172 = tpu.matmul %170, %171, %cst_92 {dimension_numbers = #tpu.dot_dimension_numbers<[1], [0], [0], [1], [0, 0, 1, 1], [], []>} : vector<2x32xbf16>, vector<32x128xbf16>, vector<2x128xf32> -> vector<2x128xf32>
    %173 = arith.addf %167, %172 : vector<2x128xf32>
    %174 = math.tanh %173 : vector<2x128xf32>
    %175 = arith.negf %173 : vector<2x128xf32>
    %176 = math.exp %175 : vector<2x128xf32>
    %cst_93 = arith.constant 1.000000e+00 : f32
    %177 = vector.broadcast %cst_93 : f32 to vector<2x128xf32>
    %178 = arith.addf %177, %176 : vector<2x128xf32>
    %179 = arith.divf %177, %178 : vector<2x128xf32>
    %180 = arith.select %9, %174, %179 : vector<2x128xi1>, vector<2x128xf32>
    %181 = vector.extract_strided_slice %180 {offsets = [0, 0], sizes = [2, 32], strides = [1, 1]} : vector<2x128xf32> to vector<2x32xf32>
    %182 = vector.extract_strided_slice %180 {offsets = [0, 32], sizes = [2, 32], strides = [1, 1]} : vector<2x128xf32> to vector<2x32xf32>
    %183 = vector.extract_strided_slice %180 {offsets = [0, 64], sizes = [2, 32], strides = [1, 1]} : vector<2x128xf32> to vector<2x32xf32>
    %184 = vector.extract_strided_slice %180 {offsets = [0, 96], sizes = [2, 32], strides = [1, 1]} : vector<2x128xf32> to vector<2x32xf32>
    %185 = arith.mulf %182, %169 : vector<2x32xf32>
    %186 = arith.mulf %181, %183 : vector<2x32xf32>
    %187 = arith.addf %185, %186 : vector<2x32xf32>
    %188 = math.tanh %187 : vector<2x32xf32>
    %189 = arith.mulf %184, %188 : vector<2x32xf32>
    %c0_94 = arith.constant 0 : index
    %c0_95 = arith.constant 0 : index
    %190 = vector.load %arg3[%c0_94, %c0_95] : memref<2x32xf32, #tpu.memory_space<vmem>>, vector<2x32xf32>
    tpu.vector_store %arg3[%c0_94, %c0_95], %189 {strides = array<i32>} : memref<2x32xf32, #tpu.memory_space<vmem>>, vector<2x32xf32>,
    %c0_96 = arith.constant 0 : index
    %c0_97 = arith.constant 0 : index
    %191 = vector.load %arg4[%c0_96, %c0_97] : memref<2x32xf32, #tpu.memory_space<vmem>>, vector<2x32xf32>
    tpu.vector_store %arg4[%c0_96, %c0_97], %187 {strides = array<i32>} : memref<2x32xf32, #tpu.memory_space<vmem>>, vector<2x32xf32>,
    %192 = arith.index_cast %c5_i32 : i32 to index
    %c0_98 = arith.constant 0 : index
    %c0_99 = arith.constant 0 : index
    %193 = vector.load %arg2[%192, %c0_98, %c0_99] : memref<8x2x32xf32, #tpu.memory_space<vmem>>, vector<1x2x32xf32>
    %194 = vector.shape_cast %193 : vector<1x2x32xf32> to vector<2x32xf32>
    %195 = vector.shape_cast %189 : vector<2x32xf32> to vector<1x2x32xf32>
    tpu.vector_store %arg2[%192, %c0_98, %c0_99], %195 {strides = array<i32>} : memref<8x2x32xf32, #tpu.memory_space<vmem>>, vector<1x2x32xf32>,
    %c6_i32 = arith.constant 6 : i32
    %196 = arith.index_cast %c6_i32 : i32 to index
    %c0_100 = arith.constant 0 : index
    %c0_101 = arith.constant 0 : index
    %197 = vector.load %arg0[%196, %c0_100, %c0_101] : memref<8x2x128xf32, #tpu.memory_space<vmem>>, vector<1x2x128xf32>
    %198 = vector.shape_cast %197 : vector<1x2x128xf32> to vector<2x128xf32>
    %c0_102 = arith.constant 0 : index
    %c0_103 = arith.constant 0 : index
    %199 = vector.load %arg3[%c0_102, %c0_103] : memref<2x32xf32, #tpu.memory_space<vmem>>, vector<2x32xf32>
    %c0_104 = arith.constant 0 : index
    %c0_105 = arith.constant 0 : index
    %200 = vector.load %arg4[%c0_104, %c0_105] : memref<2x32xf32, #tpu.memory_space<vmem>>, vector<2x32xf32>
    %201 = arith.truncf %199 : vector<2x32xf32> to vector<2x32xbf16>
    %c0_106 = arith.constant 0 : index
    %c0_107 = arith.constant 0 : index
    %202 = vector.load %arg1[%c0_106, %c0_107] : memref<32x128xbf16, #tpu.memory_space<vmem>>, vector<32x128xbf16>
    %cst_108 = arith.constant dense<0.000000e+00> : vector<2x128xf32>
    %203 = tpu.matmul %201, %202, %cst_108 {dimension_numbers = #tpu.dot_dimension_numbers<[1], [0], [0], [1], [0, 0, 1, 1], [], []>} : vector<2x32xbf16>, vector<32x128xbf16>, vector<2x128xf32> -> vector<2x128xf32>
    %204 = arith.addf %198, %203 : vector<2x128xf32>
    %205 = math.tanh %204 : vector<2x128xf32>
    %206 = arith.negf %204 : vector<2x128xf32>
    %207 = math.exp %206 : vector<2x128xf32>
    %cst_109 = arith.constant 1.000000e+00 : f32
    %208 = vector.broadcast %cst_109 : f32 to vector<2x128xf32>
    %209 = arith.addf %208, %207 : vector<2x128xf32>
    %210 = arith.divf %208, %209 : vector<2x128xf32>
    %211 = arith.select %9, %205, %210 : vector<2x128xi1>, vector<2x128xf32>
    %212 = vector.extract_strided_slice %211 {offsets = [0, 0], sizes = [2, 32], strides = [1, 1]} : vector<2x128xf32> to vector<2x32xf32>
    %213 = vector.extract_strided_slice %211 {offsets = [0, 32], sizes = [2, 32], strides = [1, 1]} : vector<2x128xf32> to vector<2x32xf32>
    %214 = vector.extract_strided_slice %211 {offsets = [0, 64], sizes = [2, 32], strides = [1, 1]} : vector<2x128xf32> to vector<2x32xf32>
    %215 = vector.extract_strided_slice %211 {offsets = [0, 96], sizes = [2, 32], strides = [1, 1]} : vector<2x128xf32> to vector<2x32xf32>
    %216 = arith.mulf %213, %200 : vector<2x32xf32>
    %217 = arith.mulf %212, %214 : vector<2x32xf32>
    %218 = arith.addf %216, %217 : vector<2x32xf32>
    %219 = math.tanh %218 : vector<2x32xf32>
    %220 = arith.mulf %215, %219 : vector<2x32xf32>
    %c0_110 = arith.constant 0 : index
    %c0_111 = arith.constant 0 : index
    %221 = vector.load %arg3[%c0_110, %c0_111] : memref<2x32xf32, #tpu.memory_space<vmem>>, vector<2x32xf32>
    tpu.vector_store %arg3[%c0_110, %c0_111], %220 {strides = array<i32>} : memref<2x32xf32, #tpu.memory_space<vmem>>, vector<2x32xf32>,
    %c0_112 = arith.constant 0 : index
    %c0_113 = arith.constant 0 : index
    %222 = vector.load %arg4[%c0_112, %c0_113] : memref<2x32xf32, #tpu.memory_space<vmem>>, vector<2x32xf32>
    tpu.vector_store %arg4[%c0_112, %c0_113], %218 {strides = array<i32>} : memref<2x32xf32, #tpu.memory_space<vmem>>, vector<2x32xf32>,
    %223 = arith.index_cast %c6_i32 : i32 to index
    %c0_114 = arith.constant 0 : index
    %c0_115 = arith.constant 0 : index
    %224 = vector.load %arg2[%223, %c0_114, %c0_115] : memref<8x2x32xf32, #tpu.memory_space<vmem>>, vector<1x2x32xf32>
    %225 = vector.shape_cast %224 : vector<1x2x32xf32> to vector<2x32xf32>
    %226 = vector.shape_cast %220 : vector<2x32xf32> to vector<1x2x32xf32>
    tpu.vector_store %arg2[%223, %c0_114, %c0_115], %226 {strides = array<i32>} : memref<8x2x32xf32, #tpu.memory_space<vmem>>, vector<1x2x32xf32>,
    %c7_i32 = arith.constant 7 : i32
    %227 = arith.index_cast %c7_i32 : i32 to index
    %c0_116 = arith.constant 0 : index
    %c0_117 = arith.constant 0 : index
    %228 = vector.load %arg0[%227, %c0_116, %c0_117] : memref<8x2x128xf32, #tpu.memory_space<vmem>>, vector<1x2x128xf32>
    %229 = vector.shape_cast %228 : vector<1x2x128xf32> to vector<2x128xf32>
    %c0_118 = arith.constant 0 : index
    %c0_119 = arith.constant 0 : index
    %230 = vector.load %arg3[%c0_118, %c0_119] : memref<2x32xf32, #tpu.memory_space<vmem>>, vector<2x32xf32>
    %c0_120 = arith.constant 0 : index
    %c0_121 = arith.constant 0 : index
    %231 = vector.load %arg4[%c0_120, %c0_121] : memref<2x32xf32, #tpu.memory_space<vmem>>, vector<2x32xf32>
    %232 = arith.truncf %230 : vector<2x32xf32> to vector<2x32xbf16>
    %c0_122 = arith.constant 0 : index
    %c0_123 = arith.constant 0 : index
    %233 = vector.load %arg1[%c0_122, %c0_123] : memref<32x128xbf16, #tpu.memory_space<vmem>>, vector<32x128xbf16>
    %cst_124 = arith.constant dense<0.000000e+00> : vector<2x128xf32>
    %234 = tpu.matmul %232, %233, %cst_124 {dimension_numbers = #tpu.dot_dimension_numbers<[1], [0], [0], [1], [0, 0, 1, 1], [], []>} : vector<2x32xbf16>, vector<32x128xbf16>, vector<2x128xf32> -> vector<2x128xf32>
    %235 = arith.addf %229, %234 : vector<2x128xf32>
    %236 = math.tanh %235 : vector<2x128xf32>
    %237 = arith.negf %235 : vector<2x128xf32>
    %238 = math.exp %237 : vector<2x128xf32>
    %cst_125 = arith.constant 1.000000e+00 : f32
    %239 = vector.broadcast %cst_125 : f32 to vector<2x128xf32>
    %240 = arith.addf %239, %238 : vector<2x128xf32>
    %241 = arith.divf %239, %240 : vector<2x128xf32>
    %242 = arith.select %9, %236, %241 : vector<2x128xi1>, vector<2x128xf32>
    %243 = vector.extract_strided_slice %242 {offsets = [0, 0], sizes = [2, 32], strides = [1, 1]} : vector<2x128xf32> to vector<2x32xf32>
    %244 = vector.extract_strided_slice %242 {offsets = [0, 32], sizes = [2, 32], strides = [1, 1]} : vector<2x128xf32> to vector<2x32xf32>
    %245 = vector.extract_strided_slice %242 {offsets = [0, 64], sizes = [2, 32], strides = [1, 1]} : vector<2x128xf32> to vector<2x32xf32>
    %246 = vector.extract_strided_slice %242 {offsets = [0, 96], sizes = [2, 32], strides = [1, 1]} : vector<2x128xf32> to vector<2x32xf32>
    %247 = arith.mulf %244, %231 : vector<2x32xf32>
    %248 = arith.mulf %243, %245 : vector<2x32xf32>
    %249 = arith.addf %247, %248 : vector<2x32xf32>
    %250 = math.tanh %249 : vector<2x32xf32>
    %251 = arith.mulf %246, %250 : vector<2x32xf32>
    %c0_126 = arith.constant 0 : index
    %c0_127 = arith.constant 0 : index
    %252 = vector.load %arg3[%c0_126, %c0_127] : memref<2x32xf32, #tpu.memory_space<vmem>>, vector<2x32xf32>
    tpu.vector_store %arg3[%c0_126, %c0_127], %251 {strides = array<i32>} : memref<2x32xf32, #tpu.memory_space<vmem>>, vector<2x32xf32>,
    %c0_128 = arith.constant 0 : index
    %c0_129 = arith.constant 0 : index
    %253 = vector.load %arg4[%c0_128, %c0_129] : memref<2x32xf32, #tpu.memory_space<vmem>>, vector<2x32xf32>
    tpu.vector_store %arg4[%c0_128, %c0_129], %249 {strides = array<i32>} : memref<2x32xf32, #tpu.memory_space<vmem>>, vector<2x32xf32>,
    %254 = arith.index_cast %c7_i32 : i32 to index
    %c0_130 = arith.constant 0 : index
    %c0_131 = arith.constant 0 : index
    %255 = vector.load %arg2[%254, %c0_130, %c0_131] : memref<8x2x32xf32, #tpu.memory_space<vmem>>, vector<1x2x32xf32>
    %256 = vector.shape_cast %255 : vector<1x2x32xf32> to vector<2x32xf32>
    %257 = vector.shape_cast %251 : vector<2x32xf32> to vector<1x2x32xf32>
    tpu.vector_store %arg2[%254, %c0_130, %c0_131], %257 {strides = array<i32>} : memref<8x2x32xf32, #tpu.memory_space<vmem>>, vector<1x2x32xf32>,
    %c8_i32 = arith.constant 8 : i32
    return
  }
}

module attributes {stable_mosaic.version = 11 : i64} {
  func.func @_transformer_mean_kernel(%arg0: memref<16x32xf32, #tpu.memory_space<vmem>>, %arg1: memref<32x96xbf16, #tpu.memory_space<vmem>>, %arg2: memref<1x96xf32, #tpu.memory_space<vmem>>, %arg3: memref<32x32xbf16, #tpu.memory_space<vmem>>, %arg4: memref<1x32xf32, #tpu.memory_space<vmem>>, %arg5: memref<1x32xf32, #tpu.memory_space<vmem>>, %arg6: memref<1x32xf32, #tpu.memory_space<vmem>>, %arg7: memref<32x2048xbf16, #tpu.memory_space<vmem>>, %arg8: memref<1x2048xf32, #tpu.memory_space<vmem>>, %arg9: memref<2048x32xbf16, #tpu.memory_space<vmem>>, %arg10: memref<1x32xf32, #tpu.memory_space<vmem>>, %arg11: memref<1x32xf32, #tpu.memory_space<vmem>>, %arg12: memref<1x32xf32, #tpu.memory_space<vmem>>, %arg13: memref<2x32xf32, #tpu.memory_space<vmem>>, %arg14: memref<16x32xf32, #tpu.memory_space<vmem>>) attributes {dimension_semantics = [], scalar_prefetch = 0 : i64, scratch_operands = 1 : i64, tpu.core_type = #tpu.core_type<tc>} {
    %c0 = arith.constant 0 : index
    %c0_0 = arith.constant 0 : index
    %0 = vector.load %arg0[%c0, %c0_0] : memref<16x32xf32, #tpu.memory_space<vmem>>, vector<16x32xf32>
    %1 = arith.truncf %0 : vector<16x32xf32> to vector<16x32xbf16>
    %c0_1 = arith.constant 0 : index
    %c0_2 = arith.constant 0 : index
    %2 = vector.load %arg1[%c0_1, %c0_2] : memref<32x96xbf16, #tpu.memory_space<vmem>>, vector<32x96xbf16>
    %cst = arith.constant dense<0.000000e+00> : vector<16x96xf32>
    %3 = tpu.matmul %1, %2, %cst {dimension_numbers = #tpu.dot_dimension_numbers<[1], [0], [0], [1], [0, 0, 1, 1], [], []>} : vector<16x32xbf16>, vector<32x96xbf16>, vector<16x96xf32> -> vector<16x96xf32>
    %c0_3 = arith.constant 0 : index
    %c0_4 = arith.constant 0 : index
    %4 = vector.load %arg2[%c0_3, %c0_4] : memref<1x96xf32, #tpu.memory_space<vmem>>, vector<1x96xf32>
    %5 = vector.broadcast %4 : vector<1x96xf32> to vector<16x96xf32>
    %6 = arith.addf %3, %5 : vector<16x96xf32>
    %7 = vector.extract_strided_slice %6 {offsets = [0, 0], sizes = [16, 16], strides = [1, 1]} : vector<16x96xf32> to vector<16x16xf32>
    %cst_5 = arith.constant 2.500000e-01 : f32
    %8 = vector.broadcast %cst_5 : f32 to vector<16x16xf32>
    %9 = arith.mulf %7, %8 : vector<16x16xf32>
    %10 = vector.shape_cast %9 : vector<16x16xf32> to vector<2x8x16xf32>
    %11 = vector.extract_strided_slice %6 {offsets = [0, 32], sizes = [16, 16], strides = [1, 1]} : vector<16x96xf32> to vector<16x16xf32>
    %12 = vector.shape_cast %11 : vector<16x16xf32> to vector<2x8x16xf32>
    %13 = vector.extract_strided_slice %6 {offsets = [0, 64], sizes = [16, 16], strides = [1, 1]} : vector<16x96xf32> to vector<16x16xf32>
    %14 = vector.shape_cast %13 : vector<16x16xf32> to vector<2x8x16xf32>
    "tpu.trace_start"() <{level = 10 : i32, message = "btd,bsd->bts"}> : () -> ()
    %cst_6 = arith.constant dense<0.000000e+00> : vector<2x8x8xf32>
    %15 = tpu.matmul %10, %12, %cst_6 {dimension_numbers = #tpu.dot_dimension_numbers<[2], [2], [1], [1], [0, 0, 0, 1, 1, 1], [0], [0]>} : vector<2x8x16xf32>, vector<2x8x16xf32>, vector<2x8x8xf32> -> vector<2x8x8xf32>
    "tpu.trace_stop"() : () -> ()
    %cst_7 = arith.constant dense<0xFF800000> : vector<2x8xf32>
    %16 = vector.multi_reduction <maximumf>, %15, %cst_7 [2] : vector<2x8x8xf32> to vector<2x8xf32>
    %17 = vector.shape_cast %16 : vector<2x8xf32> to vector<2x8x1xf32>
    %18 = vector.broadcast %17 : vector<2x8x1xf32> to vector<2x8x8xf32>
    %19 = arith.subf %15, %18 : vector<2x8x8xf32>
    %20 = math.exp %19 : vector<2x8x8xf32>
    %cst_8 = arith.constant dense<0.000000e+00> : vector<2x8xf32>
    %21 = vector.multi_reduction <add>, %20, %cst_8 [2] : vector<2x8x8xf32> to vector<2x8xf32>
    %22 = vector.shape_cast %21 : vector<2x8xf32> to vector<2x8x1xf32>
    %23 = vector.broadcast %22 : vector<2x8x1xf32> to vector<2x8x8xf32>
    %24 = arith.divf %20, %23 : vector<2x8x8xf32>
    "tpu.trace_start"() <{level = 10 : i32, message = "bts,bsd->btd"}> : () -> ()
    %cst_9 = arith.constant dense<0.000000e+00> : vector<2x8x16xf32>
    %25 = tpu.matmul %24, %14, %cst_9 {dimension_numbers = #tpu.dot_dimension_numbers<[2], [1], [1], [2], [0, 0, 0, 1, 1, 2], [0], [0]>} : vector<2x8x8xf32>, vector<2x8x16xf32>, vector<2x8x16xf32> -> vector<2x8x16xf32>
    "tpu.trace_stop"() : () -> ()
    %26 = vector.shape_cast %25 : vector<2x8x16xf32> to vector<16x16xf32>
    %c0_10 = arith.constant 0 : index
    %c0_11 = arith.constant 0 : index
    %27 = vector.load %arg14[%c0_10, %c0_11] : memref<16x32xf32, #tpu.memory_space<vmem>>, vector<16x16xf32>
    tpu.vector_store %arg14[%c0_10, %c0_11], %26 {strides = array<i32>} : memref<16x32xf32, #tpu.memory_space<vmem>>, vector<16x16xf32>,
    %28 = vector.extract_strided_slice %6 {offsets = [0, 16], sizes = [16, 16], strides = [1, 1]} : vector<16x96xf32> to vector<16x16xf32>
    %cst_12 = arith.constant 2.500000e-01 : f32
    %29 = vector.broadcast %cst_12 : f32 to vector<16x16xf32>
    %30 = arith.mulf %28, %29 : vector<16x16xf32>
    %31 = vector.shape_cast %30 : vector<16x16xf32> to vector<2x8x16xf32>
    %32 = vector.extract_strided_slice %6 {offsets = [0, 48], sizes = [16, 16], strides = [1, 1]} : vector<16x96xf32> to vector<16x16xf32>
    %33 = vector.shape_cast %32 : vector<16x16xf32> to vector<2x8x16xf32>
    %34 = vector.extract_strided_slice %6 {offsets = [0, 80], sizes = [16, 16], strides = [1, 1]} : vector<16x96xf32> to vector<16x16xf32>
    %35 = vector.shape_cast %34 : vector<16x16xf32> to vector<2x8x16xf32>
    "tpu.trace_start"() <{level = 10 : i32, message = "btd,bsd->bts"}> : () -> ()
    %cst_13 = arith.constant dense<0.000000e+00> : vector<2x8x8xf32>
    %36 = tpu.matmul %31, %33, %cst_13 {dimension_numbers = #tpu.dot_dimension_numbers<[2], [2], [1], [1], [0, 0, 0, 1, 1, 1], [0], [0]>} : vector<2x8x16xf32>, vector<2x8x16xf32>, vector<2x8x8xf32> -> vector<2x8x8xf32>
    "tpu.trace_stop"() : () -> ()
    %cst_14 = arith.constant dense<0xFF800000> : vector<2x8xf32>
    %37 = vector.multi_reduction <maximumf>, %36, %cst_14 [2] : vector<2x8x8xf32> to vector<2x8xf32>
    %38 = vector.shape_cast %37 : vector<2x8xf32> to vector<2x8x1xf32>
    %39 = vector.broadcast %38 : vector<2x8x1xf32> to vector<2x8x8xf32>
    %40 = arith.subf %36, %39 : vector<2x8x8xf32>
    %41 = math.exp %40 : vector<2x8x8xf32>
    %cst_15 = arith.constant dense<0.000000e+00> : vector<2x8xf32>
    %42 = vector.multi_reduction <add>, %41, %cst_15 [2] : vector<2x8x8xf32> to vector<2x8xf32>
    %43 = vector.shape_cast %42 : vector<2x8xf32> to vector<2x8x1xf32>
    %44 = vector.broadcast %43 : vector<2x8x1xf32> to vector<2x8x8xf32>
    %45 = arith.divf %41, %44 : vector<2x8x8xf32>
    "tpu.trace_start"() <{level = 10 : i32, message = "bts,bsd->btd"}> : () -> ()
    %cst_16 = arith.constant dense<0.000000e+00> : vector<2x8x16xf32>
    %46 = tpu.matmul %45, %35, %cst_16 {dimension_numbers = #tpu.dot_dimension_numbers<[2], [1], [1], [2], [0, 0, 0, 1, 1, 2], [0], [0]>} : vector<2x8x8xf32>, vector<2x8x16xf32>, vector<2x8x16xf32> -> vector<2x8x16xf32>
    "tpu.trace_stop"() : () -> ()
    %47 = vector.shape_cast %46 : vector<2x8x16xf32> to vector<16x16xf32>
    %c0_17 = arith.constant 0 : index
    %c16 = arith.constant 16 : index
    %48 = vector.load %arg14[%c0_17, %c16] : memref<16x32xf32, #tpu.memory_space<vmem>>, vector<16x16xf32>
    tpu.vector_store %arg14[%c0_17, %c16], %47 {strides = array<i32>} : memref<16x32xf32, #tpu.memory_space<vmem>>, vector<16x16xf32>,
    %c0_18 = arith.constant 0 : index
    %c0_19 = arith.constant 0 : index
    %49 = vector.load %arg14[%c0_18, %c0_19] : memref<16x32xf32, #tpu.memory_space<vmem>>, vector<16x32xf32>
    %50 = arith.truncf %49 : vector<16x32xf32> to vector<16x32xbf16>
    %c0_20 = arith.constant 0 : index
    %c0_21 = arith.constant 0 : index
    %51 = vector.load %arg3[%c0_20, %c0_21] : memref<32x32xbf16, #tpu.memory_space<vmem>>, vector<32x32xbf16>
    %cst_22 = arith.constant dense<0.000000e+00> : vector<16x32xf32>
    %52 = tpu.matmul %50, %51, %cst_22 {dimension_numbers = #tpu.dot_dimension_numbers<[1], [0], [0], [1], [0, 0, 1, 1], [], []>} : vector<16x32xbf16>, vector<32x32xbf16>, vector<16x32xf32> -> vector<16x32xf32>
    %c0_23 = arith.constant 0 : index
    %c0_24 = arith.constant 0 : index
    %53 = vector.load %arg4[%c0_23, %c0_24] : memref<1x32xf32, #tpu.memory_space<vmem>>, vector<1x32xf32>
    %54 = vector.broadcast %53 : vector<1x32xf32> to vector<16x32xf32>
    %55 = arith.addf %52, %54 : vector<16x32xf32>
    %56 = arith.addf %0, %55 : vector<16x32xf32>
    %c0_25 = arith.constant 0 : index
    %c0_26 = arith.constant 0 : index
    %57 = vector.load %arg5[%c0_25, %c0_26] : memref<1x32xf32, #tpu.memory_space<vmem>>, vector<1x32xf32>
    %c0_27 = arith.constant 0 : index
    %c0_28 = arith.constant 0 : index
    %58 = vector.load %arg6[%c0_27, %c0_28] : memref<1x32xf32, #tpu.memory_space<vmem>>, vector<1x32xf32>
    %cst_29 = arith.constant dense<0.000000e+00> : vector<16xf32>
    %59 = vector.multi_reduction <add>, %56, %cst_29 [1] : vector<16x32xf32> to vector<16xf32>
    %60 = vector.shape_cast %59 : vector<16xf32> to vector<16x1xf32>
    %cst_30 = arith.constant 3.200000e+01 : f32
    %61 = vector.broadcast %cst_30 : f32 to vector<16x1xf32>
    %62 = arith.divf %60, %61 : vector<16x1xf32>
    %63 = vector.broadcast %62 : vector<16x1xf32> to vector<16x32xf32>
    %64 = arith.subf %56, %63 : vector<16x32xf32>
    %65 = arith.mulf %64, %64 : vector<16x32xf32>
    %cst_31 = arith.constant dense<0.000000e+00> : vector<16xf32>
    %66 = vector.multi_reduction <add>, %65, %cst_31 [1] : vector<16x32xf32> to vector<16xf32>
    %67 = vector.shape_cast %66 : vector<16xf32> to vector<16x1xf32>
    %cst_32 = arith.constant 3.200000e+01 : f32
    %68 = vector.broadcast %cst_32 : f32 to vector<16x1xf32>
    %69 = arith.divf %67, %68 : vector<16x1xf32>
    %70 = vector.broadcast %62 : vector<16x1xf32> to vector<16x32xf32>
    %71 = arith.subf %56, %70 : vector<16x32xf32>
    %cst_33 = arith.constant 9.99999974E-6 : f32
    %72 = vector.broadcast %cst_33 : f32 to vector<16x1xf32>
    %73 = arith.addf %69, %72 : vector<16x1xf32>
    %74 = math.rsqrt %73 : vector<16x1xf32>
    %75 = vector.broadcast %74 : vector<16x1xf32> to vector<16x32xf32>
    %76 = arith.mulf %71, %75 : vector<16x32xf32>
    %77 = vector.broadcast %57 : vector<1x32xf32> to vector<16x32xf32>
    %78 = arith.mulf %76, %77 : vector<16x32xf32>
    %79 = vector.broadcast %58 : vector<1x32xf32> to vector<16x32xf32>
    %80 = arith.addf %78, %79 : vector<16x32xf32>
    %81 = arith.truncf %80 : vector<16x32xf32> to vector<16x32xbf16>
    %c0_34 = arith.constant 0 : index
    %c0_35 = arith.constant 0 : index
    %82 = vector.load %arg7[%c0_34, %c0_35] : memref<32x2048xbf16, #tpu.memory_space<vmem>>, vector<32x2048xbf16>
    %cst_36 = arith.constant dense<0.000000e+00> : vector<16x2048xf32>
    %83 = tpu.matmul %81, %82, %cst_36 {dimension_numbers = #tpu.dot_dimension_numbers<[1], [0], [0], [1], [0, 0, 1, 1], [], []>} : vector<16x32xbf16>, vector<32x2048xbf16>, vector<16x2048xf32> -> vector<16x2048xf32>
    %c0_37 = arith.constant 0 : index
    %c0_38 = arith.constant 0 : index
    %84 = vector.load %arg8[%c0_37, %c0_38] : memref<1x2048xf32, #tpu.memory_space<vmem>>, vector<1x2048xf32>
    %85 = vector.broadcast %84 : vector<1x2048xf32> to vector<16x2048xf32>
    %86 = arith.addf %83, %85 : vector<16x2048xf32>
    %cst_39 = arith.constant 0.000000e+00 : f32
    %87 = vector.broadcast %cst_39 : f32 to vector<16x2048xf32>
    %88 = arith.maximumf %86, %87 : vector<16x2048xf32>
    %89 = arith.truncf %88 : vector<16x2048xf32> to vector<16x2048xbf16>
    %c0_40 = arith.constant 0 : index
    %c0_41 = arith.constant 0 : index
    %90 = vector.load %arg9[%c0_40, %c0_41] : memref<2048x32xbf16, #tpu.memory_space<vmem>>, vector<2048x32xbf16>
    %cst_42 = arith.constant dense<0.000000e+00> : vector<16x32xf32>
    %91 = tpu.matmul %89, %90, %cst_42 {dimension_numbers = #tpu.dot_dimension_numbers<[1], [0], [0], [1], [0, 0, 1, 1], [], []>} : vector<16x2048xbf16>, vector<2048x32xbf16>, vector<16x32xf32> -> vector<16x32xf32>
    %c0_43 = arith.constant 0 : index
    %c0_44 = arith.constant 0 : index
    %92 = vector.load %arg10[%c0_43, %c0_44] : memref<1x32xf32, #tpu.memory_space<vmem>>, vector<1x32xf32>
    %93 = vector.broadcast %92 : vector<1x32xf32> to vector<16x32xf32>
    %94 = arith.addf %91, %93 : vector<16x32xf32>
    %95 = arith.addf %80, %94 : vector<16x32xf32>
    %c0_45 = arith.constant 0 : index
    %c0_46 = arith.constant 0 : index
    %96 = vector.load %arg11[%c0_45, %c0_46] : memref<1x32xf32, #tpu.memory_space<vmem>>, vector<1x32xf32>
    %c0_47 = arith.constant 0 : index
    %c0_48 = arith.constant 0 : index
    %97 = vector.load %arg12[%c0_47, %c0_48] : memref<1x32xf32, #tpu.memory_space<vmem>>, vector<1x32xf32>
    %cst_49 = arith.constant dense<0.000000e+00> : vector<16xf32>
    %98 = vector.multi_reduction <add>, %95, %cst_49 [1] : vector<16x32xf32> to vector<16xf32>
    %99 = vector.shape_cast %98 : vector<16xf32> to vector<16x1xf32>
    %cst_50 = arith.constant 3.200000e+01 : f32
    %100 = vector.broadcast %cst_50 : f32 to vector<16x1xf32>
    %101 = arith.divf %99, %100 : vector<16x1xf32>
    %102 = vector.broadcast %101 : vector<16x1xf32> to vector<16x32xf32>
    %103 = arith.subf %95, %102 : vector<16x32xf32>
    %104 = arith.mulf %103, %103 : vector<16x32xf32>
    %cst_51 = arith.constant dense<0.000000e+00> : vector<16xf32>
    %105 = vector.multi_reduction <add>, %104, %cst_51 [1] : vector<16x32xf32> to vector<16xf32>
    %106 = vector.shape_cast %105 : vector<16xf32> to vector<16x1xf32>
    %cst_52 = arith.constant 3.200000e+01 : f32
    %107 = vector.broadcast %cst_52 : f32 to vector<16x1xf32>
    %108 = arith.divf %106, %107 : vector<16x1xf32>
    %109 = vector.broadcast %101 : vector<16x1xf32> to vector<16x32xf32>
    %110 = arith.subf %95, %109 : vector<16x32xf32>
    %cst_53 = arith.constant 9.99999974E-6 : f32
    %111 = vector.broadcast %cst_53 : f32 to vector<16x1xf32>
    %112 = arith.addf %108, %111 : vector<16x1xf32>
    %113 = math.rsqrt %112 : vector<16x1xf32>
    %114 = vector.broadcast %113 : vector<16x1xf32> to vector<16x32xf32>
    %115 = arith.mulf %110, %114 : vector<16x32xf32>
    %116 = vector.broadcast %96 : vector<1x32xf32> to vector<16x32xf32>
    %117 = arith.mulf %115, %116 : vector<16x32xf32>
    %118 = vector.broadcast %97 : vector<1x32xf32> to vector<16x32xf32>
    %119 = arith.addf %117, %118 : vector<16x32xf32>
    %120 = vector.shape_cast %119 : vector<16x32xf32> to vector<2x8x32xf32>
    %cst_54 = arith.constant dense<0.000000e+00> : vector<2x32xf32>
    %121 = vector.multi_reduction <add>, %120, %cst_54 [1] : vector<2x8x32xf32> to vector<2x32xf32>
    %cst_55 = arith.constant 8.000000e+00 : f32
    %122 = vector.broadcast %cst_55 : f32 to vector<2x32xf32>
    %123 = arith.divf %121, %122 : vector<2x32xf32>
    %c0_56 = arith.constant 0 : index
    %c0_57 = arith.constant 0 : index
    %124 = vector.load %arg13[%c0_56, %c0_57] : memref<2x32xf32, #tpu.memory_space<vmem>>, vector<2x32xf32>
    tpu.vector_store %arg13[%c0_56, %c0_57], %123 {strides = array<i32>} : memref<2x32xf32, #tpu.memory_space<vmem>>, vector<2x32xf32>,
    return
  }
}

module attributes {stable_mosaic.version = 11 : i64} {
  func.func @_lstm_kernel(%arg0: memref<2x64xf32, #tpu.memory_space<vmem>>, %arg1: memref<16x64xbf16, #tpu.memory_space<vmem>>, %arg2: memref<8x2x16xf32, #tpu.memory_space<vmem>>, %arg3: memref<2x16xf32, #tpu.memory_space<vmem>>, %arg4: memref<2x16xf32, #tpu.memory_space<vmem>>) attributes {dimension_semantics = [], scalar_prefetch = 0 : i64, scratch_operands = 2 : i64, tpu.core_type = #tpu.core_type<tc>} {
    %cst = arith.constant 0.000000e+00 : f32
    %0 = vector.broadcast %cst : f32 to vector<2x16xf32>
    %c0 = arith.constant 0 : index
    %c0_0 = arith.constant 0 : index
    %1 = vector.load %arg3[%c0, %c0_0] : memref<2x16xf32, #tpu.memory_space<vmem>>, vector<2x16xf32>
    tpu.vector_store %arg3[%c0, %c0_0], %0 {strides = array<i32>} : memref<2x16xf32, #tpu.memory_space<vmem>>, vector<2x16xf32>,
    %cst_1 = arith.constant 0.000000e+00 : f32
    %2 = vector.broadcast %cst_1 : f32 to vector<2x16xf32>
    %c0_2 = arith.constant 0 : index
    %c0_3 = arith.constant 0 : index
    %3 = vector.load %arg4[%c0_2, %c0_3] : memref<2x16xf32, #tpu.memory_space<vmem>>, vector<2x16xf32>
    tpu.vector_store %arg4[%c0_2, %c0_3], %2 {strides = array<i32>} : memref<2x16xf32, #tpu.memory_space<vmem>>, vector<2x16xf32>,
    %4 = tpu.iota {dimensions = array<i32: 1>} : vector<2x64xi32>
    %c32_i32 = arith.constant 32 : i32
    %5 = vector.broadcast %c32_i32 : i32 to vector<2x64xi32>
    %6 = arith.cmpi sge, %4, %5 : vector<2x64xi32>
    %c48_i32 = arith.constant 48 : i32
    %7 = vector.broadcast %c48_i32 : i32 to vector<2x64xi32>
    %8 = arith.cmpi slt, %4, %7 : vector<2x64xi32>
    %9 = arith.andi %6, %8 : vector<2x64xi1>
    %c0_4 = arith.constant 0 : index
    %c0_5 = arith.constant 0 : index
    %10 = vector.load %arg0[%c0_4, %c0_5] : memref<2x64xf32, #tpu.memory_space<vmem>>, vector<2x64xf32>
    %c0_i32 = arith.constant 0 : i32
    %c0_6 = arith.constant 0 : index
    %c0_7 = arith.constant 0 : index
    %11 = vector.load %arg3[%c0_6, %c0_7] : memref<2x16xf32, #tpu.memory_space<vmem>>, vector<2x16xf32>
    %c0_8 = arith.constant 0 : index
    %c0_9 = arith.constant 0 : index
    %12 = vector.load %arg4[%c0_8, %c0_9] : memref<2x16xf32, #tpu.memory_space<vmem>>, vector<2x16xf32>
    %13 = arith.truncf %11 : vector<2x16xf32> to vector<2x16xbf16>
    %c0_10 = arith.constant 0 : index
    %c0_11 = arith.constant 0 : index
    %14 = vector.load %arg1[%c0_10, %c0_11] : memref<16x64xbf16, #tpu.memory_space<vmem>>, vector<16x64xbf16>
    %cst_12 = arith.constant dense<0.000000e+00> : vector<2x64xf32>
    %15 = tpu.matmul %13, %14, %cst_12 {dimension_numbers = #tpu.dot_dimension_numbers<[1], [0], [0], [1], [0, 0, 1, 1], [], []>} : vector<2x16xbf16>, vector<16x64xbf16>, vector<2x64xf32> -> vector<2x64xf32>
    %16 = arith.addf %10, %15 : vector<2x64xf32>
    %17 = math.tanh %16 : vector<2x64xf32>
    %18 = arith.negf %16 : vector<2x64xf32>
    %19 = math.exp %18 : vector<2x64xf32>
    %cst_13 = arith.constant 1.000000e+00 : f32
    %20 = vector.broadcast %cst_13 : f32 to vector<2x64xf32>
    %21 = arith.addf %20, %19 : vector<2x64xf32>
    %22 = arith.divf %20, %21 : vector<2x64xf32>
    %23 = arith.select %9, %17, %22 : vector<2x64xi1>, vector<2x64xf32>
    %24 = vector.extract_strided_slice %23 {offsets = [0, 0], sizes = [2, 16], strides = [1, 1]} : vector<2x64xf32> to vector<2x16xf32>
    %25 = vector.extract_strided_slice %23 {offsets = [0, 16], sizes = [2, 16], strides = [1, 1]} : vector<2x64xf32> to vector<2x16xf32>
    %26 = vector.extract_strided_slice %23 {offsets = [0, 32], sizes = [2, 16], strides = [1, 1]} : vector<2x64xf32> to vector<2x16xf32>
    %27 = vector.extract_strided_slice %23 {offsets = [0, 48], sizes = [2, 16], strides = [1, 1]} : vector<2x64xf32> to vector<2x16xf32>
    %28 = arith.mulf %25, %12 : vector<2x16xf32>
    %29 = arith.mulf %24, %26 : vector<2x16xf32>
    %30 = arith.addf %28, %29 : vector<2x16xf32>
    %31 = math.tanh %30 : vector<2x16xf32>
    %32 = arith.mulf %27, %31 : vector<2x16xf32>
    %c0_14 = arith.constant 0 : index
    %c0_15 = arith.constant 0 : index
    %33 = vector.load %arg3[%c0_14, %c0_15] : memref<2x16xf32, #tpu.memory_space<vmem>>, vector<2x16xf32>
    tpu.vector_store %arg3[%c0_14, %c0_15], %32 {strides = array<i32>} : memref<2x16xf32, #tpu.memory_space<vmem>>, vector<2x16xf32>,
    %c0_16 = arith.constant 0 : index
    %c0_17 = arith.constant 0 : index
    %34 = vector.load %arg4[%c0_16, %c0_17] : memref<2x16xf32, #tpu.memory_space<vmem>>, vector<2x16xf32>
    tpu.vector_store %arg4[%c0_16, %c0_17], %30 {strides = array<i32>} : memref<2x16xf32, #tpu.memory_space<vmem>>, vector<2x16xf32>,
    %35 = arith.index_cast %c0_i32 : i32 to index
    %c0_18 = arith.constant 0 : index
    %c0_19 = arith.constant 0 : index
    %36 = vector.load %arg2[%35, %c0_18, %c0_19] : memref<8x2x16xf32, #tpu.memory_space<vmem>>, vector<1x2x16xf32>
    %37 = vector.shape_cast %36 : vector<1x2x16xf32> to vector<2x16xf32>
    %38 = vector.shape_cast %32 : vector<2x16xf32> to vector<1x2x16xf32>
    tpu.vector_store %arg2[%35, %c0_18, %c0_19], %38 {strides = array<i32>} : memref<8x2x16xf32, #tpu.memory_space<vmem>>, vector<1x2x16xf32>,
    %c1_i32 = arith.constant 1 : i32
    %c0_20 = arith.constant 0 : index
    %c0_21 = arith.constant 0 : index
    %39 = vector.load %arg3[%c0_20, %c0_21] : memref<2x16xf32, #tpu.memory_space<vmem>>, vector<2x16xf32>
    %c0_22 = arith.constant 0 : index
    %c0_23 = arith.constant 0 : index
    %40 = vector.load %arg4[%c0_22, %c0_23] : memref<2x16xf32, #tpu.memory_space<vmem>>, vector<2x16xf32>
    %41 = arith.truncf %39 : vector<2x16xf32> to vector<2x16xbf16>
    %c0_24 = arith.constant 0 : index
    %c0_25 = arith.constant 0 : index
    %42 = vector.load %arg1[%c0_24, %c0_25] : memref<16x64xbf16, #tpu.memory_space<vmem>>, vector<16x64xbf16>
    %cst_26 = arith.constant dense<0.000000e+00> : vector<2x64xf32>
    %43 = tpu.matmul %41, %42, %cst_26 {dimension_numbers = #tpu.dot_dimension_numbers<[1], [0], [0], [1], [0, 0, 1, 1], [], []>} : vector<2x16xbf16>, vector<16x64xbf16>, vector<2x64xf32> -> vector<2x64xf32>
    %44 = arith.addf %10, %43 : vector<2x64xf32>
    %45 = math.tanh %44 : vector<2x64xf32>
    %46 = arith.negf %44 : vector<2x64xf32>
    %47 = math.exp %46 : vector<2x64xf32>
    %cst_27 = arith.constant 1.000000e+00 : f32
    %48 = vector.broadcast %cst_27 : f32 to vector<2x64xf32>
    %49 = arith.addf %48, %47 : vector<2x64xf32>
    %50 = arith.divf %48, %49 : vector<2x64xf32>
    %51 = arith.select %9, %45, %50 : vector<2x64xi1>, vector<2x64xf32>
    %52 = vector.extract_strided_slice %51 {offsets = [0, 0], sizes = [2, 16], strides = [1, 1]} : vector<2x64xf32> to vector<2x16xf32>
    %53 = vector.extract_strided_slice %51 {offsets = [0, 16], sizes = [2, 16], strides = [1, 1]} : vector<2x64xf32> to vector<2x16xf32>
    %54 = vector.extract_strided_slice %51 {offsets = [0, 32], sizes = [2, 16], strides = [1, 1]} : vector<2x64xf32> to vector<2x16xf32>
    %55 = vector.extract_strided_slice %51 {offsets = [0, 48], sizes = [2, 16], strides = [1, 1]} : vector<2x64xf32> to vector<2x16xf32>
    %56 = arith.mulf %53, %40 : vector<2x16xf32>
    %57 = arith.mulf %52, %54 : vector<2x16xf32>
    %58 = arith.addf %56, %57 : vector<2x16xf32>
    %59 = math.tanh %58 : vector<2x16xf32>
    %60 = arith.mulf %55, %59 : vector<2x16xf32>
    %c0_28 = arith.constant 0 : index
    %c0_29 = arith.constant 0 : index
    %61 = vector.load %arg3[%c0_28, %c0_29] : memref<2x16xf32, #tpu.memory_space<vmem>>, vector<2x16xf32>
    tpu.vector_store %arg3[%c0_28, %c0_29], %60 {strides = array<i32>} : memref<2x16xf32, #tpu.memory_space<vmem>>, vector<2x16xf32>,
    %c0_30 = arith.constant 0 : index
    %c0_31 = arith.constant 0 : index
    %62 = vector.load %arg4[%c0_30, %c0_31] : memref<2x16xf32, #tpu.memory_space<vmem>>, vector<2x16xf32>
    tpu.vector_store %arg4[%c0_30, %c0_31], %58 {strides = array<i32>} : memref<2x16xf32, #tpu.memory_space<vmem>>, vector<2x16xf32>,
    %63 = arith.index_cast %c1_i32 : i32 to index
    %c0_32 = arith.constant 0 : index
    %c0_33 = arith.constant 0 : index
    %64 = vector.load %arg2[%63, %c0_32, %c0_33] : memref<8x2x16xf32, #tpu.memory_space<vmem>>, vector<1x2x16xf32>
    %65 = vector.shape_cast %64 : vector<1x2x16xf32> to vector<2x16xf32>
    %66 = vector.shape_cast %60 : vector<2x16xf32> to vector<1x2x16xf32>
    tpu.vector_store %arg2[%63, %c0_32, %c0_33], %66 {strides = array<i32>} : memref<8x2x16xf32, #tpu.memory_space<vmem>>, vector<1x2x16xf32>,
    %c2_i32 = arith.constant 2 : i32
    %c0_34 = arith.constant 0 : index
    %c0_35 = arith.constant 0 : index
    %67 = vector.load %arg3[%c0_34, %c0_35] : memref<2x16xf32, #tpu.memory_space<vmem>>, vector<2x16xf32>
    %c0_36 = arith.constant 0 : index
    %c0_37 = arith.constant 0 : index
    %68 = vector.load %arg4[%c0_36, %c0_37] : memref<2x16xf32, #tpu.memory_space<vmem>>, vector<2x16xf32>
    %69 = arith.truncf %67 : vector<2x16xf32> to vector<2x16xbf16>
    %c0_38 = arith.constant 0 : index
    %c0_39 = arith.constant 0 : index
    %70 = vector.load %arg1[%c0_38, %c0_39] : memref<16x64xbf16, #tpu.memory_space<vmem>>, vector<16x64xbf16>
    %cst_40 = arith.constant dense<0.000000e+00> : vector<2x64xf32>
    %71 = tpu.matmul %69, %70, %cst_40 {dimension_numbers = #tpu.dot_dimension_numbers<[1], [0], [0], [1], [0, 0, 1, 1], [], []>} : vector<2x16xbf16>, vector<16x64xbf16>, vector<2x64xf32> -> vector<2x64xf32>
    %72 = arith.addf %10, %71 : vector<2x64xf32>
    %73 = math.tanh %72 : vector<2x64xf32>
    %74 = arith.negf %72 : vector<2x64xf32>
    %75 = math.exp %74 : vector<2x64xf32>
    %cst_41 = arith.constant 1.000000e+00 : f32
    %76 = vector.broadcast %cst_41 : f32 to vector<2x64xf32>
    %77 = arith.addf %76, %75 : vector<2x64xf32>
    %78 = arith.divf %76, %77 : vector<2x64xf32>
    %79 = arith.select %9, %73, %78 : vector<2x64xi1>, vector<2x64xf32>
    %80 = vector.extract_strided_slice %79 {offsets = [0, 0], sizes = [2, 16], strides = [1, 1]} : vector<2x64xf32> to vector<2x16xf32>
    %81 = vector.extract_strided_slice %79 {offsets = [0, 16], sizes = [2, 16], strides = [1, 1]} : vector<2x64xf32> to vector<2x16xf32>
    %82 = vector.extract_strided_slice %79 {offsets = [0, 32], sizes = [2, 16], strides = [1, 1]} : vector<2x64xf32> to vector<2x16xf32>
    %83 = vector.extract_strided_slice %79 {offsets = [0, 48], sizes = [2, 16], strides = [1, 1]} : vector<2x64xf32> to vector<2x16xf32>
    %84 = arith.mulf %81, %68 : vector<2x16xf32>
    %85 = arith.mulf %80, %82 : vector<2x16xf32>
    %86 = arith.addf %84, %85 : vector<2x16xf32>
    %87 = math.tanh %86 : vector<2x16xf32>
    %88 = arith.mulf %83, %87 : vector<2x16xf32>
    %c0_42 = arith.constant 0 : index
    %c0_43 = arith.constant 0 : index
    %89 = vector.load %arg3[%c0_42, %c0_43] : memref<2x16xf32, #tpu.memory_space<vmem>>, vector<2x16xf32>
    tpu.vector_store %arg3[%c0_42, %c0_43], %88 {strides = array<i32>} : memref<2x16xf32, #tpu.memory_space<vmem>>, vector<2x16xf32>,
    %c0_44 = arith.constant 0 : index
    %c0_45 = arith.constant 0 : index
    %90 = vector.load %arg4[%c0_44, %c0_45] : memref<2x16xf32, #tpu.memory_space<vmem>>, vector<2x16xf32>
    tpu.vector_store %arg4[%c0_44, %c0_45], %86 {strides = array<i32>} : memref<2x16xf32, #tpu.memory_space<vmem>>, vector<2x16xf32>,
    %91 = arith.index_cast %c2_i32 : i32 to index
    %c0_46 = arith.constant 0 : index
    %c0_47 = arith.constant 0 : index
    %92 = vector.load %arg2[%91, %c0_46, %c0_47] : memref<8x2x16xf32, #tpu.memory_space<vmem>>, vector<1x2x16xf32>
    %93 = vector.shape_cast %92 : vector<1x2x16xf32> to vector<2x16xf32>
    %94 = vector.shape_cast %88 : vector<2x16xf32> to vector<1x2x16xf32>
    tpu.vector_store %arg2[%91, %c0_46, %c0_47], %94 {strides = array<i32>} : memref<8x2x16xf32, #tpu.memory_space<vmem>>, vector<1x2x16xf32>,
    %c3_i32 = arith.constant 3 : i32
    %c0_48 = arith.constant 0 : index
    %c0_49 = arith.constant 0 : index
    %95 = vector.load %arg3[%c0_48, %c0_49] : memref<2x16xf32, #tpu.memory_space<vmem>>, vector<2x16xf32>
    %c0_50 = arith.constant 0 : index
    %c0_51 = arith.constant 0 : index
    %96 = vector.load %arg4[%c0_50, %c0_51] : memref<2x16xf32, #tpu.memory_space<vmem>>, vector<2x16xf32>
    %97 = arith.truncf %95 : vector<2x16xf32> to vector<2x16xbf16>
    %c0_52 = arith.constant 0 : index
    %c0_53 = arith.constant 0 : index
    %98 = vector.load %arg1[%c0_52, %c0_53] : memref<16x64xbf16, #tpu.memory_space<vmem>>, vector<16x64xbf16>
    %cst_54 = arith.constant dense<0.000000e+00> : vector<2x64xf32>
    %99 = tpu.matmul %97, %98, %cst_54 {dimension_numbers = #tpu.dot_dimension_numbers<[1], [0], [0], [1], [0, 0, 1, 1], [], []>} : vector<2x16xbf16>, vector<16x64xbf16>, vector<2x64xf32> -> vector<2x64xf32>
    %100 = arith.addf %10, %99 : vector<2x64xf32>
    %101 = math.tanh %100 : vector<2x64xf32>
    %102 = arith.negf %100 : vector<2x64xf32>
    %103 = math.exp %102 : vector<2x64xf32>
    %cst_55 = arith.constant 1.000000e+00 : f32
    %104 = vector.broadcast %cst_55 : f32 to vector<2x64xf32>
    %105 = arith.addf %104, %103 : vector<2x64xf32>
    %106 = arith.divf %104, %105 : vector<2x64xf32>
    %107 = arith.select %9, %101, %106 : vector<2x64xi1>, vector<2x64xf32>
    %108 = vector.extract_strided_slice %107 {offsets = [0, 0], sizes = [2, 16], strides = [1, 1]} : vector<2x64xf32> to vector<2x16xf32>
    %109 = vector.extract_strided_slice %107 {offsets = [0, 16], sizes = [2, 16], strides = [1, 1]} : vector<2x64xf32> to vector<2x16xf32>
    %110 = vector.extract_strided_slice %107 {offsets = [0, 32], sizes = [2, 16], strides = [1, 1]} : vector<2x64xf32> to vector<2x16xf32>
    %111 = vector.extract_strided_slice %107 {offsets = [0, 48], sizes = [2, 16], strides = [1, 1]} : vector<2x64xf32> to vector<2x16xf32>
    %112 = arith.mulf %109, %96 : vector<2x16xf32>
    %113 = arith.mulf %108, %110 : vector<2x16xf32>
    %114 = arith.addf %112, %113 : vector<2x16xf32>
    %115 = math.tanh %114 : vector<2x16xf32>
    %116 = arith.mulf %111, %115 : vector<2x16xf32>
    %c0_56 = arith.constant 0 : index
    %c0_57 = arith.constant 0 : index
    %117 = vector.load %arg3[%c0_56, %c0_57] : memref<2x16xf32, #tpu.memory_space<vmem>>, vector<2x16xf32>
    tpu.vector_store %arg3[%c0_56, %c0_57], %116 {strides = array<i32>} : memref<2x16xf32, #tpu.memory_space<vmem>>, vector<2x16xf32>,
    %c0_58 = arith.constant 0 : index
    %c0_59 = arith.constant 0 : index
    %118 = vector.load %arg4[%c0_58, %c0_59] : memref<2x16xf32, #tpu.memory_space<vmem>>, vector<2x16xf32>
    tpu.vector_store %arg4[%c0_58, %c0_59], %114 {strides = array<i32>} : memref<2x16xf32, #tpu.memory_space<vmem>>, vector<2x16xf32>,
    %119 = arith.index_cast %c3_i32 : i32 to index
    %c0_60 = arith.constant 0 : index
    %c0_61 = arith.constant 0 : index
    %120 = vector.load %arg2[%119, %c0_60, %c0_61] : memref<8x2x16xf32, #tpu.memory_space<vmem>>, vector<1x2x16xf32>
    %121 = vector.shape_cast %120 : vector<1x2x16xf32> to vector<2x16xf32>
    %122 = vector.shape_cast %116 : vector<2x16xf32> to vector<1x2x16xf32>
    tpu.vector_store %arg2[%119, %c0_60, %c0_61], %122 {strides = array<i32>} : memref<8x2x16xf32, #tpu.memory_space<vmem>>, vector<1x2x16xf32>,
    %c4_i32 = arith.constant 4 : i32
    %c0_62 = arith.constant 0 : index
    %c0_63 = arith.constant 0 : index
    %123 = vector.load %arg3[%c0_62, %c0_63] : memref<2x16xf32, #tpu.memory_space<vmem>>, vector<2x16xf32>
    %c0_64 = arith.constant 0 : index
    %c0_65 = arith.constant 0 : index
    %124 = vector.load %arg4[%c0_64, %c0_65] : memref<2x16xf32, #tpu.memory_space<vmem>>, vector<2x16xf32>
    %125 = arith.truncf %123 : vector<2x16xf32> to vector<2x16xbf16>
    %c0_66 = arith.constant 0 : index
    %c0_67 = arith.constant 0 : index
    %126 = vector.load %arg1[%c0_66, %c0_67] : memref<16x64xbf16, #tpu.memory_space<vmem>>, vector<16x64xbf16>
    %cst_68 = arith.constant dense<0.000000e+00> : vector<2x64xf32>
    %127 = tpu.matmul %125, %126, %cst_68 {dimension_numbers = #tpu.dot_dimension_numbers<[1], [0], [0], [1], [0, 0, 1, 1], [], []>} : vector<2x16xbf16>, vector<16x64xbf16>, vector<2x64xf32> -> vector<2x64xf32>
    %128 = arith.addf %10, %127 : vector<2x64xf32>
    %129 = math.tanh %128 : vector<2x64xf32>
    %130 = arith.negf %128 : vector<2x64xf32>
    %131 = math.exp %130 : vector<2x64xf32>
    %cst_69 = arith.constant 1.000000e+00 : f32
    %132 = vector.broadcast %cst_69 : f32 to vector<2x64xf32>
    %133 = arith.addf %132, %131 : vector<2x64xf32>
    %134 = arith.divf %132, %133 : vector<2x64xf32>
    %135 = arith.select %9, %129, %134 : vector<2x64xi1>, vector<2x64xf32>
    %136 = vector.extract_strided_slice %135 {offsets = [0, 0], sizes = [2, 16], strides = [1, 1]} : vector<2x64xf32> to vector<2x16xf32>
    %137 = vector.extract_strided_slice %135 {offsets = [0, 16], sizes = [2, 16], strides = [1, 1]} : vector<2x64xf32> to vector<2x16xf32>
    %138 = vector.extract_strided_slice %135 {offsets = [0, 32], sizes = [2, 16], strides = [1, 1]} : vector<2x64xf32> to vector<2x16xf32>
    %139 = vector.extract_strided_slice %135 {offsets = [0, 48], sizes = [2, 16], strides = [1, 1]} : vector<2x64xf32> to vector<2x16xf32>
    %140 = arith.mulf %137, %124 : vector<2x16xf32>
    %141 = arith.mulf %136, %138 : vector<2x16xf32>
    %142 = arith.addf %140, %141 : vector<2x16xf32>
    %143 = math.tanh %142 : vector<2x16xf32>
    %144 = arith.mulf %139, %143 : vector<2x16xf32>
    %c0_70 = arith.constant 0 : index
    %c0_71 = arith.constant 0 : index
    %145 = vector.load %arg3[%c0_70, %c0_71] : memref<2x16xf32, #tpu.memory_space<vmem>>, vector<2x16xf32>
    tpu.vector_store %arg3[%c0_70, %c0_71], %144 {strides = array<i32>} : memref<2x16xf32, #tpu.memory_space<vmem>>, vector<2x16xf32>,
    %c0_72 = arith.constant 0 : index
    %c0_73 = arith.constant 0 : index
    %146 = vector.load %arg4[%c0_72, %c0_73] : memref<2x16xf32, #tpu.memory_space<vmem>>, vector<2x16xf32>
    tpu.vector_store %arg4[%c0_72, %c0_73], %142 {strides = array<i32>} : memref<2x16xf32, #tpu.memory_space<vmem>>, vector<2x16xf32>,
    %147 = arith.index_cast %c4_i32 : i32 to index
    %c0_74 = arith.constant 0 : index
    %c0_75 = arith.constant 0 : index
    %148 = vector.load %arg2[%147, %c0_74, %c0_75] : memref<8x2x16xf32, #tpu.memory_space<vmem>>, vector<1x2x16xf32>
    %149 = vector.shape_cast %148 : vector<1x2x16xf32> to vector<2x16xf32>
    %150 = vector.shape_cast %144 : vector<2x16xf32> to vector<1x2x16xf32>
    tpu.vector_store %arg2[%147, %c0_74, %c0_75], %150 {strides = array<i32>} : memref<8x2x16xf32, #tpu.memory_space<vmem>>, vector<1x2x16xf32>,
    %c5_i32 = arith.constant 5 : i32
    %c0_76 = arith.constant 0 : index
    %c0_77 = arith.constant 0 : index
    %151 = vector.load %arg3[%c0_76, %c0_77] : memref<2x16xf32, #tpu.memory_space<vmem>>, vector<2x16xf32>
    %c0_78 = arith.constant 0 : index
    %c0_79 = arith.constant 0 : index
    %152 = vector.load %arg4[%c0_78, %c0_79] : memref<2x16xf32, #tpu.memory_space<vmem>>, vector<2x16xf32>
    %153 = arith.truncf %151 : vector<2x16xf32> to vector<2x16xbf16>
    %c0_80 = arith.constant 0 : index
    %c0_81 = arith.constant 0 : index
    %154 = vector.load %arg1[%c0_80, %c0_81] : memref<16x64xbf16, #tpu.memory_space<vmem>>, vector<16x64xbf16>
    %cst_82 = arith.constant dense<0.000000e+00> : vector<2x64xf32>
    %155 = tpu.matmul %153, %154, %cst_82 {dimension_numbers = #tpu.dot_dimension_numbers<[1], [0], [0], [1], [0, 0, 1, 1], [], []>} : vector<2x16xbf16>, vector<16x64xbf16>, vector<2x64xf32> -> vector<2x64xf32>
    %156 = arith.addf %10, %155 : vector<2x64xf32>
    %157 = math.tanh %156 : vector<2x64xf32>
    %158 = arith.negf %156 : vector<2x64xf32>
    %159 = math.exp %158 : vector<2x64xf32>
    %cst_83 = arith.constant 1.000000e+00 : f32
    %160 = vector.broadcast %cst_83 : f32 to vector<2x64xf32>
    %161 = arith.addf %160, %159 : vector<2x64xf32>
    %162 = arith.divf %160, %161 : vector<2x64xf32>
    %163 = arith.select %9, %157, %162 : vector<2x64xi1>, vector<2x64xf32>
    %164 = vector.extract_strided_slice %163 {offsets = [0, 0], sizes = [2, 16], strides = [1, 1]} : vector<2x64xf32> to vector<2x16xf32>
    %165 = vector.extract_strided_slice %163 {offsets = [0, 16], sizes = [2, 16], strides = [1, 1]} : vector<2x64xf32> to vector<2x16xf32>
    %166 = vector.extract_strided_slice %163 {offsets = [0, 32], sizes = [2, 16], strides = [1, 1]} : vector<2x64xf32> to vector<2x16xf32>
    %167 = vector.extract_strided_slice %163 {offsets = [0, 48], sizes = [2, 16], strides = [1, 1]} : vector<2x64xf32> to vector<2x16xf32>
    %168 = arith.mulf %165, %152 : vector<2x16xf32>
    %169 = arith.mulf %164, %166 : vector<2x16xf32>
    %170 = arith.addf %168, %169 : vector<2x16xf32>
    %171 = math.tanh %170 : vector<2x16xf32>
    %172 = arith.mulf %167, %171 : vector<2x16xf32>
    %c0_84 = arith.constant 0 : index
    %c0_85 = arith.constant 0 : index
    %173 = vector.load %arg3[%c0_84, %c0_85] : memref<2x16xf32, #tpu.memory_space<vmem>>, vector<2x16xf32>
    tpu.vector_store %arg3[%c0_84, %c0_85], %172 {strides = array<i32>} : memref<2x16xf32, #tpu.memory_space<vmem>>, vector<2x16xf32>,
    %c0_86 = arith.constant 0 : index
    %c0_87 = arith.constant 0 : index
    %174 = vector.load %arg4[%c0_86, %c0_87] : memref<2x16xf32, #tpu.memory_space<vmem>>, vector<2x16xf32>
    tpu.vector_store %arg4[%c0_86, %c0_87], %170 {strides = array<i32>} : memref<2x16xf32, #tpu.memory_space<vmem>>, vector<2x16xf32>,
    %175 = arith.index_cast %c5_i32 : i32 to index
    %c0_88 = arith.constant 0 : index
    %c0_89 = arith.constant 0 : index
    %176 = vector.load %arg2[%175, %c0_88, %c0_89] : memref<8x2x16xf32, #tpu.memory_space<vmem>>, vector<1x2x16xf32>
    %177 = vector.shape_cast %176 : vector<1x2x16xf32> to vector<2x16xf32>
    %178 = vector.shape_cast %172 : vector<2x16xf32> to vector<1x2x16xf32>
    tpu.vector_store %arg2[%175, %c0_88, %c0_89], %178 {strides = array<i32>} : memref<8x2x16xf32, #tpu.memory_space<vmem>>, vector<1x2x16xf32>,
    %c6_i32 = arith.constant 6 : i32
    %c0_90 = arith.constant 0 : index
    %c0_91 = arith.constant 0 : index
    %179 = vector.load %arg3[%c0_90, %c0_91] : memref<2x16xf32, #tpu.memory_space<vmem>>, vector<2x16xf32>
    %c0_92 = arith.constant 0 : index
    %c0_93 = arith.constant 0 : index
    %180 = vector.load %arg4[%c0_92, %c0_93] : memref<2x16xf32, #tpu.memory_space<vmem>>, vector<2x16xf32>
    %181 = arith.truncf %179 : vector<2x16xf32> to vector<2x16xbf16>
    %c0_94 = arith.constant 0 : index
    %c0_95 = arith.constant 0 : index
    %182 = vector.load %arg1[%c0_94, %c0_95] : memref<16x64xbf16, #tpu.memory_space<vmem>>, vector<16x64xbf16>
    %cst_96 = arith.constant dense<0.000000e+00> : vector<2x64xf32>
    %183 = tpu.matmul %181, %182, %cst_96 {dimension_numbers = #tpu.dot_dimension_numbers<[1], [0], [0], [1], [0, 0, 1, 1], [], []>} : vector<2x16xbf16>, vector<16x64xbf16>, vector<2x64xf32> -> vector<2x64xf32>
    %184 = arith.addf %10, %183 : vector<2x64xf32>
    %185 = math.tanh %184 : vector<2x64xf32>
    %186 = arith.negf %184 : vector<2x64xf32>
    %187 = math.exp %186 : vector<2x64xf32>
    %cst_97 = arith.constant 1.000000e+00 : f32
    %188 = vector.broadcast %cst_97 : f32 to vector<2x64xf32>
    %189 = arith.addf %188, %187 : vector<2x64xf32>
    %190 = arith.divf %188, %189 : vector<2x64xf32>
    %191 = arith.select %9, %185, %190 : vector<2x64xi1>, vector<2x64xf32>
    %192 = vector.extract_strided_slice %191 {offsets = [0, 0], sizes = [2, 16], strides = [1, 1]} : vector<2x64xf32> to vector<2x16xf32>
    %193 = vector.extract_strided_slice %191 {offsets = [0, 16], sizes = [2, 16], strides = [1, 1]} : vector<2x64xf32> to vector<2x16xf32>
    %194 = vector.extract_strided_slice %191 {offsets = [0, 32], sizes = [2, 16], strides = [1, 1]} : vector<2x64xf32> to vector<2x16xf32>
    %195 = vector.extract_strided_slice %191 {offsets = [0, 48], sizes = [2, 16], strides = [1, 1]} : vector<2x64xf32> to vector<2x16xf32>
    %196 = arith.mulf %193, %180 : vector<2x16xf32>
    %197 = arith.mulf %192, %194 : vector<2x16xf32>
    %198 = arith.addf %196, %197 : vector<2x16xf32>
    %199 = math.tanh %198 : vector<2x16xf32>
    %200 = arith.mulf %195, %199 : vector<2x16xf32>
    %c0_98 = arith.constant 0 : index
    %c0_99 = arith.constant 0 : index
    %201 = vector.load %arg3[%c0_98, %c0_99] : memref<2x16xf32, #tpu.memory_space<vmem>>, vector<2x16xf32>
    tpu.vector_store %arg3[%c0_98, %c0_99], %200 {strides = array<i32>} : memref<2x16xf32, #tpu.memory_space<vmem>>, vector<2x16xf32>,
    %c0_100 = arith.constant 0 : index
    %c0_101 = arith.constant 0 : index
    %202 = vector.load %arg4[%c0_100, %c0_101] : memref<2x16xf32, #tpu.memory_space<vmem>>, vector<2x16xf32>
    tpu.vector_store %arg4[%c0_100, %c0_101], %198 {strides = array<i32>} : memref<2x16xf32, #tpu.memory_space<vmem>>, vector<2x16xf32>,
    %203 = arith.index_cast %c6_i32 : i32 to index
    %c0_102 = arith.constant 0 : index
    %c0_103 = arith.constant 0 : index
    %204 = vector.load %arg2[%203, %c0_102, %c0_103] : memref<8x2x16xf32, #tpu.memory_space<vmem>>, vector<1x2x16xf32>
    %205 = vector.shape_cast %204 : vector<1x2x16xf32> to vector<2x16xf32>
    %206 = vector.shape_cast %200 : vector<2x16xf32> to vector<1x2x16xf32>
    tpu.vector_store %arg2[%203, %c0_102, %c0_103], %206 {strides = array<i32>} : memref<8x2x16xf32, #tpu.memory_space<vmem>>, vector<1x2x16xf32>,
    %c7_i32 = arith.constant 7 : i32
    %c0_104 = arith.constant 0 : index
    %c0_105 = arith.constant 0 : index
    %207 = vector.load %arg3[%c0_104, %c0_105] : memref<2x16xf32, #tpu.memory_space<vmem>>, vector<2x16xf32>
    %c0_106 = arith.constant 0 : index
    %c0_107 = arith.constant 0 : index
    %208 = vector.load %arg4[%c0_106, %c0_107] : memref<2x16xf32, #tpu.memory_space<vmem>>, vector<2x16xf32>
    %209 = arith.truncf %207 : vector<2x16xf32> to vector<2x16xbf16>
    %c0_108 = arith.constant 0 : index
    %c0_109 = arith.constant 0 : index
    %210 = vector.load %arg1[%c0_108, %c0_109] : memref<16x64xbf16, #tpu.memory_space<vmem>>, vector<16x64xbf16>
    %cst_110 = arith.constant dense<0.000000e+00> : vector<2x64xf32>
    %211 = tpu.matmul %209, %210, %cst_110 {dimension_numbers = #tpu.dot_dimension_numbers<[1], [0], [0], [1], [0, 0, 1, 1], [], []>} : vector<2x16xbf16>, vector<16x64xbf16>, vector<2x64xf32> -> vector<2x64xf32>
    %212 = arith.addf %10, %211 : vector<2x64xf32>
    %213 = math.tanh %212 : vector<2x64xf32>
    %214 = arith.negf %212 : vector<2x64xf32>
    %215 = math.exp %214 : vector<2x64xf32>
    %cst_111 = arith.constant 1.000000e+00 : f32
    %216 = vector.broadcast %cst_111 : f32 to vector<2x64xf32>
    %217 = arith.addf %216, %215 : vector<2x64xf32>
    %218 = arith.divf %216, %217 : vector<2x64xf32>
    %219 = arith.select %9, %213, %218 : vector<2x64xi1>, vector<2x64xf32>
    %220 = vector.extract_strided_slice %219 {offsets = [0, 0], sizes = [2, 16], strides = [1, 1]} : vector<2x64xf32> to vector<2x16xf32>
    %221 = vector.extract_strided_slice %219 {offsets = [0, 16], sizes = [2, 16], strides = [1, 1]} : vector<2x64xf32> to vector<2x16xf32>
    %222 = vector.extract_strided_slice %219 {offsets = [0, 32], sizes = [2, 16], strides = [1, 1]} : vector<2x64xf32> to vector<2x16xf32>
    %223 = vector.extract_strided_slice %219 {offsets = [0, 48], sizes = [2, 16], strides = [1, 1]} : vector<2x64xf32> to vector<2x16xf32>
    %224 = arith.mulf %221, %208 : vector<2x16xf32>
    %225 = arith.mulf %220, %222 : vector<2x16xf32>
    %226 = arith.addf %224, %225 : vector<2x16xf32>
    %227 = math.tanh %226 : vector<2x16xf32>
    %228 = arith.mulf %223, %227 : vector<2x16xf32>
    %c0_112 = arith.constant 0 : index
    %c0_113 = arith.constant 0 : index
    %229 = vector.load %arg3[%c0_112, %c0_113] : memref<2x16xf32, #tpu.memory_space<vmem>>, vector<2x16xf32>
    tpu.vector_store %arg3[%c0_112, %c0_113], %228 {strides = array<i32>} : memref<2x16xf32, #tpu.memory_space<vmem>>, vector<2x16xf32>,
    %c0_114 = arith.constant 0 : index
    %c0_115 = arith.constant 0 : index
    %230 = vector.load %arg4[%c0_114, %c0_115] : memref<2x16xf32, #tpu.memory_space<vmem>>, vector<2x16xf32>
    tpu.vector_store %arg4[%c0_114, %c0_115], %226 {strides = array<i32>} : memref<2x16xf32, #tpu.memory_space<vmem>>, vector<2x16xf32>,
    %231 = arith.index_cast %c7_i32 : i32 to index
    %c0_116 = arith.constant 0 : index
    %c0_117 = arith.constant 0 : index
    %232 = vector.load %arg2[%231, %c0_116, %c0_117] : memref<8x2x16xf32, #tpu.memory_space<vmem>>, vector<1x2x16xf32>
    %233 = vector.shape_cast %232 : vector<1x2x16xf32> to vector<2x16xf32>
    %234 = vector.shape_cast %228 : vector<2x16xf32> to vector<1x2x16xf32>
    tpu.vector_store %arg2[%231, %c0_116, %c0_117], %234 {strides = array<i32>} : memref<8x2x16xf32, #tpu.memory_space<vmem>>, vector<1x2x16xf32>,
    %c8_i32 = arith.constant 8 : i32
    return
  }
}

</mosaic_0001>

<llo_original>
// kernel: lstm_transformer_ae.5
$region0: #{lstm_transformer_ae.5}
  #allocation0 [shape = 'u32[]', space=smem, size = 0x4, offset = 0x4, fixed_abs, tag = 'smem constant byte address 0x4 - core index']
  #allocation1 [shape = 'u32[144,128]{1,0:T(1,128)}', space=vmem, size = 0x12000, scoped, tag = 'internal scratch']
  #allocation2 [shape = 'f32[2,16]{1,0:T(2,128)}', space=vmem, size = 0x400, scoped, tag = 'scratch operand']
  #allocation3 [shape = 'f32[2,16]{1,0:T(2,128)}', space=vmem, size = 0x400, scoped, tag = 'scratch operand']
  %s0 = inlined_call_operand.vmem [shape: f32[2,64], index: 0, kind: input, shape index: {}]
  %s1 = inlined_call_operand.vmem [shape: bf16[16,64], index: 1, kind: input, shape index: {}]
  %s2 = inlined_call_operand.vmem [shape: f32[8,2,16], index: 2, kind: output, shape index: {}]
  %s3 = sld [smem:[#allocation0]]
  $region18: #{lstm_transformer_ae.5} parent=0
    _
  %s5 = ssub.s32 1, %s3
  %s6 = scalar_select 0, %s5, %s3
  // Predicated region
  $region2: #{lstm_transformer_ae.5} parent=0 // pred_check
    _
  $region3: #{lstm_transformer_ae.5} parent=0 // pred_check_branch
    %8 = sbr.rel (0) target = $region5
  $region4: #{lstm_transformer_ae.5} parent=0 // pred_region
    _
  $region5: #{lstm_transformer_ae.5} parent=0 // pred_fallthru
    _
  // Predicated region
  $region6: #{lstm_transformer_ae.5} parent=0 // pred_check
    _
  $region7: #{lstm_transformer_ae.5} parent=0 // pred_check_branch
    %10 = sbr.rel (0) target = $region9
  $region8: #{lstm_transformer_ae.5} parent=0 // pred_region
    _
  $region9: #{lstm_transformer_ae.5} parent=0 // pred_fallthru
    _
  %vm12 = vcmask 123904
  %13 = vst.msk [vmem:[#allocation2] sm:$0x3] %vm12, 0.0
  %14 = vst.msk [vmem:[#allocation3] sm:$0x3] %vm12, 0.0
  %v15 = vlaneseq
  %v16 = vand.u32 %v15, 127
  %vm17 = vcmp.ge.s32.totalorder %v16, 32
  %vm18 = vcmp.lt.s32.totalorder %v16, 48
  %vm19 = vmand %vm17, %vm18
  %v20 = vld [vmem:[%s0] sm:$0x3]
  %v21 = vld [vmem:[#allocation2] sm:$0x3]
  %v22 = vld [vmem:[#allocation3] sm:$0x3]
  %v23 = vpack.c.bf16 %v21, %v21
  %v24 = vld [vmem:[%s1] sm:$0xf]
  %v25 = vld [vmem:[%s1 + $0x4] sm:$0xf]
  %v28 = vunpack.c.l.b16 %v24
  %v29 = vunpack.c.l.b16 %v25
  %v30 = vpack.c.b16 %v29, %v28
  %vm32 = vcmask 130048
  %v34 = vsel %vm32, %v23, 0
  %36 = vmatprep.subr.bf16.mxu0 0
  %37 = vmatpush1.bf16.msra.mxu0 %v30
  %38 = vmatprep.subr.bf16.mxu0 0
  %39 = vmatpush1.bf16.msra.mxu0 0
  %40 = vmatprep.subr.bf16.mxu0 0
  %41 = vmatpush1.bf16.msra.mxu0 0
  %42 = vmatprep.subr.bf16.mxu0 0
  %43 = vmatpush1.bf16.msra.mxu0 0
  %44 = vmatprep.subr.bf16.mxu0 0
  %45 = vmatpush1.bf16.msra.mxu0 0
  %46 = vmatprep.subr.bf16.mxu0 0
  %47 = vmatpush1.bf16.msra.mxu0 0
  %48 = vmatprep.subr.bf16.mxu0 0
  %49 = vmatpush1.bf16.msra.mxu0 0
  %50 = vmatprep.subr.bf16.mxu0 0
  %51 = vmatpush1.bf16.msra.mxu0 0
  %52 = vmatprep.subr.bf16.mxu0 0
  %53 = vmatpush1.bf16.msra.mxu0 0
  %54 = vmatprep.subr.bf16.mxu0 0
  %55 = vmatpush1.bf16.msra.mxu0 0
  %56 = vmatprep.subr.bf16.mxu0 0
  %57 = vmatpush1.bf16.msra.mxu0 0
  %58 = vmatprep.subr.bf16.mxu0 0
  %59 = vmatpush1.bf16.msra.mxu0 0
  %60 = vmatprep.subr.bf16.mxu0 0
  %61 = vmatpush1.bf16.msra.mxu0 0
  %62 = vmatprep.subr.bf16.mxu0 0
  %63 = vmatpush1.bf16.msra.mxu0 0
  %64 = vmatprep.subr.bf16.mxu0 0
  %65 = vmatpush1.bf16.msra.mxu0 0
  %66 = vmatprep.subr.bf16.mxu0 0
  %67 = vmatpush1.bf16.msra.mxu0 0
  %68 = vmatprep.mubr.bf16.mxu0 0
  %69 = vmatmul.mubr.bf16.gmra.mrb[0].mxu0 %v34
  %v70 = vpop.f32.mrb[0].mxu0
  %v71 = vadd.f32 0.0, %v70
  %v72 = vpop.f32.mrb[0].mxu0
  %v73 = vpop.f32.mrb[0].mxu0
  %v74 = vpop.f32.mrb[0].mxu0
  %75 = vdwg.mxu0
  %v76 = vadd.f32 %v20, %v71
  %v77 = vtanh.pop %v76
  %v78 = vxor.u32 %v76, 2147483648
  %v79 = vmul.f32 %v78, 1.442695
  %v80 = vpow.pop %v79
  %v81 = vadd.f32 %v80, 1.0
  %v82 = vrcp.pop %v81
  %v83 = vmul.f32 1.0, %v82
  %v84 = vsel %vm19, %v77, %v83
  %86 = vrot.lane.b32.xlu0 %v22, 16
  %v87 = vpop.permute.xlu0 %86
  %v89 = vmul.f32 %v84, %v87
  %91 = vrot.lane.b32.xlu0 %v84, 96
  %v92 = vpop.permute.xlu0 %91
  %v94 = vmul.f32 %v84, %v92
  %96 = vrot.lane.b32.xlu0 %v94, 16
  %v97 = vpop.permute.xlu0 %96
  %v99 = vadd.f32 %v89, %v97
  %v100 = vtanh.pop %v99
  %102 = vrot.lane.b32.xlu0 %v100, 32
  %v103 = vpop.permute.xlu0 %102
  %v105 = vmul.f32 %v84, %v103
  %107 = vrot.lane.b32.xlu0 %v105, 80
  %v108 = vpop.permute.xlu0 %107
  %110 = vst.msk [vmem:[#allocation2] sm:$0x3] %vm12, %v108
  %112 = vrot.lane.b32.xlu0 %v99, 112
  %v113 = vpop.permute.xlu0 %112
  %115 = vst.msk [vmem:[#allocation3] sm:$0x3] %vm12, %v113
  %116 = vst.msk [vmem:[%s2] sm:$0x3] %vm12, %v108
  %v117 = vld [vmem:[#allocation2] sm:$0x3]
  %v118 = vld [vmem:[#allocation3] sm:$0x3]
  %v119 = vpack.c.bf16 %v117, %v117
  %v120 = vld [vmem:[%s1] sm:$0xf]
  %v121 = vld [vmem:[%s1 + $0x4] sm:$0xf]
  %v124 = vunpack.c.l.b16 %v120
  %v125 = vunpack.c.l.b16 %v121
  %v126 = vpack.c.b16 %v125, %v124
  %v129 = vsel %vm32, %v119, 0
  %131 = vmatprep.subr.bf16.mxu0 0
  %132 = vmatpush1.bf16.msra.mxu0 %v126
  %133 = vmatprep.subr.bf16.mxu0 0
  %134 = vmatpush1.bf16.msra.mxu0 0
  %135 = vmatprep.subr.bf16.mxu0 0
  %136 = vmatpush1.bf16.msra.mxu0 0
  %137 = vmatprep.subr.bf16.mxu0 0
  %138 = vmatpush1.bf16.msra.mxu0 0
  %139 = vmatprep.subr.bf16.mxu0 0
  %140 = vmatpush1.bf16.msra.mxu0 0
  %141 = vmatprep.subr.bf16.mxu0 0
  %142 = vmatpush1.bf16.msra.mxu0 0
  %143 = vmatprep.subr.bf16.mxu0 0
  %144 = vmatpush1.bf16.msra.mxu0 0
  %145 = vmatprep.subr.bf16.mxu0 0
  %146 = vmatpush1.bf16.msra.mxu0 0
  %147 = vmatprep.subr.bf16.mxu0 0
  %148 = vmatpush1.bf16.msra.mxu0 0
  %149 = vmatprep.subr.bf16.mxu0 0
  %150 = vmatpush1.bf16.msra.mxu0 0
  %151 = vmatprep.subr.bf16.mxu0 0
  %152 = vmatpush1.bf16.msra.mxu0 0
  %153 = vmatprep.subr.bf16.mxu0 0
  %154 = vmatpush1.bf16.msra.mxu0 0
  %155 = vmatprep.subr.bf16.mxu0 0
  %156 = vmatpush1.bf16.msra.mxu0 0
  %157 = vmatprep.subr.bf16.mxu0 0
  %158 = vmatpush1.bf16.msra.mxu0 0
  %159 = vmatprep.subr.bf16.mxu0 0
  %160 = vmatpush1.bf16.msra.mxu0 0
  %161 = vmatprep.subr.bf16.mxu0 0
  %162 = vmatpush1.bf16.msra.mxu0 0
  %163 = vmatprep.mubr.bf16.mxu0 0
  %164 = vmatmul.mubr.bf16.gmra.mrb[0].mxu0 %v129
  %v165 = vpop.f32.mrb[0].mxu0
  %v166 = vadd.f32 0.0, %v165
  %v167 = vpop.f32.mrb[0].mxu0
  %v168 = vpop.f32.mrb[0].mxu0
  %v169 = vpop.f32.mrb[0].mxu0
  %170 = vdwg.mxu0
  %v171 = vadd.f32 %v20, %v166
  %v172 = vtanh.pop %v171
  %v173 = vxor.u32 %v171, 2147483648
  %v174 = vmul.f32 %v173, 1.442695
  %v175 = vpow.pop %v174
  %v176 = vadd.f32 %v175, 1.0
  %v177 = vrcp.pop %v176
  %v178 = vmul.f32 1.0, %v177
  %v179 = vsel %vm19, %v172, %v178
  %181 = vrot.lane.b32.xlu0 %v118, 16
  %v182 = vpop.permute.xlu0 %181
  %v184 = vmul.f32 %v179, %v182
  %186 = vrot.lane.b32.xlu0 %v179, 96
  %v187 = vpop.permute.xlu0 %186
  %v189 = vmul.f32 %v179, %v187
  %191 = vrot.lane.b32.xlu0 %v189, 16
  %v192 = vpop.permute.xlu0 %191
  %v194 = vadd.f32 %v184, %v192
  %v195 = vtanh.pop %v194
  %197 = vrot.lane.b32.xlu0 %v195, 32
  %v198 = vpop.permute.xlu0 %197
  %v200 = vmul.f32 %v179, %v198
  %202 = vrot.lane.b32.xlu0 %v200, 80
  %v203 = vpop.permute.xlu0 %202
  %205 = vst.msk [vmem:[#allocation2] sm:$0x3] %vm12, %v203
  %207 = vrot.lane.b32.xlu0 %v194, 112
  %v208 = vpop.permute.xlu0 %207
  %210 = vst.msk [vmem:[#allocation3] sm:$0x3] %vm12, %v208
  %s211 = scalar_lea.vmem %s2, 2
  %212 = vst.msk [vmem:[%s211] sm:$0x3] %vm12, %v203
  %v213 = vld [vmem:[#allocation2] sm:$0x3]
  %v214 = vld [vmem:[#allocation3] sm:$0x3]
  %v215 = vpack.c.bf16 %v213, %v213
  %v216 = vld [vmem:[%s1] sm:$0xf]
  %v217 = vld [vmem:[%s1 + $0x4] sm:$0xf]
  %v220 = vunpack.c.l.b16 %v216
  %v221 = vunpack.c.l.b16 %v217
  %v222 = vpack.c.b16 %v221, %v220
  %v225 = vsel %vm32, %v215, 0
  %227 = vmatprep.subr.bf16.mxu0 0
  %228 = vmatpush1.bf16.msra.mxu0 %v222
  %229 = vmatprep.subr.bf16.mxu0 0
  %230 = vmatpush1.bf16.msra.mxu0 0
  %231 = vmatprep.subr.bf16.mxu0 0
  %232 = vmatpush1.bf16.msra.mxu0 0
  %233 = vmatprep.subr.bf16.mxu0 0
  %234 = vmatpush1.bf16.msra.mxu0 0
  %235 = vmatprep.subr.bf16.mxu0 0
  %236 = vmatpush1.bf16.msra.mxu0 0
  %237 = vmatprep.subr.bf16.mxu0 0
  %238 = vmatpush1.bf16.msra.mxu0 0
  %239 = vmatprep.subr.bf16.mxu0 0
  %240 = vmatpush1.bf16.msra.mxu0 0
  %241 = vmatprep.subr.bf16.mxu0 0
  %242 = vmatpush1.bf16.msra.mxu0 0
  %243 = vmatprep.subr.bf16.mxu0 0
  %244 = vmatpush1.bf16.msra.mxu0 0
  %245 = vmatprep.subr.bf16.mxu0 0
  %246 = vmatpush1.bf16.msra.mxu0 0
  %247 = vmatprep.subr.bf16.mxu0 0
  %248 = vmatpush1.bf16.msra.mxu0 0
  %249 = vmatprep.subr.bf16.mxu0 0
  %250 = vmatpush1.bf16.msra.mxu0 0
  %251 = vmatprep.subr.bf16.mxu0 0
  %252 = vmatpush1.bf16.msra.mxu0 0
  %253 = vmatprep.subr.bf16.mxu0 0
  %254 = vmatpush1.bf16.msra.mxu0 0
  %255 = vmatprep.subr.bf16.mxu0 0
  %256 = vmatpush1.bf16.msra.mxu0 0
  %257 = vmatprep.subr.bf16.mxu0 0
  %258 = vmatpush1.bf16.msra.mxu0 0
  %259 = vmatprep.mubr.bf16.mxu0 0
  %260 = vmatmul.mubr.bf16.gmra.mrb[0].mxu0 %v225
  %v261 = vpop.f32.mrb[0].mxu0
  %v262 = vadd.f32 0.0, %v261
  %v263 = vpop.f32.mrb[0].mxu0
  %v264 = vpop.f32.mrb[0].mxu0
  %v265 = vpop.f32.mrb[0].mxu0
  %266 = vdwg.mxu0
  %v267 = vadd.f32 %v20, %v262
  %v268 = vtanh.pop %v267
  %v269 = vxor.u32 %v267, 2147483648
  %v270 = vmul.f32 %v269, 1.442695
  %v271 = vpow.pop %v270
  %v272 = vadd.f32 %v271, 1.0
  %v273 = vrcp.pop %v272
  %v274 = vmul.f32 1.0, %v273
  %v275 = vsel %vm19, %v268, %v274
  %277 = vrot.lane.b32.xlu0 %v214, 16
  %v278 = vpop.permute.xlu0 %277
  %v280 = vmul.f32 %v275, %v278
  %282 = vrot.lane.b32.xlu0 %v275, 96
  %v283 = vpop.permute.xlu0 %282
  %v285 = vmul.f32 %v275, %v283
  %287 = vrot.lane.b32.xlu0 %v285, 16
  %v288 = vpop.permute.xlu0 %287
  %v290 = vadd.f32 %v280, %v288
  %v291 = vtanh.pop %v290
  %293 = vrot.lane.b32.xlu0 %v291, 32
  %v294 = vpop.permute.xlu0 %293
  %v296 = vmul.f32 %v275, %v294
  %298 = vrot.lane.b32.xlu0 %v296, 80
  %v299 = vpop.permute.xlu0 %298
  %301 = vst.msk [vmem:[#allocation2] sm:$0x3] %vm12, %v299
  %303 = vrot.lane.b32.xlu0 %v290, 112
  %v304 = vpop.permute.xlu0 %303
  %306 = vst.msk [vmem:[#allocation3] sm:$0x3] %vm12, %v304
  %s307 = scalar_lea.vmem %s2, 4
  %308 = vst.msk [vmem:[%s307] sm:$0x3] %vm12, %v299
  %v309 = vld [vmem:[#allocation2] sm:$0x3]
  %v310 = vld [vmem:[#allocation3] sm:$0x3]
  %v311 = vpack.c.bf16 %v309, %v309
  %v312 = vld [vmem:[%s1] sm:$0xf]
  %v313 = vld [vmem:[%s1 + $0x4] sm:$0xf]
  %v316 = vunpack.c.l.b16 %v312
  %v317 = vunpack.c.l.b16 %v313
  %v318 = vpack.c.b16 %v317, %v316
  %v321 = vsel %vm32, %v311, 0
  %323 = vmatprep.subr.bf16.mxu0 0
  %324 = vmatpush1.bf16.msra.mxu0 %v318
  %325 = vmatprep.subr.bf16.mxu0 0
  %326 = vmatpush1.bf16.msra.mxu0 0
  %327 = vmatprep.subr.bf16.mxu0 0
  %328 = vmatpush1.bf16.msra.mxu0 0
  %329 = vmatprep.subr.bf16.mxu0 0
  %330 = vmatpush1.bf16.msra.mxu0 0
  %331 = vmatprep.subr.bf16.mxu0 0
  %332 = vmatpush1.bf16.msra.mxu0 0
  %333 = vmatprep.subr.bf16.mxu0 0
  %334 = vmatpush1.bf16.msra.mxu0 0
  %335 = vmatprep.subr.bf16.mxu0 0
  %336 = vmatpush1.bf16.msra.mxu0 0
  %337 = vmatprep.subr.bf16.mxu0 0
  %338 = vmatpush1.bf16.msra.mxu0 0
  %339 = vmatprep.subr.bf16.mxu0 0
  %340 = vmatpush1.bf16.msra.mxu0 0
  %341 = vmatprep.subr.bf16.mxu0 0
  %342 = vmatpush1.bf16.msra.mxu0 0
  %343 = vmatprep.subr.bf16.mxu0 0
  %344 = vmatpush1.bf16.msra.mxu0 0
  %345 = vmatprep.subr.bf16.mxu0 0
  %346 = vmatpush1.bf16.msra.mxu0 0
  %347 = vmatprep.subr.bf16.mxu0 0
  %348 = vmatpush1.bf16.msra.mxu0 0
  %349 = vmatprep.subr.bf16.mxu0 0
  %350 = vmatpush1.bf16.msra.mxu0 0
  %351 = vmatprep.subr.bf16.mxu0 0
  %352 = vmatpush1.bf16.msra.mxu0 0
  %353 = vmatprep.subr.bf16.mxu0 0
  %354 = vmatpush1.bf16.msra.mxu0 0
  %355 = vmatprep.mubr.bf16.mxu0 0
  %356 = vmatmul.mubr.bf16.gmra.mrb[0].mxu0 %v321
  %v357 = vpop.f32.mrb[0].mxu0
  %v358 = vadd.f32 0.0, %v357
  %v359 = vpop.f32.mrb[0].mxu0
  %v360 = vpop.f32.mrb[0].mxu0
  %v361 = vpop.f32.mrb[0].mxu0
  %362 = vdwg.mxu0
  %v363 = vadd.f32 %v20, %v358
  %v364 = vtanh.pop %v363
  %v365 = vxor.u32 %v363, 2147483648
  %v366 = vmul.f32 %v365, 1.442695
  %v367 = vpow.pop %v366
  %v368 = vadd.f32 %v367, 1.0
  %v369 = vrcp.pop %v368
  %v370 = vmul.f32 1.0, %v369
  %v371 = vsel %vm19, %v364, %v370
  %373 = vrot.lane.b32.xlu0 %v310, 16
  %v374 = vpop.permute.xlu0 %373
  %v376 = vmul.f32 %v371, %v374
  %378 = vrot.lane.b32.xlu0 %v371, 96
  %v379 = vpop.permute.xlu0 %378
  %v381 = vmul.f32 %v371, %v379
  %383 = vrot.lane.b32.xlu0 %v381, 16
  %v384 = vpop.permute.xlu0 %383
  %v386 = vadd.f32 %v376, %v384
  %v387 = vtanh.pop %v386
  %389 = vrot.lane.b32.xlu0 %v387, 32
  %v390 = vpop.permute.xlu0 %389
  %v392 = vmul.f32 %v371, %v390
  %394 = vrot.lane.b32.xlu0 %v392, 80
  %v395 = vpop.permute.xlu0 %394
  %397 = vst.msk [vmem:[#allocation2] sm:$0x3] %vm12, %v395
  %399 = vrot.lane.b32.xlu0 %v386, 112
  %v400 = vpop.permute.xlu0 %399
  %402 = vst.msk [vmem:[#allocation3] sm:$0x3] %vm12, %v400
  %s403 = scalar_lea.vmem %s2, 6
  %404 = vst.msk [vmem:[%s403] sm:$0x3] %vm12, %v395
  %v405 = vld [vmem:[#allocation2] sm:$0x3]
  %v406 = vld [vmem:[#allocation3] sm:$0x3]
  %v407 = vpack.c.bf16 %v405, %v405
  %v408 = vld [vmem:[%s1] sm:$0xf]
  %v409 = vld [vmem:[%s1 + $0x4] sm:$0xf]
  %v412 = vunpack.c.l.b16 %v408
  %v413 = vunpack.c.l.b16 %v409
  %v414 = vpack.c.b16 %v413, %v412
  %v417 = vsel %vm32, %v407, 0
  %419 = vmatprep.subr.bf16.mxu0 0
  %420 = vmatpush1.bf16.msra.mxu0 %v414
  %421 = vmatprep.subr.bf16.mxu0 0
  %422 = vmatpush1.bf16.msra.mxu0 0
  %423 = vmatprep.subr.bf16.mxu0 0
  %424 = vmatpush1.bf16.msra.mxu0 0
  %425 = vmatprep.subr.bf16.mxu0 0
  %426 = vmatpush1.bf16.msra.mxu0 0
  %427 = vmatprep.subr.bf16.mxu0 0
  %428 = vmatpush1.bf16.msra.mxu0 0
  %429 = vmatprep.subr.bf16.mxu0 0
  %430 = vmatpush1.bf16.msra.mxu0 0
  %431 = vmatprep.subr.bf16.mxu0 0
  %432 = vmatpush1.bf16.msra.mxu0 0
  %433 = vmatprep.subr.bf16.mxu0 0
  %434 = vmatpush1.bf16.msra.mxu0 0
  %435 = vmatprep.subr.bf16.mxu0 0
  %436 = vmatpush1.bf16.msra.mxu0 0
  %437 = vmatprep.subr.bf16.mxu0 0
  %438 = vmatpush1.bf16.msra.mxu0 0
  %439 = vmatprep.subr.bf16.mxu0 0
  %440 = vmatpush1.bf16.msra.mxu0 0
  %441 = vmatprep.subr.bf16.mxu0 0
  %442 = vmatpush1.bf16.msra.mxu0 0
  %443 = vmatprep.subr.bf16.mxu0 0
  %444 = vmatpush1.bf16.msra.mxu0 0
  %445 = vmatprep.subr.bf16.mxu0 0
  %446 = vmatpush1.bf16.msra.mxu0 0
  %447 = vmatprep.subr.bf16.mxu0 0
  %448 = vmatpush1.bf16.msra.mxu0 0
  %449 = vmatprep.subr.bf16.mxu0 0
  %450 = vmatpush1.bf16.msra.mxu0 0
  %451 = vmatprep.mubr.bf16.mxu0 0
  %452 = vmatmul.mubr.bf16.gmra.mrb[0].mxu0 %v417
  %v453 = vpop.f32.mrb[0].mxu0
  %v454 = vadd.f32 0.0, %v453
  %v455 = vpop.f32.mrb[0].mxu0
  %v456 = vpop.f32.mrb[0].mxu0
  %v457 = vpop.f32.mrb[0].mxu0
  %458 = vdwg.mxu0
  %v459 = vadd.f32 %v20, %v454
  %v460 = vtanh.pop %v459
  %v461 = vxor.u32 %v459, 2147483648
  %v462 = vmul.f32 %v461, 1.442695
  %v463 = vpow.pop %v462
  %v464 = vadd.f32 %v463, 1.0
  %v465 = vrcp.pop %v464
  %v466 = vmul.f32 1.0, %v465
  %v467 = vsel %vm19, %v460, %v466
  %469 = vrot.lane.b32.xlu0 %v406, 16
  %v470 = vpop.permute.xlu0 %469
  %v472 = vmul.f32 %v467, %v470
  %474 = vrot.lane.b32.xlu0 %v467, 96
  %v475 = vpop.permute.xlu0 %474
  %v477 = vmul.f32 %v467, %v475
  %479 = vrot.lane.b32.xlu0 %v477, 16
  %v480 = vpop.permute.xlu0 %479
  %v482 = vadd.f32 %v472, %v480
  %v483 = vtanh.pop %v482
  %485 = vrot.lane.b32.xlu0 %v483, 32
  %v486 = vpop.permute.xlu0 %485
  %v488 = vmul.f32 %v467, %v486
  %490 = vrot.lane.b32.xlu0 %v488, 80
  %v491 = vpop.permute.xlu0 %490
  %493 = vst.msk [vmem:[#allocation2] sm:$0x3] %vm12, %v491
  %495 = vrot.lane.b32.xlu0 %v482, 112
  %v496 = vpop.permute.xlu0 %495
  %498 = vst.msk [vmem:[#allocation3] sm:$0x3] %vm12, %v496
  %s499 = scalar_lea.vmem %s2, 8
  %500 = vst.msk [vmem:[%s499] sm:$0x3] %vm12, %v491
  %v501 = vld [vmem:[#allocation2] sm:$0x3]
  %v502 = vld [vmem:[#allocation3] sm:$0x3]
  %v503 = vpack.c.bf16 %v501, %v501
  %v504 = vld [vmem:[%s1] sm:$0xf]
  %v505 = vld [vmem:[%s1 + $0x4] sm:$0xf]
  %v508 = vunpack.c.l.b16 %v504
  %v509 = vunpack.c.l.b16 %v505
  %v510 = vpack.c.b16 %v509, %v508
  %v513 = vsel %vm32, %v503, 0
  %515 = vmatprep.subr.bf16.mxu0 0
  %516 = vmatpush1.bf16.msra.mxu0 %v510
  %517 = vmatprep.subr.bf16.mxu0 0
  %518 = vmatpush1.bf16.msra.mxu0 0
  %519 = vmatprep.subr.bf16.mxu0 0
  %520 = vmatpush1.bf16.msra.mxu0 0
  %521 = vmatprep.subr.bf16.mxu0 0
  %522 = vmatpush1.bf16.msra.mxu0 0
  %523 = vmatprep.subr.bf16.mxu0 0
  %524 = vmatpush1.bf16.msra.mxu0 0
  %525 = vmatprep.subr.bf16.mxu0 0
  %526 = vmatpush1.bf16.msra.mxu0 0
  %527 = vmatprep.subr.bf16.mxu0 0
  %528 = vmatpush1.bf16.msra.mxu0 0
  %529 = vmatprep.subr.bf16.mxu0 0
  %530 = vmatpush1.bf16.msra.mxu0 0
  %531 = vmatprep.subr.bf16.mxu0 0
  %532 = vmatpush1.bf16.msra.mxu0 0
  %533 = vmatprep.subr.bf16.mxu0 0
  %534 = vmatpush1.bf16.msra.mxu0 0
  %535 = vmatprep.subr.bf16.mxu0 0
  %536 = vmatpush1.bf16.msra.mxu0 0
  %537 = vmatprep.subr.bf16.mxu0 0
  %538 = vmatpush1.bf16.msra.mxu0 0
  %539 = vmatprep.subr.bf16.mxu0 0
  %540 = vmatpush1.bf16.msra.mxu0 0
  %541 = vmatprep.subr.bf16.mxu0 0
  %542 = vmatpush1.bf16.msra.mxu0 0
  %543 = vmatprep.subr.bf16.mxu0 0
  %544 = vmatpush1.bf16.msra.mxu0 0
  %545 = vmatprep.subr.bf16.mxu0 0
  %546 = vmatpush1.bf16.msra.mxu0 0
  %547 = vmatprep.mubr.bf16.mxu0 0
  %548 = vmatmul.mubr.bf16.gmra.mrb[0].mxu0 %v513
  %v549 = vpop.f32.mrb[0].mxu0
  %v550 = vadd.f32 0.0, %v549
  %v551 = vpop.f32.mrb[0].mxu0
  %v552 = vpop.f32.mrb[0].mxu0
  %v553 = vpop.f32.mrb[0].mxu0
  %554 = vdwg.mxu0
  %v555 = vadd.f32 %v20, %v550
  %v556 = vtanh.pop %v555
  %v557 = vxor.u32 %v555, 2147483648
  %v558 = vmul.f32 %v557, 1.442695
  %v559 = vpow.pop %v558
  %v560 = vadd.f32 %v559, 1.0
  %v561 = vrcp.pop %v560
  %v562 = vmul.f32 1.0, %v561
  %v563 = vsel %vm19, %v556, %v562
  %565 = vrot.lane.b32.xlu0 %v502, 16
  %v566 = vpop.permute.xlu0 %565
  %v568 = vmul.f32 %v563, %v566
  %570 = vrot.lane.b32.xlu0 %v563, 96
  %v571 = vpop.permute.xlu0 %570
  %v573 = vmul.f32 %v563, %v571
  %575 = vrot.lane.b32.xlu0 %v573, 16
  %v576 = vpop.permute.xlu0 %575
  %v578 = vadd.f32 %v568, %v576
  %v579 = vtanh.pop %v578
  %581 = vrot.lane.b32.xlu0 %v579, 32
  %v582 = vpop.permute.xlu0 %581
  %v584 = vmul.f32 %v563, %v582
  %586 = vrot.lane.b32.xlu0 %v584, 80
  %v587 = vpop.permute.xlu0 %586
  %589 = vst.msk [vmem:[#allocation2] sm:$0x3] %vm12, %v587
  %591 = vrot.lane.b32.xlu0 %v578, 112
  %v592 = vpop.permute.xlu0 %591
  %594 = vst.msk [vmem:[#allocation3] sm:$0x3] %vm12, %v592
  %s595 = scalar_lea.vmem %s2, 10
  %596 = vst.msk [vmem:[%s595] sm:$0x3] %vm12, %v587
  %v597 = vld [vmem:[#allocation2] sm:$0x3]
  %v598 = vld [vmem:[#allocation3] sm:$0x3]
  %v599 = vpack.c.bf16 %v597, %v597
  %v600 = vld [vmem:[%s1] sm:$0xf]
  %v601 = vld [vmem:[%s1 + $0x4] sm:$0xf]
  %v604 = vunpack.c.l.b16 %v600
  %v605 = vunpack.c.l.b16 %v601
  %v606 = vpack.c.b16 %v605, %v604
  %v609 = vsel %vm32, %v599, 0
  %611 = vmatprep.subr.bf16.mxu0 0
  %612 = vmatpush1.bf16.msra.mxu0 %v606
  %613 = vmatprep.subr.bf16.mxu0 0
  %614 = vmatpush1.bf16.msra.mxu0 0
  %615 = vmatprep.subr.bf16.mxu0 0
  %616 = vmatpush1.bf16.msra.mxu0 0
  %617 = vmatprep.subr.bf16.mxu0 0
  %618 = vmatpush1.bf16.msra.mxu0 0
  %619 = vmatprep.subr.bf16.mxu0 0
  %620 = vmatpush1.bf16.msra.mxu0 0
  %621 = vmatprep.subr.bf16.mxu0 0
  %622 = vmatpush1.bf16.msra.mxu0 0
  %623 = vmatprep.subr.bf16.mxu0 0
  %624 = vmatpush1.bf16.msra.mxu0 0
  %625 = vmatprep.subr.bf16.mxu0 0
  %626 = vmatpush1.bf16.msra.mxu0 0
  %627 = vmatprep.subr.bf16.mxu0 0
  %628 = vmatpush1.bf16.msra.mxu0 0
  %629 = vmatprep.subr.bf16.mxu0 0
  %630 = vmatpush1.bf16.msra.mxu0 0
  %631 = vmatprep.subr.bf16.mxu0 0
  %632 = vmatpush1.bf16.msra.mxu0 0
  %633 = vmatprep.subr.bf16.mxu0 0
  %634 = vmatpush1.bf16.msra.mxu0 0
  %635 = vmatprep.subr.bf16.mxu0 0
  %636 = vmatpush1.bf16.msra.mxu0 0
  %637 = vmatprep.subr.bf16.mxu0 0
  %638 = vmatpush1.bf16.msra.mxu0 0
  %639 = vmatprep.subr.bf16.mxu0 0
  %640 = vmatpush1.bf16.msra.mxu0 0
  %641 = vmatprep.subr.bf16.mxu0 0
  %642 = vmatpush1.bf16.msra.mxu0 0
  %643 = vmatprep.mubr.bf16.mxu0 0
  %644 = vmatmul.mubr.bf16.gmra.mrb[0].mxu0 %v609
  %v645 = vpop.f32.mrb[0].mxu0
  %v646 = vadd.f32 0.0, %v645
  %v647 = vpop.f32.mrb[0].mxu0
  %v648 = vpop.f32.mrb[0].mxu0
  %v649 = vpop.f32.mrb[0].mxu0
  %650 = vdwg.mxu0
  %v651 = vadd.f32 %v20, %v646
  %v652 = vtanh.pop %v651
  %v653 = vxor.u32 %v651, 2147483648
  %v654 = vmul.f32 %v653, 1.442695
  %v655 = vpow.pop %v654
  %v656 = vadd.f32 %v655, 1.0
  %v657 = vrcp.pop %v656
  %v658 = vmul.f32 1.0, %v657
  %v659 = vsel %vm19, %v652, %v658
  %661 = vrot.lane.b32.xlu0 %v598, 16
  %v662 = vpop.permute.xlu0 %661
  %v664 = vmul.f32 %v659, %v662
  %666 = vrot.lane.b32.xlu0 %v659, 96
  %v667 = vpop.permute.xlu0 %666
  %v669 = vmul.f32 %v659, %v667
  %671 = vrot.lane.b32.xlu0 %v669, 16
  %v672 = vpop.permute.xlu0 %671
  %v674 = vadd.f32 %v664, %v672
  %v675 = vtanh.pop %v674
  %677 = vrot.lane.b32.xlu0 %v675, 32
  %v678 = vpop.permute.xlu0 %677
  %v680 = vmul.f32 %v659, %v678
  %682 = vrot.lane.b32.xlu0 %v680, 80
  %v683 = vpop.permute.xlu0 %682
  %685 = vst.msk [vmem:[#allocation2] sm:$0x3] %vm12, %v683
  %687 = vrot.lane.b32.xlu0 %v674, 112
  %v688 = vpop.permute.xlu0 %687
  %690 = vst.msk [vmem:[#allocation3] sm:$0x3] %vm12, %v688
  %s691 = scalar_lea.vmem %s2, 12
  %692 = vst.msk [vmem:[%s691] sm:$0x3] %vm12, %v683
  %v693 = vld [vmem:[#allocation2] sm:$0x3]
  %v694 = vld [vmem:[#allocation3] sm:$0x3]
  %v695 = vpack.c.bf16 %v693, %v693
  %v696 = vld [vmem:[%s1] sm:$0xf]
  %v697 = vld [vmem:[%s1 + $0x4] sm:$0xf]
  %v700 = vunpack.c.l.b16 %v696
  %v701 = vunpack.c.l.b16 %v697
  %v702 = vpack.c.b16 %v701, %v700
  %v705 = vsel %vm32, %v695, 0
  %707 = vmatprep.subr.bf16.mxu0 0
  %708 = vmatpush1.bf16.msra.mxu0 %v702
  %709 = vmatprep.subr.bf16.mxu0 0
  %710 = vmatpush1.bf16.msra.mxu0 0
  %711 = vmatprep.subr.bf16.mxu0 0
  %712 = vmatpush1.bf16.msra.mxu0 0
  %713 = vmatprep.subr.bf16.mxu0 0
  %714 = vmatpush1.bf16.msra.mxu0 0
  %715 = vmatprep.subr.bf16.mxu0 0
  %716 = vmatpush1.bf16.msra.mxu0 0
  %717 = vmatprep.subr.bf16.mxu0 0
  %718 = vmatpush1.bf16.msra.mxu0 0
  %719 = vmatprep.subr.bf16.mxu0 0
  %720 = vmatpush1.bf16.msra.mxu0 0
  %721 = vmatprep.subr.bf16.mxu0 0
  %722 = vmatpush1.bf16.msra.mxu0 0
  %723 = vmatprep.subr.bf16.mxu0 0
  %724 = vmatpush1.bf16.msra.mxu0 0
  %725 = vmatprep.subr.bf16.mxu0 0
  %726 = vmatpush1.bf16.msra.mxu0 0
  %727 = vmatprep.subr.bf16.mxu0 0
  %728 = vmatpush1.bf16.msra.mxu0 0
  %729 = vmatprep.subr.bf16.mxu0 0
  %730 = vmatpush1.bf16.msra.mxu0 0
  %731 = vmatprep.subr.bf16.mxu0 0
  %732 = vmatpush1.bf16.msra.mxu0 0
  %733 = vmatprep.subr.bf16.mxu0 0
  %734 = vmatpush1.bf16.msra.mxu0 0
  %735 = vmatprep.subr.bf16.mxu0 0
  %736 = vmatpush1.bf16.msra.mxu0 0
  %737 = vmatprep.subr.bf16.mxu0 0
  %738 = vmatpush1.bf16.msra.mxu0 0
  %739 = vmatprep.mubr.bf16.mxu0 0
  %740 = vmatmul.mubr.bf16.gmra.mrb[0].mxu0 %v705
  %v741 = vpop.f32.mrb[0].mxu0
  %v742 = vadd.f32 0.0, %v741
  %v743 = vpop.f32.mrb[0].mxu0
  %v744 = vpop.f32.mrb[0].mxu0
  %v745 = vpop.f32.mrb[0].mxu0
  %746 = vdwg.mxu0
  %v747 = vadd.f32 %v20, %v742
  %v748 = vtanh.pop %v747
  %v749 = vxor.u32 %v747, 2147483648
  %v750 = vmul.f32 %v749, 1.442695
  %v751 = vpow.pop %v750
  %v752 = vadd.f32 %v751, 1.0
  %v753 = vrcp.pop %v752
  %v754 = vmul.f32 1.0, %v753
  %v755 = vsel %vm19, %v748, %v754
  %757 = vrot.lane.b32.xlu0 %v694, 16
  %v758 = vpop.permute.xlu0 %757
  %v760 = vmul.f32 %v755, %v758
  %762 = vrot.lane.b32.xlu0 %v755, 96
  %v763 = vpop.permute.xlu0 %762
  %v765 = vmul.f32 %v755, %v763
  %767 = vrot.lane.b32.xlu0 %v765, 16
  %v768 = vpop.permute.xlu0 %767
  %v770 = vadd.f32 %v760, %v768
  %v771 = vtanh.pop %v770
  %773 = vrot.lane.b32.xlu0 %v771, 32
  %v774 = vpop.permute.xlu0 %773
  %v776 = vmul.f32 %v755, %v774
  %778 = vrot.lane.b32.xlu0 %v776, 80
  %v779 = vpop.permute.xlu0 %778
  %781 = vst.msk [vmem:[#allocation2] sm:$0x3] %vm12, %v779
  %783 = vrot.lane.b32.xlu0 %v770, 112
  %v784 = vpop.permute.xlu0 %783
  %786 = vst.msk [vmem:[#allocation3] sm:$0x3] %vm12, %v784
  %s787 = scalar_lea.vmem %s2, 14
  %788 = vst.msk [vmem:[%s787] sm:$0x3] %vm12, %v779
  // Predicated region
  $region10: #{lstm_transformer_ae.5} parent=0 // pred_check
    _
  $region11: #{lstm_transformer_ae.5} parent=0 // pred_check_branch
    %790 = sbr.rel (0) target = $region13
  $region12: #{lstm_transformer_ae.5} parent=0 // pred_region
    _
  $region13: #{lstm_transformer_ae.5} parent=0 // pred_fallthru
    _
  // Predicated region
  $region14: #{lstm_transformer_ae.5} parent=0 // pred_check
    _
  $region15: #{lstm_transformer_ae.5} parent=0 // pred_check_branch
    %792 = sbr.rel (0) target = $region17
  $region16: #{lstm_transformer_ae.5} parent=0 // pred_region
    _
  $region17: #{lstm_transformer_ae.5} parent=0 // pred_fallthru
    _

// kernel: lstm_transformer_ae.3
$region0: #{lstm_transformer_ae.3}
  #allocation0 [shape = 'u32[]', space=smem, size = 0x4, offset = 0x4, fixed_abs, tag = 'smem constant byte address 0x4 - core index']
  #allocation1 [shape = 'u32[144,128]{1,0:T(1,128)}', space=vmem, size = 0x12000, scoped, tag = 'internal scratch']
  #allocation2 [shape = 'f32[2,32]{1,0:T(2,128)}', space=vmem, size = 0x400, scoped, tag = 'scratch operand']
  #allocation3 [shape = 'f32[2,32]{1,0:T(2,128)}', space=vmem, size = 0x400, scoped, tag = 'scratch operand']
  %s0 = inlined_call_operand.vmem [shape: f32[8,2,128], index: 0, kind: input, shape index: {}]
  %s1 = inlined_call_operand.vmem [shape: bf16[32,128], index: 1, kind: input, shape index: {}]
  %s2 = inlined_call_operand.vmem [shape: f32[8,2,32], index: 2, kind: output, shape index: {}]
  %s3 = sld [smem:[#allocation0]]
  $region18: #{lstm_transformer_ae.3} parent=0
    _
  %s5 = ssub.s32 1, %s3
  %s6 = scalar_select 0, %s5, %s3
  // Predicated region
  $region2: #{lstm_transformer_ae.3} parent=0 // pred_check
    _
  $region3: #{lstm_transformer_ae.3} parent=0 // pred_check_branch
    %8 = sbr.rel (0) target = $region5
  $region4: #{lstm_transformer_ae.3} parent=0 // pred_region
    _
  $region5: #{lstm_transformer_ae.3} parent=0 // pred_fallthru
    _
  // Predicated region
  $region6: #{lstm_transformer_ae.3} parent=0 // pred_check
    _
  $region7: #{lstm_transformer_ae.3} parent=0 // pred_check_branch
    %10 = sbr.rel (0) target = $region9
  $region8: #{lstm_transformer_ae.3} parent=0 // pred_region
    _
  $region9: #{lstm_transformer_ae.3} parent=0 // pred_fallthru
    _
  %vm12 = vcmask 254976
  %13 = vst.msk [vmem:[#allocation2] sm:$0x3] %vm12, 0.0
  %14 = vst.msk [vmem:[#allocation3] sm:$0x3] %vm12, 0.0
  %v15 = vlaneseq
  %v16 = vand.u32 %v15, 127
  %vm17 = vcmp.ge.s32.totalorder %v16, 64
  %vm18 = vcmp.lt.s32.totalorder %v16, 96
  %vm19 = vmand %vm17, %vm18
  %v20 = vld [vmem:[%s0] sm:$0x3]
  %v21 = vld [vmem:[#allocation2] sm:$0x3]
  %v22 = vld [vmem:[#allocation3] sm:$0x3]
  %v23 = vpack.c.bf16 %v21, %v21
  %v24 = vld [vmem:[%s1] sm:$0xf]
  %v25 = vld [vmem:[%s1 + $0x4] sm:$0xf]
  %v26 = vld [vmem:[%s1 + $0x8] sm:$0xf]
  %v27 = vld [vmem:[%s1 + $0xc] sm:$0xf]
  %v32 = vunpack.c.l.b16 %v24
  %v33 = vunpack.c.l.b16 %v25
  %v34 = vunpack.c.l.b16 %v26
  %v35 = vunpack.c.l.b16 %v27
  %v36 = vpack.c.b16 %v33, %v32
  %v37 = vpack.c.b16 %v35, %v34
  %vm40 = vcmask 261120
  %v42 = vsel %vm40, %v23, 0
  %44 = vmatprep.subr.bf16.mxu0 0
  %45 = vmatpush1.bf16.msra.mxu0 %v36
  %46 = vmatprep.subr.bf16.mxu0 0
  %47 = vmatpush1.bf16.msra.mxu0 %v37
  %48 = vmatprep.subr.bf16.mxu0 0
  %49 = vmatpush1.bf16.msra.mxu0 0
  %50 = vmatprep.subr.bf16.mxu0 0
  %51 = vmatpush1.bf16.msra.mxu0 0
  %52 = vmatprep.subr.bf16.mxu0 0
  %53 = vmatpush1.bf16.msra.mxu0 0
  %54 = vmatprep.subr.bf16.mxu0 0
  %55 = vmatpush1.bf16.msra.mxu0 0
  %56 = vmatprep.subr.bf16.mxu0 0
  %57 = vmatpush1.bf16.msra.mxu0 0
  %58 = vmatprep.subr.bf16.mxu0 0
  %59 = vmatpush1.bf16.msra.mxu0 0
  %60 = vmatprep.subr.bf16.mxu0 0
  %61 = vmatpush1.bf16.msra.mxu0 0
  %62 = vmatprep.subr.bf16.mxu0 0
  %63 = vmatpush1.bf16.msra.mxu0 0
  %64 = vmatprep.subr.bf16.mxu0 0
  %65 = vmatpush1.bf16.msra.mxu0 0
  %66 = vmatprep.subr.bf16.mxu0 0
  %67 = vmatpush1.bf16.msra.mxu0 0
  %68 = vmatprep.subr.bf16.mxu0 0
  %69 = vmatpush1.bf16.msra.mxu0 0
  %70 = vmatprep.subr.bf16.mxu0 0
  %71 = vmatpush1.bf16.msra.mxu0 0
  %72 = vmatprep.subr.bf16.mxu0 0
  %73 = vmatpush1.bf16.msra.mxu0 0
  %74 = vmatprep.subr.bf16.mxu0 0
  %75 = vmatpush1.bf16.msra.mxu0 0
  %76 = vmatprep.mubr.bf16.mxu0 0
  %77 = vmatmul.mubr.bf16.gmra.mrb[0].mxu0 %v42
  %v78 = vpop.f32.mrb[0].mxu0
  %v79 = vadd.f32 0.0, %v78
  %v80 = vpop.f32.mrb[0].mxu0
  %v81 = vpop.f32.mrb[0].mxu0
  %v82 = vpop.f32.mrb[0].mxu0
  %83 = vdwg.mxu0
  %v84 = vadd.f32 %v20, %v79
  %v85 = vtanh.pop %v84
  %v86 = vxor.u32 %v84, 2147483648
  %v87 = vmul.f32 %v86, 1.442695
  %v88 = vpow.pop %v87
  %v89 = vadd.f32 %v88, 1.0
  %v90 = vrcp.pop %v89
  %v91 = vmul.f32 1.0, %v90
  %v92 = vsel %vm19, %v85, %v91
  %94 = vrot.lane.b32.xlu0 %v22, 32
  %v95 = vpop.permute.xlu0 %94
  %v97 = vmul.f32 %v92, %v95
  %99 = vrot.lane.b32.xlu0 %v92, 64
  %v100 = vpop.permute.xlu0 %99
  %v102 = vmul.f32 %v92, %v100
  %104 = vrot.lane.b32.xlu0 %v102, 32
  %v105 = vpop.permute.xlu0 %104
  %v107 = vadd.f32 %v97, %v105
  %v108 = vtanh.pop %v107
  %110 = vrot.lane.b32.xlu0 %v108, 64
  %v111 = vpop.permute.xlu0 %110
  %v113 = vmul.f32 %v92, %v111
  %115 = vrot.lane.b32.xlu0 %v113, 32
  %v116 = vpop.permute.xlu0 %115
  %118 = vst.msk [vmem:[#allocation2] sm:$0x3] %vm12, %v116
  %120 = vrot.lane.b32.xlu0 %v107, 96
  %v121 = vpop.permute.xlu0 %120
  %123 = vst.msk [vmem:[#allocation3] sm:$0x3] %vm12, %v121
  %124 = vst.msk [vmem:[%s2] sm:$0x3] %vm12, %v116
  %s125 = scalar_lea.vmem %s0, 2
  %v126 = vld [vmem:[%s125] sm:$0x3]
  %v127 = vld [vmem:[#allocation2] sm:$0x3]
  %v128 = vld [vmem:[#allocation3] sm:$0x3]
  %v129 = vpack.c.bf16 %v127, %v127
  %v130 = vld [vmem:[%s1] sm:$0xf]
  %v131 = vld [vmem:[%s1 + $0x4] sm:$0xf]
  %v132 = vld [vmem:[%s1 + $0x8] sm:$0xf]
  %v133 = vld [vmem:[%s1 + $0xc] sm:$0xf]
  %v138 = vunpack.c.l.b16 %v130
  %v139 = vunpack.c.l.b16 %v131
  %v140 = vunpack.c.l.b16 %v132
  %v141 = vunpack.c.l.b16 %v133
  %v142 = vpack.c.b16 %v139, %v138
  %v143 = vpack.c.b16 %v141, %v140
  %v147 = vsel %vm40, %v129, 0
  %149 = vmatprep.subr.bf16.mxu0 0
  %150 = vmatpush1.bf16.msra.mxu0 %v142
  %151 = vmatprep.subr.bf16.mxu0 0
  %152 = vmatpush1.bf16.msra.mxu0 %v143
  %153 = vmatprep.subr.bf16.mxu0 0
  %154 = vmatpush1.bf16.msra.mxu0 0
  %155 = vmatprep.subr.bf16.mxu0 0
  %156 = vmatpush1.bf16.msra.mxu0 0
  %157 = vmatprep.subr.bf16.mxu0 0
  %158 = vmatpush1.bf16.msra.mxu0 0
  %159 = vmatprep.subr.bf16.mxu0 0
  %160 = vmatpush1.bf16.msra.mxu0 0
  %161 = vmatprep.subr.bf16.mxu0 0
  %162 = vmatpush1.bf16.msra.mxu0 0
  %163 = vmatprep.subr.bf16.mxu0 0
  %164 = vmatpush1.bf16.msra.mxu0 0
  %165 = vmatprep.subr.bf16.mxu0 0
  %166 = vmatpush1.bf16.msra.mxu0 0
  %167 = vmatprep.subr.bf16.mxu0 0
  %168 = vmatpush1.bf16.msra.mxu0 0
  %169 = vmatprep.subr.bf16.mxu0 0
  %170 = vmatpush1.bf16.msra.mxu0 0
  %171 = vmatprep.subr.bf16.mxu0 0
  %172 = vmatpush1.bf16.msra.mxu0 0
  %173 = vmatprep.subr.bf16.mxu0 0
  %174 = vmatpush1.bf16.msra.mxu0 0
  %175 = vmatprep.subr.bf16.mxu0 0
  %176 = vmatpush1.bf16.msra.mxu0 0
  %177 = vmatprep.subr.bf16.mxu0 0
  %178 = vmatpush1.bf16.msra.mxu0 0
  %179 = vmatprep.subr.bf16.mxu0 0
  %180 = vmatpush1.bf16.msra.mxu0 0
  %181 = vmatprep.mubr.bf16.mxu0 0
  %182 = vmatmul.mubr.bf16.gmra.mrb[0].mxu0 %v147
  %v183 = vpop.f32.mrb[0].mxu0
  %v184 = vadd.f32 0.0, %v183
  %v185 = vpop.f32.mrb[0].mxu0
  %v186 = vpop.f32.mrb[0].mxu0
  %v187 = vpop.f32.mrb[0].mxu0
  %188 = vdwg.mxu0
  %v189 = vadd.f32 %v126, %v184
  %v190 = vtanh.pop %v189
  %v191 = vxor.u32 %v189, 2147483648
  %v192 = vmul.f32 %v191, 1.442695
  %v193 = vpow.pop %v192
  %v194 = vadd.f32 %v193, 1.0
  %v195 = vrcp.pop %v194
  %v196 = vmul.f32 1.0, %v195
  %v197 = vsel %vm19, %v190, %v196
  %199 = vrot.lane.b32.xlu0 %v128, 32
  %v200 = vpop.permute.xlu0 %199
  %v202 = vmul.f32 %v197, %v200
  %204 = vrot.lane.b32.xlu0 %v197, 64
  %v205 = vpop.permute.xlu0 %204
  %v207 = vmul.f32 %v197, %v205
  %209 = vrot.lane.b32.xlu0 %v207, 32
  %v210 = vpop.permute.xlu0 %209
  %v212 = vadd.f32 %v202, %v210
  %v213 = vtanh.pop %v212
  %215 = vrot.lane.b32.xlu0 %v213, 64
  %v216 = vpop.permute.xlu0 %215
  %v218 = vmul.f32 %v197, %v216
  %220 = vrot.lane.b32.xlu0 %v218, 32
  %v221 = vpop.permute.xlu0 %220
  %223 = vst.msk [vmem:[#allocation2] sm:$0x3] %vm12, %v221
  %225 = vrot.lane.b32.xlu0 %v212, 96
  %v226 = vpop.permute.xlu0 %225
  %228 = vst.msk [vmem:[#allocation3] sm:$0x3] %vm12, %v226
  %s229 = scalar_lea.vmem %s2, 2
  %230 = vst.msk [vmem:[%s229] sm:$0x3] %vm12, %v221
  %s231 = scalar_lea.vmem %s0, 4
  %v232 = vld [vmem:[%s231] sm:$0x3]
  %v233 = vld [vmem:[#allocation2] sm:$0x3]
  %v234 = vld [vmem:[#allocation3] sm:$0x3]
  %v235 = vpack.c.bf16 %v233, %v233
  %v236 = vld [vmem:[%s1] sm:$0xf]
  %v237 = vld [vmem:[%s1 + $0x4] sm:$0xf]
  %v238 = vld [vmem:[%s1 + $0x8] sm:$0xf]
  %v239 = vld [vmem:[%s1 + $0xc] sm:$0xf]
  %v244 = vunpack.c.l.b16 %v236
  %v245 = vunpack.c.l.b16 %v237
  %v246 = vunpack.c.l.b16 %v238
  %v247 = vunpack.c.l.b16 %v239
  %v248 = vpack.c.b16 %v245, %v244
  %v249 = vpack.c.b16 %v247, %v246
  %v253 = vsel %vm40, %v235, 0
  %255 = vmatprep.subr.bf16.mxu0 0
  %256 = vmatpush1.bf16.msra.mxu0 %v248
  %257 = vmatprep.subr.bf16.mxu0 0
  %258 = vmatpush1.bf16.msra.mxu0 %v249
  %259 = vmatprep.subr.bf16.mxu0 0
  %260 = vmatpush1.bf16.msra.mxu0 0
  %261 = vmatprep.subr.bf16.mxu0 0
  %262 = vmatpush1.bf16.msra.mxu0 0
  %263 = vmatprep.subr.bf16.mxu0 0
  %264 = vmatpush1.bf16.msra.mxu0 0
  %265 = vmatprep.subr.bf16.mxu0 0
  %266 = vmatpush1.bf16.msra.mxu0 0
  %267 = vmatprep.subr.bf16.mxu0 0
  %268 = vmatpush1.bf16.msra.mxu0 0
  %269 = vmatprep.subr.bf16.mxu0 0
  %270 = vmatpush1.bf16.msra.mxu0 0
  %271 = vmatprep.subr.bf16.mxu0 0
  %272 = vmatpush1.bf16.msra.mxu0 0
  %273 = vmatprep.subr.bf16.mxu0 0
  %274 = vmatpush1.bf16.msra.mxu0 0
  %275 = vmatprep.subr.bf16.mxu0 0
  %276 = vmatpush1.bf16.msra.mxu0 0
  %277 = vmatprep.subr.bf16.mxu0 0
  %278 = vmatpush1.bf16.msra.mxu0 0
  %279 = vmatprep.subr.bf16.mxu0 0
  %280 = vmatpush1.bf16.msra.mxu0 0
  %281 = vmatprep.subr.bf16.mxu0 0
  %282 = vmatpush1.bf16.msra.mxu0 0
  %283 = vmatprep.subr.bf16.mxu0 0
  %284 = vmatpush1.bf16.msra.mxu0 0
  %285 = vmatprep.subr.bf16.mxu0 0
  %286 = vmatpush1.bf16.msra.mxu0 0
  %287 = vmatprep.mubr.bf16.mxu0 0
  %288 = vmatmul.mubr.bf16.gmra.mrb[0].mxu0 %v253
  %v289 = vpop.f32.mrb[0].mxu0
  %v290 = vadd.f32 0.0, %v289
  %v291 = vpop.f32.mrb[0].mxu0
  %v292 = vpop.f32.mrb[0].mxu0
  %v293 = vpop.f32.mrb[0].mxu0
  %294 = vdwg.mxu0
  %v295 = vadd.f32 %v232, %v290
  %v296 = vtanh.pop %v295
  %v297 = vxor.u32 %v295, 2147483648
  %v298 = vmul.f32 %v297, 1.442695
  %v299 = vpow.pop %v298
  %v300 = vadd.f32 %v299, 1.0
  %v301 = vrcp.pop %v300
  %v302 = vmul.f32 1.0, %v301
  %v303 = vsel %vm19, %v296, %v302
  %305 = vrot.lane.b32.xlu0 %v234, 32
  %v306 = vpop.permute.xlu0 %305
  %v308 = vmul.f32 %v303, %v306
  %310 = vrot.lane.b32.xlu0 %v303, 64
  %v311 = vpop.permute.xlu0 %310
  %v313 = vmul.f32 %v303, %v311
  %315 = vrot.lane.b32.xlu0 %v313, 32
  %v316 = vpop.permute.xlu0 %315
  %v318 = vadd.f32 %v308, %v316
  %v319 = vtanh.pop %v318
  %321 = vrot.lane.b32.xlu0 %v319, 64
  %v322 = vpop.permute.xlu0 %321
  %v324 = vmul.f32 %v303, %v322
  %326 = vrot.lane.b32.xlu0 %v324, 32
  %v327 = vpop.permute.xlu0 %326
  %329 = vst.msk [vmem:[#allocation2] sm:$0x3] %vm12, %v327
  %331 = vrot.lane.b32.xlu0 %v318, 96
  %v332 = vpop.permute.xlu0 %331
  %334 = vst.msk [vmem:[#allocation3] sm:$0x3] %vm12, %v332
  %s335 = scalar_lea.vmem %s2, 4
  %336 = vst.msk [vmem:[%s335] sm:$0x3] %vm12, %v327
  %s337 = scalar_lea.vmem %s0, 6
  %v338 = vld [vmem:[%s337] sm:$0x3]
  %v339 = vld [vmem:[#allocation2] sm:$0x3]
  %v340 = vld [vmem:[#allocation3] sm:$0x3]
  %v341 = vpack.c.bf16 %v339, %v339
  %v342 = vld [vmem:[%s1] sm:$0xf]
  %v343 = vld [vmem:[%s1 + $0x4] sm:$0xf]
  %v344 = vld [vmem:[%s1 + $0x8] sm:$0xf]
  %v345 = vld [vmem:[%s1 + $0xc] sm:$0xf]
  %v350 = vunpack.c.l.b16 %v342
  %v351 = vunpack.c.l.b16 %v343
  %v352 = vunpack.c.l.b16 %v344
  %v353 = vunpack.c.l.b16 %v345
  %v354 = vpack.c.b16 %v351, %v350
  %v355 = vpack.c.b16 %v353, %v352
  %v359 = vsel %vm40, %v341, 0
  %361 = vmatprep.subr.bf16.mxu0 0
  %362 = vmatpush1.bf16.msra.mxu0 %v354
  %363 = vmatprep.subr.bf16.mxu0 0
  %364 = vmatpush1.bf16.msra.mxu0 %v355
  %365 = vmatprep.subr.bf16.mxu0 0
  %366 = vmatpush1.bf16.msra.mxu0 0
  %367 = vmatprep.subr.bf16.mxu0 0
  %368 = vmatpush1.bf16.msra.mxu0 0
  %369 = vmatprep.subr.bf16.mxu0 0
  %370 = vmatpush1.bf16.msra.mxu0 0
  %371 = vmatprep.subr.bf16.mxu0 0
  %372 = vmatpush1.bf16.msra.mxu0 0
  %373 = vmatprep.subr.bf16.mxu0 0
  %374 = vmatpush1.bf16.msra.mxu0 0
  %375 = vmatprep.subr.bf16.mxu0 0
  %376 = vmatpush1.bf16.msra.mxu0 0
  %377 = vmatprep.subr.bf16.mxu0 0
  %378 = vmatpush1.bf16.msra.mxu0 0
  %379 = vmatprep.subr.bf16.mxu0 0
  %380 = vmatpush1.bf16.msra.mxu0 0
  %381 = vmatprep.subr.bf16.mxu0 0
  %382 = vmatpush1.bf16.msra.mxu0 0
  %383 = vmatprep.subr.bf16.mxu0 0
  %384 = vmatpush1.bf16.msra.mxu0 0
  %385 = vmatprep.subr.bf16.mxu0 0
  %386 = vmatpush1.bf16.msra.mxu0 0
  %387 = vmatprep.subr.bf16.mxu0 0
  %388 = vmatpush1.bf16.msra.mxu0 0
  %389 = vmatprep.subr.bf16.mxu0 0
  %390 = vmatpush1.bf16.msra.mxu0 0
  %391 = vmatprep.subr.bf16.mxu0 0
  %392 = vmatpush1.bf16.msra.mxu0 0
  %393 = vmatprep.mubr.bf16.mxu0 0
  %394 = vmatmul.mubr.bf16.gmra.mrb[0].mxu0 %v359
  %v395 = vpop.f32.mrb[0].mxu0
  %v396 = vadd.f32 0.0, %v395
  %v397 = vpop.f32.mrb[0].mxu0
  %v398 = vpop.f32.mrb[0].mxu0
  %v399 = vpop.f32.mrb[0].mxu0
  %400 = vdwg.mxu0
  %v401 = vadd.f32 %v338, %v396
  %v402 = vtanh.pop %v401
  %v403 = vxor.u32 %v401, 2147483648
  %v404 = vmul.f32 %v403, 1.442695
  %v405 = vpow.pop %v404
  %v406 = vadd.f32 %v405, 1.0
  %v407 = vrcp.pop %v406
  %v408 = vmul.f32 1.0, %v407
  %v409 = vsel %vm19, %v402, %v408
  %411 = vrot.lane.b32.xlu0 %v340, 32
  %v412 = vpop.permute.xlu0 %411
  %v414 = vmul.f32 %v409, %v412
  %416 = vrot.lane.b32.xlu0 %v409, 64
  %v417 = vpop.permute.xlu0 %416
  %v419 = vmul.f32 %v409, %v417
  %421 = vrot.lane.b32.xlu0 %v419, 32
  %v422 = vpop.permute.xlu0 %421
  %v424 = vadd.f32 %v414, %v422
  %v425 = vtanh.pop %v424
  %427 = vrot.lane.b32.xlu0 %v425, 64
  %v428 = vpop.permute.xlu0 %427
  %v430 = vmul.f32 %v409, %v428
  %432 = vrot.lane.b32.xlu0 %v430, 32
  %v433 = vpop.permute.xlu0 %432
  %435 = vst.msk [vmem:[#allocation2] sm:$0x3] %vm12, %v433
  %437 = vrot.lane.b32.xlu0 %v424, 96
  %v438 = vpop.permute.xlu0 %437
  %440 = vst.msk [vmem:[#allocation3] sm:$0x3] %vm12, %v438
  %s441 = scalar_lea.vmem %s2, 6
  %442 = vst.msk [vmem:[%s441] sm:$0x3] %vm12, %v433
  %s443 = scalar_lea.vmem %s0, 8
  %v444 = vld [vmem:[%s443] sm:$0x3]
  %v445 = vld [vmem:[#allocation2] sm:$0x3]
  %v446 = vld [vmem:[#allocation3] sm:$0x3]
  %v447 = vpack.c.bf16 %v445, %v445
  %v448 = vld [vmem:[%s1] sm:$0xf]
  %v449 = vld [vmem:[%s1 + $0x4] sm:$0xf]
  %v450 = vld [vmem:[%s1 + $0x8] sm:$0xf]
  %v451 = vld [vmem:[%s1 + $0xc] sm:$0xf]
  %v456 = vunpack.c.l.b16 %v448
  %v457 = vunpack.c.l.b16 %v449
  %v458 = vunpack.c.l.b16 %v450
  %v459 = vunpack.c.l.b16 %v451
  %v460 = vpack.c.b16 %v457, %v456
  %v461 = vpack.c.b16 %v459, %v458
  %v465 = vsel %vm40, %v447, 0
  %467 = vmatprep.subr.bf16.mxu0 0
  %468 = vmatpush1.bf16.msra.mxu0 %v460
  %469 = vmatprep.subr.bf16.mxu0 0
  %470 = vmatpush1.bf16.msra.mxu0 %v461
  %471 = vmatprep.subr.bf16.mxu0 0
  %472 = vmatpush1.bf16.msra.mxu0 0
  %473 = vmatprep.subr.bf16.mxu0 0
  %474 = vmatpush1.bf16.msra.mxu0 0
  %475 = vmatprep.subr.bf16.mxu0 0
  %476 = vmatpush1.bf16.msra.mxu0 0
  %477 = vmatprep.subr.bf16.mxu0 0
  %478 = vmatpush1.bf16.msra.mxu0 0
  %479 = vmatprep.subr.bf16.mxu0 0
  %480 = vmatpush1.bf16.msra.mxu0 0
  %481 = vmatprep.subr.bf16.mxu0 0
  %482 = vmatpush1.bf16.msra.mxu0 0
  %483 = vmatprep.subr.bf16.mxu0 0
  %484 = vmatpush1.bf16.msra.mxu0 0
  %485 = vmatprep.subr.bf16.mxu0 0
  %486 = vmatpush1.bf16.msra.mxu0 0
  %487 = vmatprep.subr.bf16.mxu0 0
  %488 = vmatpush1.bf16.msra.mxu0 0
  %489 = vmatprep.subr.bf16.mxu0 0
  %490 = vmatpush1.bf16.msra.mxu0 0
  %491 = vmatprep.subr.bf16.mxu0 0
  %492 = vmatpush1.bf16.msra.mxu0 0
  %493 = vmatprep.subr.bf16.mxu0 0
  %494 = vmatpush1.bf16.msra.mxu0 0
  %495 = vmatprep.subr.bf16.mxu0 0
  %496 = vmatpush1.bf16.msra.mxu0 0
  %497 = vmatprep.subr.bf16.mxu0 0
  %498 = vmatpush1.bf16.msra.mxu0 0
  %499 = vmatprep.mubr.bf16.mxu0 0
  %500 = vmatmul.mubr.bf16.gmra.mrb[0].mxu0 %v465
  %v501 = vpop.f32.mrb[0].mxu0
  %v502 = vadd.f32 0.0, %v501
  %v503 = vpop.f32.mrb[0].mxu0
  %v504 = vpop.f32.mrb[0].mxu0
  %v505 = vpop.f32.mrb[0].mxu0
  %506 = vdwg.mxu0
  %v507 = vadd.f32 %v444, %v502
  %v508 = vtanh.pop %v507
  %v509 = vxor.u32 %v507, 2147483648
  %v510 = vmul.f32 %v509, 1.442695
  %v511 = vpow.pop %v510
  %v512 = vadd.f32 %v511, 1.0
  %v513 = vrcp.pop %v512
  %v514 = vmul.f32 1.0, %v513
  %v515 = vsel %vm19, %v508, %v514
  %517 = vrot.lane.b32.xlu0 %v446, 32
  %v518 = vpop.permute.xlu0 %517
  %v520 = vmul.f32 %v515, %v518
  %522 = vrot.lane.b32.xlu0 %v515, 64
  %v523 = vpop.permute.xlu0 %522
  %v525 = vmul.f32 %v515, %v523
  %527 = vrot.lane.b32.xlu0 %v525, 32
  %v528 = vpop.permute.xlu0 %527
  %v530 = vadd.f32 %v520, %v528
  %v531 = vtanh.pop %v530
  %533 = vrot.lane.b32.xlu0 %v531, 64
  %v534 = vpop.permute.xlu0 %533
  %v536 = vmul.f32 %v515, %v534
  %538 = vrot.lane.b32.xlu0 %v536, 32
  %v539 = vpop.permute.xlu0 %538
  %541 = vst.msk [vmem:[#allocation2] sm:$0x3] %vm12, %v539
  %543 = vrot.lane.b32.xlu0 %v530, 96
  %v544 = vpop.permute.xlu0 %543
  %546 = vst.msk [vmem:[#allocation3] sm:$0x3] %vm12, %v544
  %s547 = scalar_lea.vmem %s2, 8
  %548 = vst.msk [vmem:[%s547] sm:$0x3] %vm12, %v539
  %s549 = scalar_lea.vmem %s0, 10
  %v550 = vld [vmem:[%s549] sm:$0x3]
  %v551 = vld [vmem:[#allocation2] sm:$0x3]
  %v552 = vld [vmem:[#allocation3] sm:$0x3]
  %v553 = vpack.c.bf16 %v551, %v551
  %v554 = vld [vmem:[%s1] sm:$0xf]
  %v555 = vld [vmem:[%s1 + $0x4] sm:$0xf]
  %v556 = vld [vmem:[%s1 + $0x8] sm:$0xf]
  %v557 = vld [vmem:[%s1 + $0xc] sm:$0xf]
  %v562 = vunpack.c.l.b16 %v554
  %v563 = vunpack.c.l.b16 %v555
  %v564 = vunpack.c.l.b16 %v556
  %v565 = vunpack.c.l.b16 %v557
  %v566 = vpack.c.b16 %v563, %v562
  %v567 = vpack.c.b16 %v565, %v564
  %v571 = vsel %vm40, %v553, 0
  %573 = vmatprep.subr.bf16.mxu0 0
  %574 = vmatpush1.bf16.msra.mxu0 %v566
  %575 = vmatprep.subr.bf16.mxu0 0
  %576 = vmatpush1.bf16.msra.mxu0 %v567
  %577 = vmatprep.subr.bf16.mxu0 0
  %578 = vmatpush1.bf16.msra.mxu0 0
  %579 = vmatprep.subr.bf16.mxu0 0
  %580 = vmatpush1.bf16.msra.mxu0 0
  %581 = vmatprep.subr.bf16.mxu0 0
  %582 = vmatpush1.bf16.msra.mxu0 0
  %583 = vmatprep.subr.bf16.mxu0 0
  %584 = vmatpush1.bf16.msra.mxu0 0
  %585 = vmatprep.subr.bf16.mxu0 0
  %586 = vmatpush1.bf16.msra.mxu0 0
  %587 = vmatprep.subr.bf16.mxu0 0
  %588 = vmatpush1.bf16.msra.mxu0 0
  %589 = vmatprep.subr.bf16.mxu0 0
  %590 = vmatpush1.bf16.msra.mxu0 0
  %591 = vmatprep.subr.bf16.mxu0 0
  %592 = vmatpush1.bf16.msra.mxu0 0
  %593 = vmatprep.subr.bf16.mxu0 0
  %594 = vmatpush1.bf16.msra.mxu0 0
  %595 = vmatprep.subr.bf16.mxu0 0
  %596 = vmatpush1.bf16.msra.mxu0 0
  %597 = vmatprep.subr.bf16.mxu0 0
  %598 = vmatpush1.bf16.msra.mxu0 0
  %599 = vmatprep.subr.bf16.mxu0 0
  %600 = vmatpush1.bf16.msra.mxu0 0
  %601 = vmatprep.subr.bf16.mxu0 0
  %602 = vmatpush1.bf16.msra.mxu0 0
  %603 = vmatprep.subr.bf16.mxu0 0
  %604 = vmatpush1.bf16.msra.mxu0 0
  %605 = vmatprep.mubr.bf16.mxu0 0
  %606 = vmatmul.mubr.bf16.gmra.mrb[0].mxu0 %v571
  %v607 = vpop.f32.mrb[0].mxu0
  %v608 = vadd.f32 0.0, %v607
  %v609 = vpop.f32.mrb[0].mxu0
  %v610 = vpop.f32.mrb[0].mxu0
  %v611 = vpop.f32.mrb[0].mxu0
  %612 = vdwg.mxu0
  %v613 = vadd.f32 %v550, %v608
  %v614 = vtanh.pop %v613
  %v615 = vxor.u32 %v613, 2147483648
  %v616 = vmul.f32 %v615, 1.442695
  %v617 = vpow.pop %v616
  %v618 = vadd.f32 %v617, 1.0
  %v619 = vrcp.pop %v618
  %v620 = vmul.f32 1.0, %v619
  %v621 = vsel %vm19, %v614, %v620
  %623 = vrot.lane.b32.xlu0 %v552, 32
  %v624 = vpop.permute.xlu0 %623
  %v626 = vmul.f32 %v621, %v624
  %628 = vrot.lane.b32.xlu0 %v621, 64
  %v629 = vpop.permute.xlu0 %628
  %v631 = vmul.f32 %v621, %v629
  %633 = vrot.lane.b32.xlu0 %v631, 32
  %v634 = vpop.permute.xlu0 %633
  %v636 = vadd.f32 %v626, %v634
  %v637 = vtanh.pop %v636
  %639 = vrot.lane.b32.xlu0 %v637, 64
  %v640 = vpop.permute.xlu0 %639
  %v642 = vmul.f32 %v621, %v640
  %644 = vrot.lane.b32.xlu0 %v642, 32
  %v645 = vpop.permute.xlu0 %644
  %647 = vst.msk [vmem:[#allocation2] sm:$0x3] %vm12, %v645
  %649 = vrot.lane.b32.xlu0 %v636, 96
  %v650 = vpop.permute.xlu0 %649
  %652 = vst.msk [vmem:[#allocation3] sm:$0x3] %vm12, %v650
  %s653 = scalar_lea.vmem %s2, 10
  %654 = vst.msk [vmem:[%s653] sm:$0x3] %vm12, %v645
  %s655 = scalar_lea.vmem %s0, 12
  %v656 = vld [vmem:[%s655] sm:$0x3]
  %v657 = vld [vmem:[#allocation2] sm:$0x3]
  %v658 = vld [vmem:[#allocation3] sm:$0x3]
  %v659 = vpack.c.bf16 %v657, %v657
  %v660 = vld [vmem:[%s1] sm:$0xf]
  %v661 = vld [vmem:[%s1 + $0x4] sm:$0xf]
  %v662 = vld [vmem:[%s1 + $0x8] sm:$0xf]
  %v663 = vld [vmem:[%s1 + $0xc] sm:$0xf]
  %v668 = vunpack.c.l.b16 %v660
  %v669 = vunpack.c.l.b16 %v661
  %v670 = vunpack.c.l.b16 %v662
  %v671 = vunpack.c.l.b16 %v663
  %v672 = vpack.c.b16 %v669, %v668
  %v673 = vpack.c.b16 %v671, %v670
  %v677 = vsel %vm40, %v659, 0
  %679 = vmatprep.subr.bf16.mxu0 0
  %680 = vmatpush1.bf16.msra.mxu0 %v672
  %681 = vmatprep.subr.bf16.mxu0 0
  %682 = vmatpush1.bf16.msra.mxu0 %v673
  %683 = vmatprep.subr.bf16.mxu0 0
  %684 = vmatpush1.bf16.msra.mxu0 0
  %685 = vmatprep.subr.bf16.mxu0 0
  %686 = vmatpush1.bf16.msra.mxu0 0
  %687 = vmatprep.subr.bf16.mxu0 0
  %688 = vmatpush1.bf16.msra.mxu0 0
  %689 = vmatprep.subr.bf16.mxu0 0
  %690 = vmatpush1.bf16.msra.mxu0 0
  %691 = vmatprep.subr.bf16.mxu0 0
  %692 = vmatpush1.bf16.msra.mxu0 0
  %693 = vmatprep.subr.bf16.mxu0 0
  %694 = vmatpush1.bf16.msra.mxu0 0
  %695 = vmatprep.subr.bf16.mxu0 0
  %696 = vmatpush1.bf16.msra.mxu0 0
  %697 = vmatprep.subr.bf16.mxu0 0
  %698 = vmatpush1.bf16.msra.mxu0 0
  %699 = vmatprep.subr.bf16.mxu0 0
  %700 = vmatpush1.bf16.msra.mxu0 0
  %701 = vmatprep.subr.bf16.mxu0 0
  %702 = vmatpush1.bf16.msra.mxu0 0
  %703 = vmatprep.subr.bf16.mxu0 0
  %704 = vmatpush1.bf16.msra.mxu0 0
  %705 = vmatprep.subr.bf16.mxu0 0
  %706 = vmatpush1.bf16.msra.mxu0 0
  %707 = vmatprep.subr.bf16.mxu0 0
  %708 = vmatpush1.bf16.msra.mxu0 0
  %709 = vmatprep.subr.bf16.mxu0 0
  %710 = vmatpush1.bf16.msra.mxu0 0
  %711 = vmatprep.mubr.bf16.mxu0 0
  %712 = vmatmul.mubr.bf16.gmra.mrb[0].mxu0 %v677
  %v713 = vpop.f32.mrb[0].mxu0
  %v714 = vadd.f32 0.0, %v713
  %v715 = vpop.f32.mrb[0].mxu0
  %v716 = vpop.f32.mrb[0].mxu0
  %v717 = vpop.f32.mrb[0].mxu0
  %718 = vdwg.mxu0
  %v719 = vadd.f32 %v656, %v714
  %v720 = vtanh.pop %v719
  %v721 = vxor.u32 %v719, 2147483648
  %v722 = vmul.f32 %v721, 1.442695
  %v723 = vpow.pop %v722
  %v724 = vadd.f32 %v723, 1.0
  %v725 = vrcp.pop %v724
  %v726 = vmul.f32 1.0, %v725
  %v727 = vsel %vm19, %v720, %v726
  %729 = vrot.lane.b32.xlu0 %v658, 32
  %v730 = vpop.permute.xlu0 %729
  %v732 = vmul.f32 %v727, %v730
  %734 = vrot.lane.b32.xlu0 %v727, 64
  %v735 = vpop.permute.xlu0 %734
  %v737 = vmul.f32 %v727, %v735
  %739 = vrot.lane.b32.xlu0 %v737, 32
  %v740 = vpop.permute.xlu0 %739
  %v742 = vadd.f32 %v732, %v740
  %v743 = vtanh.pop %v742
  %745 = vrot.lane.b32.xlu0 %v743, 64
  %v746 = vpop.permute.xlu0 %745
  %v748 = vmul.f32 %v727, %v746
  %750 = vrot.lane.b32.xlu0 %v748, 32
  %v751 = vpop.permute.xlu0 %750
  %753 = vst.msk [vmem:[#allocation2] sm:$0x3] %vm12, %v751
  %755 = vrot.lane.b32.xlu0 %v742, 96
  %v756 = vpop.permute.xlu0 %755
  %758 = vst.msk [vmem:[#allocation3] sm:$0x3] %vm12, %v756
  %s759 = scalar_lea.vmem %s2, 12
  %760 = vst.msk [vmem:[%s759] sm:$0x3] %vm12, %v751
  %s761 = scalar_lea.vmem %s0, 14
  %v762 = vld [vmem:[%s761] sm:$0x3]
  %v763 = vld [vmem:[#allocation2] sm:$0x3]
  %v764 = vld [vmem:[#allocation3] sm:$0x3]
  %v765 = vpack.c.bf16 %v763, %v763
  %v766 = vld [vmem:[%s1] sm:$0xf]
  %v767 = vld [vmem:[%s1 + $0x4] sm:$0xf]
  %v768 = vld [vmem:[%s1 + $0x8] sm:$0xf]
  %v769 = vld [vmem:[%s1 + $0xc] sm:$0xf]
  %v774 = vunpack.c.l.b16 %v766
  %v775 = vunpack.c.l.b16 %v767
  %v776 = vunpack.c.l.b16 %v768
  %v777 = vunpack.c.l.b16 %v769
  %v778 = vpack.c.b16 %v775, %v774
  %v779 = vpack.c.b16 %v777, %v776
  %v783 = vsel %vm40, %v765, 0
  %785 = vmatprep.subr.bf16.mxu0 0
  %786 = vmatpush1.bf16.msra.mxu0 %v778
  %787 = vmatprep.subr.bf16.mxu0 0
  %788 = vmatpush1.bf16.msra.mxu0 %v779
  %789 = vmatprep.subr.bf16.mxu0 0
  %790 = vmatpush1.bf16.msra.mxu0 0
  %791 = vmatprep.subr.bf16.mxu0 0
  %792 = vmatpush1.bf16.msra.mxu0 0
  %793 = vmatprep.subr.bf16.mxu0 0
  %794 = vmatpush1.bf16.msra.mxu0 0
  %795 = vmatprep.subr.bf16.mxu0 0
  %796 = vmatpush1.bf16.msra.mxu0 0
  %797 = vmatprep.subr.bf16.mxu0 0
  %798 = vmatpush1.bf16.msra.mxu0 0
  %799 = vmatprep.subr.bf16.mxu0 0
  %800 = vmatpush1.bf16.msra.mxu0 0
  %801 = vmatprep.subr.bf16.mxu0 0
  %802 = vmatpush1.bf16.msra.mxu0 0
  %803 = vmatprep.subr.bf16.mxu0 0
  %804 = vmatpush1.bf16.msra.mxu0 0
  %805 = vmatprep.subr.bf16.mxu0 0
  %806 = vmatpush1.bf16.msra.mxu0 0
  %807 = vmatprep.subr.bf16.mxu0 0
  %808 = vmatpush1.bf16.msra.mxu0 0
  %809 = vmatprep.subr.bf16.mxu0 0
  %810 = vmatpush1.bf16.msra.mxu0 0
  %811 = vmatprep.subr.bf16.mxu0 0
  %812 = vmatpush1.bf16.msra.mxu0 0
  %813 = vmatprep.subr.bf16.mxu0 0
  %814 = vmatpush1.bf16.msra.mxu0 0
  %815 = vmatprep.subr.bf16.mxu0 0
  %816 = vmatpush1.bf16.msra.mxu0 0
  %817 = vmatprep.mubr.bf16.mxu0 0
  %818 = vmatmul.mubr.bf16.gmra.mrb[0].mxu0 %v783
  %v819 = vpop.f32.mrb[0].mxu0
  %v820 = vadd.f32 0.0, %v819
  %v821 = vpop.f32.mrb[0].mxu0
  %v822 = vpop.f32.mrb[0].mxu0
  %v823 = vpop.f32.mrb[0].mxu0
  %824 = vdwg.mxu0
  %v825 = vadd.f32 %v762, %v820
  %v826 = vtanh.pop %v825
  %v827 = vxor.u32 %v825, 2147483648
  %v828 = vmul.f32 %v827, 1.442695
  %v829 = vpow.pop %v828
  %v830 = vadd.f32 %v829, 1.0
  %v831 = vrcp.pop %v830
  %v832 = vmul.f32 1.0, %v831
  %v833 = vsel %vm19, %v826, %v832
  %835 = vrot.lane.b32.xlu0 %v764, 32
  %v836 = vpop.permute.xlu0 %835
  %v838 = vmul.f32 %v833, %v836
  %840 = vrot.lane.b32.xlu0 %v833, 64
  %v841 = vpop.permute.xlu0 %840
  %v843 = vmul.f32 %v833, %v841
  %845 = vrot.lane.b32.xlu0 %v843, 32
  %v846 = vpop.permute.xlu0 %845
  %v848 = vadd.f32 %v838, %v846
  %v849 = vtanh.pop %v848
  %851 = vrot.lane.b32.xlu0 %v849, 64
  %v852 = vpop.permute.xlu0 %851
  %v854 = vmul.f32 %v833, %v852
  %856 = vrot.lane.b32.xlu0 %v854, 32
  %v857 = vpop.permute.xlu0 %856
  %859 = vst.msk [vmem:[#allocation2] sm:$0x3] %vm12, %v857
  %861 = vrot.lane.b32.xlu0 %v848, 96
  %v862 = vpop.permute.xlu0 %861
  %864 = vst.msk [vmem:[#allocation3] sm:$0x3] %vm12, %v862
  %s865 = scalar_lea.vmem %s2, 14
  %866 = vst.msk [vmem:[%s865] sm:$0x3] %vm12, %v857
  // Predicated region
  $region10: #{lstm_transformer_ae.3} parent=0 // pred_check
    _
  $region11: #{lstm_transformer_ae.3} parent=0 // pred_check_branch
    %868 = sbr.rel (0) target = $region13
  $region12: #{lstm_transformer_ae.3} parent=0 // pred_region
    _
  $region13: #{lstm_transformer_ae.3} parent=0 // pred_fallthru
    _
  // Predicated region
  $region14: #{lstm_transformer_ae.3} parent=0 // pred_check
    _
  $region15: #{lstm_transformer_ae.3} parent=0 // pred_check_branch
    %870 = sbr.rel (0) target = $region17
  $region16: #{lstm_transformer_ae.3} parent=0 // pred_region
    _
  $region17: #{lstm_transformer_ae.3} parent=0 // pred_fallthru
    _

// kernel: lstm_transformer_ae.4
$region0: #{lstm_transformer_ae.4}
  #allocation0 [shape = 'u32[]', space=smem, size = 0x4, offset = 0x4, fixed_abs, tag = 'smem constant byte address 0x4 - core index']
  #allocation1 [shape = 'u32[144,128]{1,0:T(1,128)}', space=vmem, size = 0x12000, scoped, tag = 'internal scratch']
  #allocation2 [shape = 'f32[16,32]{1,0:T(8,128)}', space=vmem, size = 0x2000, scoped, tag = 'scratch operand']
  %s0 = inlined_call_operand.vmem [shape: f32[16,32], index: 0, kind: input, shape index: {}]
  %s1 = inlined_call_operand.vmem [shape: bf16[32,96], index: 1, kind: input, shape index: {}]
  %s2 = inlined_call_operand.vmem [shape: f32[1,96], index: 2, kind: input, shape index: {}]
  %s3 = inlined_call_operand.vmem [shape: bf16[32,32], index: 3, kind: input, shape index: {}]
  %s4 = inlined_call_operand.vmem [shape: f32[1,32], index: 4, kind: input, shape index: {}]
  %s5 = inlined_call_operand.vmem [shape: f32[1,32], index: 5, kind: input, shape index: {}]
  %s6 = inlined_call_operand.vmem [shape: f32[1,32], index: 6, kind: input, shape index: {}]
  %s7 = inlined_call_operand.vmem [shape: bf16[32,2048], index: 7, kind: input, shape index: {}]
  %s8 = inlined_call_operand.vmem [shape: f32[1,2048], index: 8, kind: input, shape index: {}]
  %s9 = inlined_call_operand.vmem [shape: bf16[2048,32], index: 9, kind: input, shape index: {}]
  %s10 = inlined_call_operand.vmem [shape: f32[1,32], index: 10, kind: input, shape index: {}]
  %s11 = inlined_call_operand.vmem [shape: f32[1,32], index: 11, kind: input, shape index: {}]
  %s12 = inlined_call_operand.vmem [shape: f32[1,32], index: 12, kind: input, shape index: {}]
  %s13 = inlined_call_operand.vmem [shape: f32[2,32], index: 13, kind: output, shape index: {}]
  %s14 = sld [smem:[#allocation0]]
  $region62: #{lstm_transformer_ae.4} parent=0
    _
  %s16 = ssub.s32 1, %s14
  %s17 = scalar_select 0, %s16, %s14
  // Predicated region
  $region2: #{lstm_transformer_ae.4} parent=0 // pred_check
    _
  $region3: #{lstm_transformer_ae.4} parent=0 // pred_check_branch
    %19 = sbr.rel (0) target = $region5
  $region4: #{lstm_transformer_ae.4} parent=0 // pred_region
    _
  $region5: #{lstm_transformer_ae.4} parent=0 // pred_fallthru
    _
  // Predicated region
  $region6: #{lstm_transformer_ae.4} parent=0 // pred_check
    _
  $region7: #{lstm_transformer_ae.4} parent=0 // pred_check_branch
    %21 = sbr.rel (0) target = $region9
  $region8: #{lstm_transformer_ae.4} parent=0 // pred_region
    _
  $region9: #{lstm_transformer_ae.4} parent=0 // pred_fallthru
    _
  // Predicated region
  $region10: #{lstm_transformer_ae.4} parent=0 // pred_check
    _
  $region11: #{lstm_transformer_ae.4} parent=0 // pred_check_branch
    %23 = sbr.rel (0) target = $region13
  $region12: #{lstm_transformer_ae.4} parent=0 // pred_region
    _
  $region13: #{lstm_transformer_ae.4} parent=0 // pred_fallthru
    _
  // Predicated region
  $region14: #{lstm_transformer_ae.4} parent=0 // pred_check
    _
  $region15: #{lstm_transformer_ae.4} parent=0 // pred_check_branch
    %25 = sbr.rel (0) target = $region17
  $region16: #{lstm_transformer_ae.4} parent=0 // pred_region
    _
  $region17: #{lstm_transformer_ae.4} parent=0 // pred_fallthru
    _
  // Predicated region
  $region18: #{lstm_transformer_ae.4} parent=0 // pred_check
    _
  $region19: #{lstm_transformer_ae.4} parent=0 // pred_check_branch
    %27 = sbr.rel (0) target = $region21
  $region20: #{lstm_transformer_ae.4} parent=0 // pred_region
    _
  $region21: #{lstm_transformer_ae.4} parent=0 // pred_fallthru
    _
  // Predicated region
  $region22: #{lstm_transformer_ae.4} parent=0 // pred_check
    _
  $region23: #{lstm_transformer_ae.4} parent=0 // pred_check_branch
    %29 = sbr.rel (0) target = $region25
  $region24: #{lstm_transformer_ae.4} parent=0 // pred_region
    _
  $region25: #{lstm_transformer_ae.4} parent=0 // pred_fallthru
    _
  // Predicated region
  $region26: #{lstm_transformer_ae.4} parent=0 // pred_check
    _
  $region27: #{lstm_transformer_ae.4} parent=0 // pred_check_branch
    %31 = sbr.rel (0) target = $region29
  $region28: #{lstm_transformer_ae.4} parent=0 // pred_region
    _
  $region29: #{lstm_transformer_ae.4} parent=0 // pred_fallthru
    _
  // Predicated region
  $region30: #{lstm_transformer_ae.4} parent=0 // pred_check
    _
  $region31: #{lstm_transformer_ae.4} parent=0 // pred_check_branch
    %33 = sbr.rel (0) target = $region33
  $region32: #{lstm_transformer_ae.4} parent=0 // pred_region
    _
  $region33: #{lstm_transformer_ae.4} parent=0 // pred_fallthru
    _
  // Predicated region
  $region34: #{lstm_transformer_ae.4} parent=0 // pred_check
    _
  $region35: #{lstm_transformer_ae.4} parent=0 // pred_check_branch
    %35 = sbr.rel (0) target = $region37
  $region36: #{lstm_transformer_ae.4} parent=0 // pred_region
    _
  $region37: #{lstm_transformer_ae.4} parent=0 // pred_fallthru
    _
  // Predicated region
  $region38: #{lstm_transformer_ae.4} parent=0 // pred_check
    _
  $region39: #{lstm_transformer_ae.4} parent=0 // pred_check_branch
    %37 = sbr.rel (0) target = $region41
  $region40: #{lstm_transformer_ae.4} parent=0 // pred_region
    _
  $region41: #{lstm_transformer_ae.4} parent=0 // pred_fallthru
    _
  // Predicated region
  $region42: #{lstm_transformer_ae.4} parent=0 // pred_check
    _
  $region43: #{lstm_transformer_ae.4} parent=0 // pred_check_branch
    %39 = sbr.rel (0) target = $region45
  $region44: #{lstm_transformer_ae.4} parent=0 // pred_region
    _
  $region45: #{lstm_transformer_ae.4} parent=0 // pred_fallthru
    _
  // Predicated region
  $region46: #{lstm_transformer_ae.4} parent=0 // pred_check
    _
  $region47: #{lstm_transformer_ae.4} parent=0 // pred_check_branch
    %41 = sbr.rel (0) target = $region49
  $region48: #{lstm_transformer_ae.4} parent=0 // pred_region
    _
  $region49: #{lstm_transformer_ae.4} parent=0 // pred_fallthru
    _
  // Predicated region
  $region50: #{lstm_transformer_ae.4} parent=0 // pred_check
    _
  $region51: #{lstm_transformer_ae.4} parent=0 // pred_check_branch
    %43 = sbr.rel (0) target = $region53
  $region52: #{lstm_transformer_ae.4} parent=0 // pred_region
    _
  $region53: #{lstm_transformer_ae.4} parent=0 // pred_fallthru
    _
  %v45 = vld [vmem:[%s0] sm:$0xff]
  %v46 = vld [vmem:[%s0 + $0x8] sm:$0xff]
  %v47 = vpack.c.bf16 %v46, %v45
  %v48 = vld [vmem:[%s1] sm:$0xf]
  %v49 = vld [vmem:[%s1 + $0x4] sm:$0xf]
  %v50 = vld [vmem:[%s1 + $0x8] sm:$0xf]
  %v51 = vld [vmem:[%s1 + $0xc] sm:$0xf]
  %v52 = vld [vmem:[%s2] sm:$0x1]
  %v54 = vlaneseq
  %v55 = vshrl.u32 %v54, 7
  %v56 = vsub.s32 0, %v55
  %v57 = vrot.slane %v52, %v56
  %v63 = vunpack.c.l.b16 %v48
  %v64 = vunpack.c.l.b16 %v49
  %v65 = vunpack.c.l.b16 %v50
  %v66 = vunpack.c.l.b16 %v51
  %v67 = vpack.c.b16 %v64, %v63
  %v68 = vpack.c.b16 %v66, %v65
  %vm71 = vcmask 261120
  %v73 = vsel %vm71, %v47, 0
  %75 = vmatprep.subr.bf16.mxu0 0
  %76 = vmatpush1.bf16.msra.mxu0 %v67
  %77 = vmatprep.subr.bf16.mxu0 0
  %78 = vmatpush1.bf16.msra.mxu0 %v68
  %79 = vmatprep.subr.bf16.mxu0 0
  %80 = vmatpush1.bf16.msra.mxu0 0
  %81 = vmatprep.subr.bf16.mxu0 0
  %82 = vmatpush1.bf16.msra.mxu0 0
  %83 = vmatprep.subr.bf16.mxu0 0
  %84 = vmatpush1.bf16.msra.mxu0 0
  %85 = vmatprep.subr.bf16.mxu0 0
  %86 = vmatpush1.bf16.msra.mxu0 0
  %87 = vmatprep.subr.bf16.mxu0 0
  %88 = vmatpush1.bf16.msra.mxu0 0
  %89 = vmatprep.subr.bf16.mxu0 0
  %90 = vmatpush1.bf16.msra.mxu0 0
  %91 = vmatprep.subr.bf16.mxu0 0
  %92 = vmatpush1.bf16.msra.mxu0 0
  %93 = vmatprep.subr.bf16.mxu0 0
  %94 = vmatpush1.bf16.msra.mxu0 0
  %95 = vmatprep.subr.bf16.mxu0 0
  %96 = vmatpush1.bf16.msra.mxu0 0
  %97 = vmatprep.subr.bf16.mxu0 0
  %98 = vmatpush1.bf16.msra.mxu0 0
  %99 = vmatprep.subr.bf16.mxu0 0
  %100 = vmatpush1.bf16.msra.mxu0 0
  %101 = vmatprep.subr.bf16.mxu0 0
  %102 = vmatpush1.bf16.msra.mxu0 0
  %103 = vmatprep.subr.bf16.mxu0 0
  %104 = vmatpush1.bf16.msra.mxu0 0
  %105 = vmatprep.subr.bf16.mxu0 0
  %106 = vmatpush1.bf16.msra.mxu0 0
  %107 = vmatprep.mubr.bf16.mxu0 0
  %108 = vmatmul.mubr.bf16.gmra.mrb[0].mxu0 %v73
  %v109 = vpop.f32.mrb[0].mxu0
  %v110 = vadd.f32 %v57, %v109
  %v111 = vpop.f32.mrb[0].mxu0
  %v112 = vpop.f32.mrb[0].mxu0
  %v113 = vadd.f32 %v57, %v112
  %v114 = vpop.f32.mrb[0].mxu0
  %115 = vdwg.mxu0
  %v116 = vmul.f32 %v110, 0.25
  %v117 = vmul.f32 %v113, 0.25
  %119 = vrot.lane.b32.xlu0 %v110, 96
  %v120 = vpop.permute.xlu0 %119
  %vm121 = vcmask 130048
  %v123 = vsel %vm121, %v116, 0
  %v125 = vsel %vm121, %v120, 0
  %127 = vmatprep.subr.mxu0 0.0
  %128 = vmatpush1.xpose.msra.mxu0 %v125
  %129 = vmatprep.subr.mxu0 0.0
  %130 = vmatpush1.xpose.msra.mxu0 0.0
  %131 = vmatprep.subr.mxu0 0.0
  %132 = vmatpush1.xpose.msra.mxu0 0.0
  %133 = vmatprep.subr.mxu0 0.0
  %134 = vmatpush1.xpose.msra.mxu0 0.0
  %135 = vmatprep.subr.mxu0 0.0
  %136 = vmatpush1.xpose.msra.mxu0 0.0
  %137 = vmatprep.subr.mxu0 0.0
  %138 = vmatpush1.xpose.msra.mxu0 0.0
  %139 = vmatprep.subr.mxu0 0.0
  %140 = vmatpush1.xpose.msra.mxu0 0.0
  %141 = vmatprep.subr.mxu0 0.0
  %142 = vmatpush1.xpose.msra.mxu0 0.0
  %143 = vmatprep.subr.mxu0 0.0
  %144 = vmatpush1.xpose.msra.mxu0 0.0
  %145 = vmatprep.subr.mxu0 0.0
  %146 = vmatpush1.xpose.msra.mxu0 0.0
  %147 = vmatprep.subr.mxu0 0.0
  %148 = vmatpush1.xpose.msra.mxu0 0.0
  %149 = vmatprep.subr.mxu0 0.0
  %150 = vmatpush1.xpose.msra.mxu0 0.0
  %151 = vmatprep.subr.mxu0 0.0
  %152 = vmatpush1.xpose.msra.mxu0 0.0
  %153 = vmatprep.subr.mxu0 0.0
  %154 = vmatpush1.xpose.msra.mxu0 0.0
  %155 = vmatprep.subr.mxu0 0.0
  %156 = vmatpush1.xpose.msra.mxu0 0.0
  %157 = vmatprep.subr.mxu0 0.0
  %158 = vmatpush1.xpose.msra.mxu0 0.0
  %159 = vmatprep.subr.mxu0 0.0
  %160 = vmatpush1.xpose.msra.mxu0 0.0
  %161 = vmatprep.subr.mxu0 0.0
  %162 = vmatpush1.xpose.msra.mxu0 0.0
  %163 = vmatprep.subr.mxu0 0.0
  %164 = vmatpush1.xpose.msra.mxu0 0.0
  %165 = vmatprep.subr.mxu0 0.0
  %166 = vmatpush1.xpose.msra.mxu0 0.0
  %167 = vmatprep.subr.mxu0 0.0
  %168 = vmatpush1.xpose.msra.mxu0 0.0
  %169 = vmatprep.subr.mxu0 0.0
  %170 = vmatpush1.xpose.msra.mxu0 0.0
  %171 = vmatprep.subr.mxu0 0.0
  %172 = vmatpush1.xpose.msra.mxu0 0.0
  %173 = vmatprep.subr.mxu0 0.0
  %174 = vmatpush1.xpose.msra.mxu0 0.0
  %175 = vmatprep.subr.mxu0 0.0
  %176 = vmatpush1.xpose.msra.mxu0 0.0
  %177 = vmatprep.subr.mxu0 0.0
  %178 = vmatpush1.xpose.msra.mxu0 0.0
  %179 = vmatprep.subr.mxu0 0.0
  %180 = vmatpush1.xpose.msra.mxu0 0.0
  %181 = vmatprep.subr.mxu0 0.0
  %182 = vmatpush1.xpose.msra.mxu0 0.0
  %183 = vmatprep.subr.mxu0 0.0
  %184 = vmatpush1.xpose.msra.mxu0 0.0
  %185 = vmatprep.subr.mxu0 0.0
  %186 = vmatpush1.xpose.msra.mxu0 0.0
  %187 = vmatprep.subr.mxu0 0.0
  %188 = vmatpush1.xpose.msra.mxu0 0.0
  %189 = vmatprep.subr.mxu0 0.0
  %190 = vmatpush1.xpose.msra.mxu0 0.0
  %191 = vmatprep.mubr.f32.mxu0 0.0
  %192 = vmatmul.mubr.f32.gmra.mrb[0].mxu0 %v123
  %v193 = vpop.f32.mrb[0].mxu0
  %v194 = vadd.f32 0.0, %v193
  %v195 = vpop.f32.mrb[0].mxu0
  %196 = vdwg.mxu0
  %198 = vrot.lane.b32.xlu0 %v113, 96
  %v199 = vpop.permute.xlu0 %198
  %v201 = vsel %vm121, %v117, 0
  %v203 = vsel %vm121, %v199, 0
  %205 = vmatprep.subr.mxu0 0.0
  %206 = vmatpush1.xpose.msra.mxu0 %v203
  %207 = vmatprep.subr.mxu0 0.0
  %208 = vmatpush1.xpose.msra.mxu0 0.0
  %209 = vmatprep.subr.mxu0 0.0
  %210 = vmatpush1.xpose.msra.mxu0 0.0
  %211 = vmatprep.subr.mxu0 0.0
  %212 = vmatpush1.xpose.msra.mxu0 0.0
  %213 = vmatprep.subr.mxu0 0.0
  %214 = vmatpush1.xpose.msra.mxu0 0.0
  %215 = vmatprep.subr.mxu0 0.0
  %216 = vmatpush1.xpose.msra.mxu0 0.0
  %217 = vmatprep.subr.mxu0 0.0
  %218 = vmatpush1.xpose.msra.mxu0 0.0
  %219 = vmatprep.subr.mxu0 0.0
  %220 = vmatpush1.xpose.msra.mxu0 0.0
  %221 = vmatprep.subr.mxu0 0.0
  %222 = vmatpush1.xpose.msra.mxu0 0.0
  %223 = vmatprep.subr.mxu0 0.0
  %224 = vmatpush1.xpose.msra.mxu0 0.0
  %225 = vmatprep.subr.mxu0 0.0
  %226 = vmatpush1.xpose.msra.mxu0 0.0
  %227 = vmatprep.subr.mxu0 0.0
  %228 = vmatpush1.xpose.msra.mxu0 0.0
  %229 = vmatprep.subr.mxu0 0.0
  %230 = vmatpush1.xpose.msra.mxu0 0.0
  %231 = vmatprep.subr.mxu0 0.0
  %232 = vmatpush1.xpose.msra.mxu0 0.0
  %233 = vmatprep.subr.mxu0 0.0
  %234 = vmatpush1.xpose.msra.mxu0 0.0
  %235 = vmatprep.subr.mxu0 0.0
  %236 = vmatpush1.xpose.msra.mxu0 0.0
  %237 = vmatprep.subr.mxu0 0.0
  %238 = vmatpush1.xpose.msra.mxu0 0.0
  %239 = vmatprep.subr.mxu0 0.0
  %240 = vmatpush1.xpose.msra.mxu0 0.0
  %241 = vmatprep.subr.mxu0 0.0
  %242 = vmatpush1.xpose.msra.mxu0 0.0
  %243 = vmatprep.subr.mxu0 0.0
  %244 = vmatpush1.xpose.msra.mxu0 0.0
  %245 = vmatprep.subr.mxu0 0.0
  %246 = vmatpush1.xpose.msra.mxu0 0.0
  %247 = vmatprep.subr.mxu0 0.0
  %248 = vmatpush1.xpose.msra.mxu0 0.0
  %249 = vmatprep.subr.mxu0 0.0
  %250 = vmatpush1.xpose.msra.mxu0 0.0
  %251 = vmatprep.subr.mxu0 0.0
  %252 = vmatpush1.xpose.msra.mxu0 0.0
  %253 = vmatprep.subr.mxu0 0.0
  %254 = vmatpush1.xpose.msra.mxu0 0.0
  %255 = vmatprep.subr.mxu0 0.0
  %256 = vmatpush1.xpose.msra.mxu0 0.0
  %257 = vmatprep.subr.mxu0 0.0
  %258 = vmatpush1.xpose.msra.mxu0 0.0
  %259 = vmatprep.subr.mxu0 0.0
  %260 = vmatpush1.xpose.msra.mxu0 0.0
  %261 = vmatprep.subr.mxu0 0.0
  %262 = vmatpush1.xpose.msra.mxu0 0.0
  %263 = vmatprep.subr.mxu0 0.0
  %264 = vmatpush1.xpose.msra.mxu0 0.0
  %265 = vmatprep.subr.mxu0 0.0
  %266 = vmatpush1.xpose.msra.mxu0 0.0
  %267 = vmatprep.subr.mxu0 0.0
  %268 = vmatpush1.xpose.msra.mxu0 0.0
  %269 = vmatprep.mubr.f32.mxu0 0.0
  %270 = vmatmul.mubr.f32.gmra.mrb[0].mxu0 %v201
  %v271 = vpop.f32.mrb[0].mxu0
  %v272 = vadd.f32 0.0, %v271
  %v273 = vpop.f32.mrb[0].mxu0
  %274 = vdwg.mxu0
  %vm275 = vcmask 64512
  %v276 = vsel %vm275, %v194, -inf
  %277 = vmax.xlane.f32.xlu0 %v276
  %v278 = vpop.xlane.xlu0 %277
  %v279 = vsel %vm275, %v272, -inf
  %280 = vmax.xlane.f32.xlu0 %v279
  %v281 = vpop.xlane.xlu0 %280
  %v282 = vsub.f32 %v194, %v278
  %v283 = vsub.f32 %v272, %v281
  %v284 = vmul.f32 %v282, 1.442695
  %v285 = vpow.pop %v284
  %v286 = vmul.f32 %v283, 1.442695
  %v287 = vpow.pop %v286
  %v288 = vsel %vm275, %v285, 0.0
  %289 = vadd.xlane.f32.xlu0 %v288
  %v290 = vpop.xlane.xlu0 %289
  %v291 = vsel %vm275, %v287, 0.0
  %292 = vadd.xlane.f32.xlu0 %v291
  %v293 = vpop.xlane.xlu0 %292
  %v294 = vrcp.pop %v290
  %v295 = vmul.f32 %v285, %v294
  %v296 = vrcp.pop %v293
  %v297 = vmul.f32 %v287, %v296
  %298 = vrot.lane.b32.xlu0 %v110, 64
  %v299 = vpop.permute.xlu0 %298
  %v302 = vsel %vm275, %v295, 0
  %304 = vmatprep.subr.mxu0 0.0
  %305 = vmatpush1.msra.mxu0 %v299
  %306 = vmatprep.subr.mxu0 0.0
  %307 = vmatpush1.msra.mxu0 0.0
  %308 = vmatprep.subr.mxu0 0.0
  %309 = vmatpush1.msra.mxu0 0.0
  %310 = vmatprep.subr.mxu0 0.0
  %311 = vmatpush1.msra.mxu0 0.0
  %312 = vmatprep.subr.mxu0 0.0
  %313 = vmatpush1.msra.mxu0 0.0
  %314 = vmatprep.subr.mxu0 0.0
  %315 = vmatpush1.msra.mxu0 0.0
  %316 = vmatprep.subr.mxu0 0.0
  %317 = vmatpush1.msra.mxu0 0.0
  %318 = vmatprep.subr.mxu0 0.0
  %319 = vmatpush1.msra.mxu0 0.0
  %320 = vmatprep.subr.mxu0 0.0
  %321 = vmatpush1.msra.mxu0 0.0
  %322 = vmatprep.subr.mxu0 0.0
  %323 = vmatpush1.msra.mxu0 0.0
  %324 = vmatprep.subr.mxu0 0.0
  %325 = vmatpush1.msra.mxu0 0.0
  %326 = vmatprep.subr.mxu0 0.0
  %327 = vmatpush1.msra.mxu0 0.0
  %328 = vmatprep.subr.mxu0 0.0
  %329 = vmatpush1.msra.mxu0 0.0
  %330 = vmatprep.subr.mxu0 0.0
  %331 = vmatpush1.msra.mxu0 0.0
  %332 = vmatprep.subr.mxu0 0.0
  %333 = vmatpush1.msra.mxu0 0.0
  %334 = vmatprep.subr.mxu0 0.0
  %335 = vmatpush1.msra.mxu0 0.0
  %336 = vmatprep.subr.mxu0 0.0
  %337 = vmatpush1.msra.mxu0 0.0
  %338 = vmatprep.subr.mxu0 0.0
  %339 = vmatpush1.msra.mxu0 0.0
  %340 = vmatprep.subr.mxu0 0.0
  %341 = vmatpush1.msra.mxu0 0.0
  %342 = vmatprep.subr.mxu0 0.0
  %343 = vmatpush1.msra.mxu0 0.0
  %344 = vmatprep.subr.mxu0 0.0
  %345 = vmatpush1.msra.mxu0 0.0
  %346 = vmatprep.subr.mxu0 0.0
  %347 = vmatpush1.msra.mxu0 0.0
  %348 = vmatprep.subr.mxu0 0.0
  %349 = vmatpush1.msra.mxu0 0.0
  %350 = vmatprep.subr.mxu0 0.0
  %351 = vmatpush1.msra.mxu0 0.0
  %352 = vmatprep.subr.mxu0 0.0
  %353 = vmatpush1.msra.mxu0 0.0
  %354 = vmatprep.subr.mxu0 0.0
  %355 = vmatpush1.msra.mxu0 0.0
  %356 = vmatprep.subr.mxu0 0.0
  %357 = vmatpush1.msra.mxu0 0.0
  %358 = vmatprep.subr.mxu0 0.0
  %359 = vmatpush1.msra.mxu0 0.0
  %360 = vmatprep.subr.mxu0 0.0
  %361 = vmatpush1.msra.mxu0 0.0
  %362 = vmatprep.subr.mxu0 0.0
  %363 = vmatpush1.msra.mxu0 0.0
  %364 = vmatprep.subr.mxu0 0.0
  %365 = vmatpush1.msra.mxu0 0.0
  %366 = vmatprep.subr.mxu0 0.0
  %367 = vmatpush1.msra.mxu0 0.0
  %368 = vmatprep.mubr.f32.mxu0 0.0
  %369 = vmatmul.mubr.f32.gmra.mrb[0].mxu0 %v302
  %v370 = vpop.f32.mrb[0].mxu0
  %v371 = vadd.f32 0.0, %v370
  %v372 = vpop.f32.mrb[0].mxu0
  %373 = vdwg.mxu0
  %374 = vrot.lane.b32.xlu0 %v113, 64
  %v375 = vpop.permute.xlu0 %374
  %v378 = vsel %vm275, %v297, 0
  %380 = vmatprep.subr.mxu0 0.0
  %381 = vmatpush1.msra.mxu0 %v375
  %382 = vmatprep.subr.mxu0 0.0
  %383 = vmatpush1.msra.mxu0 0.0
  %384 = vmatprep.subr.mxu0 0.0
  %385 = vmatpush1.msra.mxu0 0.0
  %386 = vmatprep.subr.mxu0 0.0
  %387 = vmatpush1.msra.mxu0 0.0
  %388 = vmatprep.subr.mxu0 0.0
  %389 = vmatpush1.msra.mxu0 0.0
  %390 = vmatprep.subr.mxu0 0.0
  %391 = vmatpush1.msra.mxu0 0.0
  %392 = vmatprep.subr.mxu0 0.0
  %393 = vmatpush1.msra.mxu0 0.0
  %394 = vmatprep.subr.mxu0 0.0
  %395 = vmatpush1.msra.mxu0 0.0
  %396 = vmatprep.subr.mxu0 0.0
  %397 = vmatpush1.msra.mxu0 0.0
  %398 = vmatprep.subr.mxu0 0.0
  %399 = vmatpush1.msra.mxu0 0.0
  %400 = vmatprep.subr.mxu0 0.0
  %401 = vmatpush1.msra.mxu0 0.0
  %402 = vmatprep.subr.mxu0 0.0
  %403 = vmatpush1.msra.mxu0 0.0
  %404 = vmatprep.subr.mxu0 0.0
  %405 = vmatpush1.msra.mxu0 0.0
  %406 = vmatprep.subr.mxu0 0.0
  %407 = vmatpush1.msra.mxu0 0.0
  %408 = vmatprep.subr.mxu0 0.0
  %409 = vmatpush1.msra.mxu0 0.0
  %410 = vmatprep.subr.mxu0 0.0
  %411 = vmatpush1.msra.mxu0 0.0
  %412 = vmatprep.subr.mxu0 0.0
  %413 = vmatpush1.msra.mxu0 0.0
  %414 = vmatprep.subr.mxu0 0.0
  %415 = vmatpush1.msra.mxu0 0.0
  %416 = vmatprep.subr.mxu0 0.0
  %417 = vmatpush1.msra.mxu0 0.0
  %418 = vmatprep.subr.mxu0 0.0
  %419 = vmatpush1.msra.mxu0 0.0
  %420 = vmatprep.subr.mxu0 0.0
  %421 = vmatpush1.msra.mxu0 0.0
  %422 = vmatprep.subr.mxu0 0.0
  %423 = vmatpush1.msra.mxu0 0.0
  %424 = vmatprep.subr.mxu0 0.0
  %425 = vmatpush1.msra.mxu0 0.0
  %426 = vmatprep.subr.mxu0 0.0
  %427 = vmatpush1.msra.mxu0 0.0
  %428 = vmatprep.subr.mxu0 0.0
  %429 = vmatpush1.msra.mxu0 0.0
  %430 = vmatprep.subr.mxu0 0.0
  %431 = vmatpush1.msra.mxu0 0.0
  %432 = vmatprep.subr.mxu0 0.0
  %433 = vmatpush1.msra.mxu0 0.0
  %434 = vmatprep.subr.mxu0 0.0
  %435 = vmatpush1.msra.mxu0 0.0
  %436 = vmatprep.subr.mxu0 0.0
  %437 = vmatpush1.msra.mxu0 0.0
  %438 = vmatprep.subr.mxu0 0.0
  %439 = vmatpush1.msra.mxu0 0.0
  %440 = vmatprep.subr.mxu0 0.0
  %441 = vmatpush1.msra.mxu0 0.0
  %442 = vmatprep.subr.mxu0 0.0
  %443 = vmatpush1.msra.mxu0 0.0
  %444 = vmatprep.mubr.f32.mxu0 0.0
  %445 = vmatmul.mubr.f32.gmra.mrb[0].mxu0 %v378
  %v446 = vpop.f32.mrb[0].mxu0
  %v447 = vadd.f32 0.0, %v446
  %v448 = vpop.f32.mrb[0].mxu0
  %449 = vdwg.mxu0
  %450 = vst.msk [vmem:[#allocation2] sm:$0xff] %vm121, %v371
  %451 = vst.msk [vmem:[#allocation2 + $0x8] sm:$0xff] %vm121, %v447
  %452 = vrot.lane.b32.xlu0 %v116, 112
  %v453 = vpop.permute.xlu0 %452
  %454 = vrot.lane.b32.xlu0 %v110, 80
  %v455 = vpop.permute.xlu0 %454
  %v456 = vsel %vm121, %v453, 0
  %v458 = vsel %vm121, %v455, 0
  %460 = vmatprep.subr.mxu0 0.0
  %461 = vmatpush1.xpose.msra.mxu0 %v458
  %462 = vmatprep.subr.mxu0 0.0
  %463 = vmatpush1.xpose.msra.mxu0 0.0
  %464 = vmatprep.subr.mxu0 0.0
  %465 = vmatpush1.xpose.msra.mxu0 0.0
  %466 = vmatprep.subr.mxu0 0.0
  %467 = vmatpush1.xpose.msra.mxu0 0.0
  %468 = vmatprep.subr.mxu0 0.0
  %469 = vmatpush1.xpose.msra.mxu0 0.0
  %470 = vmatprep.subr.mxu0 0.0
  %471 = vmatpush1.xpose.msra.mxu0 0.0
  %472 = vmatprep.subr.mxu0 0.0
  %473 = vmatpush1.xpose.msra.mxu0 0.0
  %474 = vmatprep.subr.mxu0 0.0
  %475 = vmatpush1.xpose.msra.mxu0 0.0
  %476 = vmatprep.subr.mxu0 0.0
  %477 = vmatpush1.xpose.msra.mxu0 0.0
  %478 = vmatprep.subr.mxu0 0.0
  %479 = vmatpush1.xpose.msra.mxu0 0.0
  %480 = vmatprep.subr.mxu0 0.0
  %481 = vmatpush1.xpose.msra.mxu0 0.0
  %482 = vmatprep.subr.mxu0 0.0
  %483 = vmatpush1.xpose.msra.mxu0 0.0
  %484 = vmatprep.subr.mxu0 0.0
  %485 = vmatpush1.xpose.msra.mxu0 0.0
  %486 = vmatprep.subr.mxu0 0.0
  %487 = vmatpush1.xpose.msra.mxu0 0.0
  %488 = vmatprep.subr.mxu0 0.0
  %489 = vmatpush1.xpose.msra.mxu0 0.0
  %490 = vmatprep.subr.mxu0 0.0
  %491 = vmatpush1.xpose.msra.mxu0 0.0
  %492 = vmatprep.subr.mxu0 0.0
  %493 = vmatpush1.xpose.msra.mxu0 0.0
  %494 = vmatprep.subr.mxu0 0.0
  %495 = vmatpush1.xpose.msra.mxu0 0.0
  %496 = vmatprep.subr.mxu0 0.0
  %497 = vmatpush1.xpose.msra.mxu0 0.0
  %498 = vmatprep.subr.mxu0 0.0
  %499 = vmatpush1.xpose.msra.mxu0 0.0
  %500 = vmatprep.subr.mxu0 0.0
  %501 = vmatpush1.xpose.msra.mxu0 0.0
  %502 = vmatprep.subr.mxu0 0.0
  %503 = vmatpush1.xpose.msra.mxu0 0.0
  %504 = vmatprep.subr.mxu0 0.0
  %505 = vmatpush1.xpose.msra.mxu0 0.0
  %506 = vmatprep.subr.mxu0 0.0
  %507 = vmatpush1.xpose.msra.mxu0 0.0
  %508 = vmatprep.subr.mxu0 0.0
  %509 = vmatpush1.xpose.msra.mxu0 0.0
  %510 = vmatprep.subr.mxu0 0.0
  %511 = vmatpush1.xpose.msra.mxu0 0.0
  %512 = vmatprep.subr.mxu0 0.0
  %513 = vmatpush1.xpose.msra.mxu0 0.0
  %514 = vmatprep.subr.mxu0 0.0
  %515 = vmatpush1.xpose.msra.mxu0 0.0
  %516 = vmatprep.subr.mxu0 0.0
  %517 = vmatpush1.xpose.msra.mxu0 0.0
  %518 = vmatprep.subr.mxu0 0.0
  %519 = vmatpush1.xpose.msra.mxu0 0.0
  %520 = vmatprep.subr.mxu0 0.0
  %521 = vmatpush1.xpose.msra.mxu0 0.0
  %522 = vmatprep.subr.mxu0 0.0
  %523 = vmatpush1.xpose.msra.mxu0 0.0
  %524 = vmatprep.mubr.f32.mxu0 0.0
  %525 = vmatmul.mubr.f32.gmra.mrb[0].mxu0 %v456
  %v526 = vpop.f32.mrb[0].mxu0
  %v527 = vadd.f32 0.0, %v526
  %v528 = vpop.f32.mrb[0].mxu0
  %529 = vdwg.mxu0
  %530 = vrot.lane.b32.xlu0 %v117, 112
  %v531 = vpop.permute.xlu0 %530
  %532 = vrot.lane.b32.xlu0 %v113, 80
  %v533 = vpop.permute.xlu0 %532
  %v534 = vsel %vm121, %v531, 0
  %v536 = vsel %vm121, %v533, 0
  %538 = vmatprep.subr.mxu0 0.0
  %539 = vmatpush1.xpose.msra.mxu0 %v536
  %540 = vmatprep.subr.mxu0 0.0
  %541 = vmatpush1.xpose.msra.mxu0 0.0
  %542 = vmatprep.subr.mxu0 0.0
  %543 = vmatpush1.xpose.msra.mxu0 0.0
  %544 = vmatprep.subr.mxu0 0.0
  %545 = vmatpush1.xpose.msra.mxu0 0.0
  %546 = vmatprep.subr.mxu0 0.0
  %547 = vmatpush1.xpose.msra.mxu0 0.0
  %548 = vmatprep.subr.mxu0 0.0
  %549 = vmatpush1.xpose.msra.mxu0 0.0
  %550 = vmatprep.subr.mxu0 0.0
  %551 = vmatpush1.xpose.msra.mxu0 0.0
  %552 = vmatprep.subr.mxu0 0.0
  %553 = vmatpush1.xpose.msra.mxu0 0.0
  %554 = vmatprep.subr.mxu0 0.0
  %555 = vmatpush1.xpose.msra.mxu0 0.0
  %556 = vmatprep.subr.mxu0 0.0
  %557 = vmatpush1.xpose.msra.mxu0 0.0
  %558 = vmatprep.subr.mxu0 0.0
  %559 = vmatpush1.xpose.msra.mxu0 0.0
  %560 = vmatprep.subr.mxu0 0.0
  %561 = vmatpush1.xpose.msra.mxu0 0.0
  %562 = vmatprep.subr.mxu0 0.0
  %563 = vmatpush1.xpose.msra.mxu0 0.0
  %564 = vmatprep.subr.mxu0 0.0
  %565 = vmatpush1.xpose.msra.mxu0 0.0
  %566 = vmatprep.subr.mxu0 0.0
  %567 = vmatpush1.xpose.msra.mxu0 0.0
  %568 = vmatprep.subr.mxu0 0.0
  %569 = vmatpush1.xpose.msra.mxu0 0.0
  %570 = vmatprep.subr.mxu0 0.0
  %571 = vmatpush1.xpose.msra.mxu0 0.0
  %572 = vmatprep.subr.mxu0 0.0
  %573 = vmatpush1.xpose.msra.mxu0 0.0
  %574 = vmatprep.subr.mxu0 0.0
  %575 = vmatpush1.xpose.msra.mxu0 0.0
  %576 = vmatprep.subr.mxu0 0.0
  %577 = vmatpush1.xpose.msra.mxu0 0.0
  %578 = vmatprep.subr.mxu0 0.0
  %579 = vmatpush1.xpose.msra.mxu0 0.0
  %580 = vmatprep.subr.mxu0 0.0
  %581 = vmatpush1.xpose.msra.mxu0 0.0
  %582 = vmatprep.subr.mxu0 0.0
  %583 = vmatpush1.xpose.msra.mxu0 0.0
  %584 = vmatprep.subr.mxu0 0.0
  %585 = vmatpush1.xpose.msra.mxu0 0.0
  %586 = vmatprep.subr.mxu0 0.0
  %587 = vmatpush1.xpose.msra.mxu0 0.0
  %588 = vmatprep.subr.mxu0 0.0
  %589 = vmatpush1.xpose.msra.mxu0 0.0
  %590 = vmatprep.subr.mxu0 0.0
  %591 = vmatpush1.xpose.msra.mxu0 0.0
  %592 = vmatprep.subr.mxu0 0.0
  %593 = vmatpush1.xpose.msra.mxu0 0.0
  %594 = vmatprep.subr.mxu0 0.0
  %595 = vmatpush1.xpose.msra.mxu0 0.0
  %596 = vmatprep.subr.mxu0 0.0
  %597 = vmatpush1.xpose.msra.mxu0 0.0
  %598 = vmatprep.subr.mxu0 0.0
  %599 = vmatpush1.xpose.msra.mxu0 0.0
  %600 = vmatprep.subr.mxu0 0.0
  %601 = vmatpush1.xpose.msra.mxu0 0.0
  %602 = vmatprep.mubr.f32.mxu0 0.0
  %603 = vmatmul.mubr.f32.gmra.mrb[0].mxu0 %v534
  %v604 = vpop.f32.mrb[0].mxu0
  %v605 = vadd.f32 0.0, %v604
  %v606 = vpop.f32.mrb[0].mxu0
  %607 = vdwg.mxu0
  %v608 = vsel %vm275, %v527, -inf
  %609 = vmax.xlane.f32.xlu0 %v608
  %v610 = vpop.xlane.xlu0 %609
  %v611 = vsel %vm275, %v605, -inf
  %612 = vmax.xlane.f32.xlu0 %v611
  %v613 = vpop.xlane.xlu0 %612
  %v614 = vsub.f32 %v527, %v610
  %v615 = vsub.f32 %v605, %v613
  %v616 = vmul.f32 %v614, 1.442695
  %v617 = vpow.pop %v616
  %v618 = vmul.f32 %v615, 1.442695
  %v619 = vpow.pop %v618
  %v620 = vsel %vm275, %v617, 0.0
  %621 = vadd.xlane.f32.xlu0 %v620
  %v622 = vpop.xlane.xlu0 %621
  %v623 = vsel %vm275, %v619, 0.0
  %624 = vadd.xlane.f32.xlu0 %v623
  %v625 = vpop.xlane.xlu0 %624
  %v626 = vrcp.pop %v622
  %v627 = vmul.f32 %v617, %v626
  %v628 = vrcp.pop %v625
  %v629 = vmul.f32 %v619, %v628
  %630 = vrot.lane.b32.xlu0 %v110, 48
  %v631 = vpop.permute.xlu0 %630
  %v634 = vsel %vm275, %v627, 0
  %636 = vmatprep.subr.mxu0 0.0
  %637 = vmatpush1.msra.mxu0 %v631
  %638 = vmatprep.subr.mxu0 0.0
  %639 = vmatpush1.msra.mxu0 0.0
  %640 = vmatprep.subr.mxu0 0.0
  %641 = vmatpush1.msra.mxu0 0.0
  %642 = vmatprep.subr.mxu0 0.0
  %643 = vmatpush1.msra.mxu0 0.0
  %644 = vmatprep.subr.mxu0 0.0
  %645 = vmatpush1.msra.mxu0 0.0
  %646 = vmatprep.subr.mxu0 0.0
  %647 = vmatpush1.msra.mxu0 0.0
  %648 = vmatprep.subr.mxu0 0.0
  %649 = vmatpush1.msra.mxu0 0.0
  %650 = vmatprep.subr.mxu0 0.0
  %651 = vmatpush1.msra.mxu0 0.0
  %652 = vmatprep.subr.mxu0 0.0
  %653 = vmatpush1.msra.mxu0 0.0
  %654 = vmatprep.subr.mxu0 0.0
  %655 = vmatpush1.msra.mxu0 0.0
  %656 = vmatprep.subr.mxu0 0.0
  %657 = vmatpush1.msra.mxu0 0.0
  %658 = vmatprep.subr.mxu0 0.0
  %659 = vmatpush1.msra.mxu0 0.0
  %660 = vmatprep.subr.mxu0 0.0
  %661 = vmatpush1.msra.mxu0 0.0
  %662 = vmatprep.subr.mxu0 0.0
  %663 = vmatpush1.msra.mxu0 0.0
  %664 = vmatprep.subr.mxu0 0.0
  %665 = vmatpush1.msra.mxu0 0.0
  %666 = vmatprep.subr.mxu0 0.0
  %667 = vmatpush1.msra.mxu0 0.0
  %668 = vmatprep.subr.mxu0 0.0
  %669 = vmatpush1.msra.mxu0 0.0
  %670 = vmatprep.subr.mxu0 0.0
  %671 = vmatpush1.msra.mxu0 0.0
  %672 = vmatprep.subr.mxu0 0.0
  %673 = vmatpush1.msra.mxu0 0.0
  %674 = vmatprep.subr.mxu0 0.0
  %675 = vmatpush1.msra.mxu0 0.0
  %676 = vmatprep.subr.mxu0 0.0
  %677 = vmatpush1.msra.mxu0 0.0
  %678 = vmatprep.subr.mxu0 0.0
  %679 = vmatpush1.msra.mxu0 0.0
  %680 = vmatprep.subr.mxu0 0.0
  %681 = vmatpush1.msra.mxu0 0.0
  %682 = vmatprep.subr.mxu0 0.0
  %683 = vmatpush1.msra.mxu0 0.0
  %684 = vmatprep.subr.mxu0 0.0
  %685 = vmatpush1.msra.mxu0 0.0
  %686 = vmatprep.subr.mxu0 0.0
  %687 = vmatpush1.msra.mxu0 0.0
  %688 = vmatprep.subr.mxu0 0.0
  %689 = vmatpush1.msra.mxu0 0.0
  %690 = vmatprep.subr.mxu0 0.0
  %691 = vmatpush1.msra.mxu0 0.0
  %692 = vmatprep.subr.mxu0 0.0
  %693 = vmatpush1.msra.mxu0 0.0
  %694 = vmatprep.subr.mxu0 0.0
  %695 = vmatpush1.msra.mxu0 0.0
  %696 = vmatprep.subr.mxu0 0.0
  %697 = vmatpush1.msra.mxu0 0.0
  %698 = vmatprep.subr.mxu0 0.0
  %699 = vmatpush1.msra.mxu0 0.0
  %700 = vmatprep.mubr.f32.mxu0 0.0
  %701 = vmatmul.mubr.f32.gmra.mrb[0].mxu0 %v634
  %v702 = vpop.f32.mrb[0].mxu0
  %v703 = vadd.f32 0.0, %v702
  %v704 = vpop.f32.mrb[0].mxu0
  %705 = vdwg.mxu0
  %706 = vrot.lane.b32.xlu0 %v113, 48
  %v707 = vpop.permute.xlu0 %706
  %v710 = vsel %vm275, %v629, 0
  %712 = vmatprep.subr.mxu0 0.0
  %713 = vmatpush1.msra.mxu0 %v707
  %714 = vmatprep.subr.mxu0 0.0
  %715 = vmatpush1.msra.mxu0 0.0
  %716 = vmatprep.subr.mxu0 0.0
  %717 = vmatpush1.msra.mxu0 0.0
  %718 = vmatprep.subr.mxu0 0.0
  %719 = vmatpush1.msra.mxu0 0.0
  %720 = vmatprep.subr.mxu0 0.0
  %721 = vmatpush1.msra.mxu0 0.0
  %722 = vmatprep.subr.mxu0 0.0
  %723 = vmatpush1.msra.mxu0 0.0
  %724 = vmatprep.subr.mxu0 0.0
  %725 = vmatpush1.msra.mxu0 0.0
  %726 = vmatprep.subr.mxu0 0.0
  %727 = vmatpush1.msra.mxu0 0.0
  %728 = vmatprep.subr.mxu0 0.0
  %729 = vmatpush1.msra.mxu0 0.0
  %730 = vmatprep.subr.mxu0 0.0
  %731 = vmatpush1.msra.mxu0 0.0
  %732 = vmatprep.subr.mxu0 0.0
  %733 = vmatpush1.msra.mxu0 0.0
  %734 = vmatprep.subr.mxu0 0.0
  %735 = vmatpush1.msra.mxu0 0.0
  %736 = vmatprep.subr.mxu0 0.0
  %737 = vmatpush1.msra.mxu0 0.0
  %738 = vmatprep.subr.mxu0 0.0
  %739 = vmatpush1.msra.mxu0 0.0
  %740 = vmatprep.subr.mxu0 0.0
  %741 = vmatpush1.msra.mxu0 0.0
  %742 = vmatprep.subr.mxu0 0.0
  %743 = vmatpush1.msra.mxu0 0.0
  %744 = vmatprep.subr.mxu0 0.0
  %745 = vmatpush1.msra.mxu0 0.0
  %746 = vmatprep.subr.mxu0 0.0
  %747 = vmatpush1.msra.mxu0 0.0
  %748 = vmatprep.subr.mxu0 0.0
  %749 = vmatpush1.msra.mxu0 0.0
  %750 = vmatprep.subr.mxu0 0.0
  %751 = vmatpush1.msra.mxu0 0.0
  %752 = vmatprep.subr.mxu0 0.0
  %753 = vmatpush1.msra.mxu0 0.0
  %754 = vmatprep.subr.mxu0 0.0
  %755 = vmatpush1.msra.mxu0 0.0
  %756 = vmatprep.subr.mxu0 0.0
  %757 = vmatpush1.msra.mxu0 0.0
  %758 = vmatprep.subr.mxu0 0.0
  %759 = vmatpush1.msra.mxu0 0.0
  %760 = vmatprep.subr.mxu0 0.0
  %761 = vmatpush1.msra.mxu0 0.0
  %762 = vmatprep.subr.mxu0 0.0
  %763 = vmatpush1.msra.mxu0 0.0
  %764 = vmatprep.subr.mxu0 0.0
  %765 = vmatpush1.msra.mxu0 0.0
  %766 = vmatprep.subr.mxu0 0.0
  %767 = vmatpush1.msra.mxu0 0.0
  %768 = vmatprep.subr.mxu0 0.0
  %769 = vmatpush1.msra.mxu0 0.0
  %770 = vmatprep.subr.mxu0 0.0
  %771 = vmatpush1.msra.mxu0 0.0
  %772 = vmatprep.subr.mxu0 0.0
  %773 = vmatpush1.msra.mxu0 0.0
  %774 = vmatprep.subr.mxu0 0.0
  %775 = vmatpush1.msra.mxu0 0.0
  %776 = vmatprep.mubr.f32.mxu0 0.0
  %777 = vmatmul.mubr.f32.gmra.mrb[0].mxu0 %v710
  %v778 = vpop.f32.mrb[0].mxu0
  %v779 = vadd.f32 0.0, %v778
  %v780 = vpop.f32.mrb[0].mxu0
  %781 = vdwg.mxu0
  %784 = vrot.lane.b32.xlu0 %v703, 16
  %v785 = vpop.permute.xlu0 %784
  %786 = vrot.lane.b32.xlu0 %v779, 16
  %v787 = vpop.permute.xlu0 %786
  %vm790 = vcmask 261248
  %791 = vst.msk [vmem:[#allocation2] sm:$0xff] %vm790, %v785
  %792 = vst.msk [vmem:[#allocation2 + $0x8] sm:$0xff] %vm790, %v787
  %v793 = vld [vmem:[#allocation2] sm:$0xff]
  %v794 = vld [vmem:[#allocation2 + $0x8] sm:$0xff]
  %v795 = vpack.c.bf16 %v794, %v793
  %v796 = vld [vmem:[%s3] sm:$0xf]
  %v797 = vld [vmem:[%s3 + $0x4] sm:$0xf]
  %v798 = vld [vmem:[%s3 + $0x8] sm:$0xf]
  %v799 = vld [vmem:[%s3 + $0xc] sm:$0xf]
  %v800 = vld [vmem:[%s4] sm:$0x1]
  %v802 = vlaneseq
  %v803 = vshrl.u32 %v802, 7
  %v804 = vsub.s32 0, %v803
  %v805 = vrot.slane %v800, %v804
  %v811 = vunpack.c.l.b16 %v796
  %v812 = vunpack.c.l.b16 %v797
  %v813 = vunpack.c.l.b16 %v798
  %v814 = vunpack.c.l.b16 %v799
  %v815 = vpack.c.b16 %v812, %v811
  %v816 = vpack.c.b16 %v814, %v813
  %v820 = vsel %vm71, %v795, 0
  %822 = vmatprep.subr.bf16.mxu0 0
  %823 = vmatpush1.bf16.msra.mxu0 %v815
  %824 = vmatprep.subr.bf16.mxu0 0
  %825 = vmatpush1.bf16.msra.mxu0 %v816
  %826 = vmatprep.subr.bf16.mxu0 0
  %827 = vmatpush1.bf16.msra.mxu0 0
  %828 = vmatprep.subr.bf16.mxu0 0
  %829 = vmatpush1.bf16.msra.mxu0 0
  %830 = vmatprep.subr.bf16.mxu0 0
  %831 = vmatpush1.bf16.msra.mxu0 0
  %832 = vmatprep.subr.bf16.mxu0 0
  %833 = vmatpush1.bf16.msra.mxu0 0
  %834 = vmatprep.subr.bf16.mxu0 0
  %835 = vmatpush1.bf16.msra.mxu0 0
  %836 = vmatprep.subr.bf16.mxu0 0
  %837 = vmatpush1.bf16.msra.mxu0 0
  %838 = vmatprep.subr.bf16.mxu0 0
  %839 = vmatpush1.bf16.msra.mxu0 0
  %840 = vmatprep.subr.bf16.mxu0 0
  %841 = vmatpush1.bf16.msra.mxu0 0
  %842 = vmatprep.subr.bf16.mxu0 0
  %843 = vmatpush1.bf16.msra.mxu0 0
  %844 = vmatprep.subr.bf16.mxu0 0
  %845 = vmatpush1.bf16.msra.mxu0 0
  %846 = vmatprep.subr.bf16.mxu0 0
  %847 = vmatpush1.bf16.msra.mxu0 0
  %848 = vmatprep.subr.bf16.mxu0 0
  %849 = vmatpush1.bf16.msra.mxu0 0
  %850 = vmatprep.subr.bf16.mxu0 0
  %851 = vmatpush1.bf16.msra.mxu0 0
  %852 = vmatprep.subr.bf16.mxu0 0
  %853 = vmatpush1.bf16.msra.mxu0 0
  %854 = vmatprep.mubr.bf16.mxu0 0
  %855 = vmatmul.mubr.bf16.gmra.mrb[0].mxu0 %v820
  %v856 = vpop.f32.mrb[0].mxu0
  %v857 = vadd.f32 %v805, %v856
  %v858 = vpop.f32.mrb[0].mxu0
  %v859 = vpop.f32.mrb[0].mxu0
  %v860 = vadd.f32 %v805, %v859
  %v861 = vpop.f32.mrb[0].mxu0
  %862 = vdwg.mxu0
  %v863 = vadd.f32 %v45, %v857
  %v864 = vadd.f32 %v46, %v860
  %v865 = vld [vmem:[%s5] sm:$0x1]
  %v866 = vld [vmem:[%s6] sm:$0x1]
  %v867 = vsel %vm71, %v863, 0.0
  %868 = vadd.xlane.f32.xlu0 %v867
  %v869 = vpop.xlane.xlu0 %868
  %v870 = vsel %vm71, %v864, 0.0
  %871 = vadd.xlane.f32.xlu0 %v870
  %v872 = vpop.xlane.xlu0 %871
  %v873 = vrcp.pop 32.0
  %v874 = vmul.f32 %v869, %v873
  %v875 = vmul.f32 %v872, %v873
  %v876 = vsub.f32 %v863, %v874
  %v877 = vsub.f32 %v864, %v875
  %v878 = vmul.f32 %v876, %v876
  %v879 = vmul.f32 %v877, %v877
  %v880 = vsel %vm71, %v878, 0.0
  %881 = vadd.xlane.f32.xlu0 %v880
  %v882 = vpop.xlane.xlu0 %881
  %v883 = vsel %vm71, %v879, 0.0
  %884 = vadd.xlane.f32.xlu0 %v883
  %v885 = vpop.xlane.xlu0 %884
  %v886 = vmul.f32 %v882, %v873
  %v887 = vmul.f32 %v885, %v873
  %v888 = vadd.f32 %v886, 1e-05
  %v889 = vadd.f32 %v887, 1e-05
  %v890 = vrsqrt.pop %v888
  %v891 = vrsqrt.pop %v889
  %v892 = vmul.f32 %v876, %v890
  %v893 = vmul.f32 %v877, %v891
  %v895 = vlaneseq
  %v896 = vshrl.u32 %v895, 7
  %v897 = vsub.s32 0, %v896
  %v898 = vrot.slane %v865, %v897
  %v900 = vmul.f32 %v892, %v898
  %v901 = vmul.f32 %v893, %v898
  %v903 = vlaneseq
  %v904 = vshrl.u32 %v903, 7
  %v905 = vsub.s32 0, %v904
  %v906 = vrot.slane %v866, %v905
  %v908 = vadd.f32 %v900, %v906
  %v909 = vadd.f32 %v901, %v906
  %v910 = vpack.c.bf16 %v909, %v908
  %v911 = vld [vmem:[%s7] sm:$0xff]
  %v912 = vld [vmem:[%s7 + $0x8] sm:$0xff]
  %v913 = vld [vmem:[%s7 + $0x10] sm:$0xff]
  %v914 = vld [vmem:[%s7 + $0x18] sm:$0xff]
  %v915 = vld [vmem:[%s7 + $0x20] sm:$0xff]
  %v916 = vld [vmem:[%s7 + $0x28] sm:$0xff]
  %v917 = vld [vmem:[%s7 + $0x30] sm:$0xff]
  %v918 = vld [vmem:[%s7 + $0x38] sm:$0xff]
  %v919 = vld [vmem:[%s7 + $0x40] sm:$0xff]
  %v920 = vld [vmem:[%s7 + $0x48] sm:$0xff]
  %v921 = vld [vmem:[%s7 + $0x50] sm:$0xff]
  %v922 = vld [vmem:[%s7 + $0x58] sm:$0xff]
  %v923 = vld [vmem:[%s7 + $0x60] sm:$0xff]
  %v924 = vld [vmem:[%s7 + $0x68] sm:$0xff]
  %v925 = vld [vmem:[%s7 + $0x70] sm:$0xff]
  %v926 = vld [vmem:[%s7 + $0x78] sm:$0xff]
  %v927 = vld [vmem:[%s7 + $0x80] sm:$0xff]
  %v928 = vld [vmem:[%s7 + $0x88] sm:$0xff]
  %v929 = vld [vmem:[%s7 + $0x90] sm:$0xff]
  %v930 = vld [vmem:[%s7 + $0x98] sm:$0xff]
  %v931 = vld [vmem:[%s7 + $0xa0] sm:$0xff]
  %v932 = vld [vmem:[%s7 + $0xa8] sm:$0xff]
  %v933 = vld [vmem:[%s7 + $0xb0] sm:$0xff]
  %v934 = vld [vmem:[%s7 + $0xb8] sm:$0xff]
  %v935 = vld [vmem:[%s7 + $0xc0] sm:$0xff]
  %v936 = vld [vmem:[%s7 + $0xc8] sm:$0xff]
  %v937 = vld [vmem:[%s7 + $0xd0] sm:$0xff]
  %v938 = vld [vmem:[%s7 + $0xd8] sm:$0xff]
  %v939 = vld [vmem:[%s7 + $0xe0] sm:$0xff]
  %v940 = vld [vmem:[%s7 + $0xe8] sm:$0xff]
  %v941 = vld [vmem:[%s7 + $0xf0] sm:$0xff]
  %v942 = vld [vmem:[%s7 + $0xf8] sm:$0xff]
  %v943 = vld [vmem:[%s8] sm:$0xff]
  %v944 = vld [vmem:[%s8 + $0x8] sm:$0xff]
  %v947 = vlaneseq
  %v948 = vshrl.u32 %v947, 7
  %v949 = vsub.s32 0, %v948
  %v950 = vrot.slane %v943, %v949
  %v951 = vlaneseq
  %v952 = vshrl.u32 %v951, 7
  %v953 = vsub.s32 1, %v952
  %v954 = vrot.slane %v943, %v953
  %v955 = vlaneseq
  %v956 = vshrl.u32 %v955, 7
  %v957 = vsub.s32 2, %v956
  %v958 = vrot.slane %v943, %v957
  %v959 = vlaneseq
  %v960 = vshrl.u32 %v959, 7
  %v961 = vsub.s32 3, %v960
  %v962 = vrot.slane %v943, %v961
  %v963 = vlaneseq
  %v964 = vshrl.u32 %v963, 7
  %v965 = vsub.s32 4, %v964
  %v966 = vrot.slane %v943, %v965
  %v967 = vlaneseq
  %v968 = vshrl.u32 %v967, 7
  %v969 = vsub.s32 5, %v968
  %v970 = vrot.slane %v943, %v969
  %v971 = vlaneseq
  %v972 = vshrl.u32 %v971, 7
  %v973 = vsub.s32 6, %v972
  %v974 = vrot.slane %v943, %v973
  %v975 = vlaneseq
  %v976 = vshrl.u32 %v975, 7
  %v977 = vsub.s32 7, %v976
  %v978 = vrot.slane %v943, %v977
  %v979 = vlaneseq
  %v980 = vshrl.u32 %v979, 7
  %v981 = vsub.s32 0, %v980
  %v982 = vrot.slane %v944, %v981
  %v983 = vlaneseq
  %v984 = vshrl.u32 %v983, 7
  %v985 = vsub.s32 1, %v984
  %v986 = vrot.slane %v944, %v985
  %v987 = vlaneseq
  %v988 = vshrl.u32 %v987, 7
  %v989 = vsub.s32 2, %v988
  %v990 = vrot.slane %v944, %v989
  %v991 = vlaneseq
  %v992 = vshrl.u32 %v991, 7
  %v993 = vsub.s32 3, %v992
  %v994 = vrot.slane %v944, %v993
  %v995 = vlaneseq
  %v996 = vshrl.u32 %v995, 7
  %v997 = vsub.s32 4, %v996
  %v998 = vrot.slane %v944, %v997
  %v999 = vlaneseq
  %v1000 = vshrl.u32 %v999, 7
  %v1001 = vsub.s32 5, %v1000
  %v1002 = vrot.slane %v944, %v1001
  %v1003 = vlaneseq
  %v1004 = vshrl.u32 %v1003, 7
  %v1005 = vsub.s32 6, %v1004
  %v1006 = vrot.slane %v944, %v1005
  %v1007 = vlaneseq
  %v1008 = vshrl.u32 %v1007, 7
  %v1009 = vsub.s32 7, %v1008
  %v1010 = vrot.slane %v944, %v1009
  %v1059 = vunpack.c.l.b16 %v911
  %v1060 = vunpack.c.h.b16 %v911
  %v1061 = vunpack.c.l.b16 %v912
  %v1062 = vunpack.c.h.b16 %v912
  %v1063 = vunpack.c.l.b16 %v913
  %v1064 = vunpack.c.h.b16 %v913
  %v1065 = vunpack.c.l.b16 %v914
  %v1066 = vunpack.c.h.b16 %v914
  %v1067 = vunpack.c.l.b16 %v915
  %v1068 = vunpack.c.h.b16 %v915
  %v1069 = vunpack.c.l.b16 %v916
  %v1070 = vunpack.c.h.b16 %v916
  %v1071 = vunpack.c.l.b16 %v917
  %v1072 = vunpack.c.h.b16 %v917
  %v1073 = vunpack.c.l.b16 %v918
  %v1074 = vunpack.c.h.b16 %v918
  %v1075 = vunpack.c.l.b16 %v919
  %v1076 = vunpack.c.h.b16 %v919
  %v1077 = vunpack.c.l.b16 %v920
  %v1078 = vunpack.c.h.b16 %v920
  %v1079 = vunpack.c.l.b16 %v921
  %v1080 = vunpack.c.h.b16 %v921
  %v1081 = vunpack.c.l.b16 %v922
  %v1082 = vunpack.c.h.b16 %v922
  %v1083 = vunpack.c.l.b16 %v923
  %v1084 = vunpack.c.h.b16 %v923
  %v1085 = vunpack.c.l.b16 %v924
  %v1086 = vunpack.c.h.b16 %v924
  %v1087 = vunpack.c.l.b16 %v925
  %v1088 = vunpack.c.h.b16 %v925
  %v1089 = vunpack.c.l.b16 %v926
  %v1090 = vunpack.c.h.b16 %v926
  %v1091 = vunpack.c.l.b16 %v927
  %v1092 = vunpack.c.h.b16 %v927
  %v1093 = vunpack.c.l.b16 %v928
  %v1094 = vunpack.c.h.b16 %v928
  %v1095 = vunpack.c.l.b16 %v929
  %v1096 = vunpack.c.h.b16 %v929
  %v1097 = vunpack.c.l.b16 %v930
  %v1098 = vunpack.c.h.b16 %v930
  %v1099 = vunpack.c.l.b16 %v931
  %v1100 = vunpack.c.h.b16 %v931
  %v1101 = vunpack.c.l.b16 %v932
  %v1102 = vunpack.c.h.b16 %v932
  %v1103 = vunpack.c.l.b16 %v933
  %v1104 = vunpack.c.h.b16 %v933
  %v1105 = vunpack.c.l.b16 %v934
  %v1106 = vunpack.c.h.b16 %v934
  %v1107 = vunpack.c.l.b16 %v935
  %v1108 = vunpack.c.h.b16 %v935
  %v1109 = vunpack.c.l.b16 %v936
  %v1110 = vunpack.c.h.b16 %v936
  %v1111 = vunpack.c.l.b16 %v937
  %v1112 = vunpack.c.h.b16 %v937
  %v1113 = vunpack.c.l.b16 %v938
  %v1114 = vunpack.c.h.b16 %v938
  %v1115 = vunpack.c.l.b16 %v939
  %v1116 = vunpack.c.h.b16 %v939
  %v1117 = vunpack.c.l.b16 %v940
  %v1118 = vunpack.c.h.b16 %v940
  %v1119 = vunpack.c.l.b16 %v941
  %v1120 = vunpack.c.h.b16 %v941
  %v1121 = vunpack.c.l.b16 %v942
  %v1122 = vunpack.c.h.b16 %v942
  %v1123 = vpack.c.b16 %v1075, %v1059
  %v1124 = vpack.c.b16 %v1076, %v1060
  %v1125 = vpack.c.b16 %v1077, %v1061
  %v1126 = vpack.c.b16 %v1078, %v1062
  %v1127 = vpack.c.b16 %v1079, %v1063
  %v1128 = vpack.c.b16 %v1080, %v1064
  %v1129 = vpack.c.b16 %v1081, %v1065
  %v1130 = vpack.c.b16 %v1082, %v1066
  %v1131 = vpack.c.b16 %v1083, %v1067
  %v1132 = vpack.c.b16 %v1084, %v1068
  %v1133 = vpack.c.b16 %v1085, %v1069
  %v1134 = vpack.c.b16 %v1086, %v1070
  %v1135 = vpack.c.b16 %v1087, %v1071
  %v1136 = vpack.c.b16 %v1088, %v1072
  %v1137 = vpack.c.b16 %v1089, %v1073
  %v1138 = vpack.c.b16 %v1090, %v1074
  %v1139 = vpack.c.b16 %v1107, %v1091
  %v1140 = vpack.c.b16 %v1108, %v1092
  %v1141 = vpack.c.b16 %v1109, %v1093
  %v1142 = vpack.c.b16 %v1110, %v1094
  %v1143 = vpack.c.b16 %v1111, %v1095
  %v1144 = vpack.c.b16 %v1112, %v1096
  %v1145 = vpack.c.b16 %v1113, %v1097
  %v1146 = vpack.c.b16 %v1114, %v1098
  %v1147 = vpack.c.b16 %v1115, %v1099
  %v1148 = vpack.c.b16 %v1116, %v1100
  %v1149 = vpack.c.b16 %v1117, %v1101
  %v1150 = vpack.c.b16 %v1118, %v1102
  %v1151 = vpack.c.b16 %v1119, %v1103
  %v1152 = vpack.c.b16 %v1120, %v1104
  %v1153 = vpack.c.b16 %v1121, %v1105
  %v1154 = vpack.c.b16 %v1122, %v1106
  %v1188 = vsel %vm71, %v910, 0
  %1190 = vmatprep.subr.bf16.mxu0 %v1124
  %1191 = vmatpush1.bf16.msra.mxu0 %v1123
  %1192 = vmatprep.subr.bf16.mxu0 %v1140
  %1193 = vmatpush1.bf16.msra.mxu0 %v1139
  %1194 = vmatprep.subr.bf16.mxu0 0
  %1195 = vmatpush1.bf16.msra.mxu0 0
  %1196 = vmatprep.subr.bf16.mxu0 0
  %1197 = vmatpush1.bf16.msra.mxu0 0
  %1198 = vmatprep.subr.bf16.mxu0 0
  %1199 = vmatpush1.bf16.msra.mxu0 0
  %1200 = vmatprep.subr.bf16.mxu0 0
  %1201 = vmatpush1.bf16.msra.mxu0 0
  %1202 = vmatprep.subr.bf16.mxu0 0
  %1203 = vmatpush1.bf16.msra.mxu0 0
  %1204 = vmatprep.subr.bf16.mxu0 0
  %1205 = vmatpush1.bf16.msra.mxu0 0
  %1206 = vmatprep.subr.bf16.mxu0 0
  %1207 = vmatpush1.bf16.msra.mxu0 0
  %1208 = vmatprep.subr.bf16.mxu0 0
  %1209 = vmatpush1.bf16.msra.mxu0 0
  %1210 = vmatprep.subr.bf16.mxu0 0
  %1211 = vmatpush1.bf16.msra.mxu0 0
  %1212 = vmatprep.subr.bf16.mxu0 0
  %1213 = vmatpush1.bf16.msra.mxu0 0
  %1214 = vmatprep.subr.bf16.mxu0 0
  %1215 = vmatpush1.bf16.msra.mxu0 0
  %1216 = vmatprep.subr.bf16.mxu0 0
  %1217 = vmatpush1.bf16.msra.mxu0 0
  %1218 = vmatprep.subr.bf16.mxu0 0
  %1219 = vmatpush1.bf16.msra.mxu0 0
  %1220 = vmatprep.subr.bf16.mxu0 0
  %1221 = vmatpush1.bf16.msra.mxu0 0
  %1222 = vmatprep.mubr.bf16.mxu0 0
  %1223 = vmatmul.mubr.bf16.gmra.mrb[0].mxu0 %v1188
  %v1224 = vpop.f32.mrb[0].mxu0
  %v1225 = vadd.f32 %v950, %v1224
  %v1226 = vpop.f32.mrb[0].mxu0
  %v1227 = vadd.f32 %v954, %v1226
  %v1228 = vpop.f32.mrb[0].mxu0
  %v1229 = vadd.f32 %v950, %v1228
  %v1230 = vpop.f32.mrb[0].mxu0
  %v1231 = vadd.f32 %v954, %v1230
  %1232 = vdwg.mxu0
  %1233 = vmatprep.subr.bf16.mxu0 %v1126
  %1234 = vmatpush1.bf16.msra.mxu0 %v1125
  %1235 = vmatprep.subr.bf16.mxu0 %v1142
  %1236 = vmatpush1.bf16.msra.mxu0 %v1141
  %1237 = vmatprep.subr.bf16.mxu0 0
  %1238 = vmatpush1.bf16.msra.mxu0 0
  %1239 = vmatprep.subr.bf16.mxu0 0
  %1240 = vmatpush1.bf16.msra.mxu0 0
  %1241 = vmatprep.subr.bf16.mxu0 0
  %1242 = vmatpush1.bf16.msra.mxu0 0
  %1243 = vmatprep.subr.bf16.mxu0 0
  %1244 = vmatpush1.bf16.msra.mxu0 0
  %1245 = vmatprep.subr.bf16.mxu0 0
  %1246 = vmatpush1.bf16.msra.mxu0 0
  %1247 = vmatprep.subr.bf16.mxu0 0
  %1248 = vmatpush1.bf16.msra.mxu0 0
  %1249 = vmatprep.subr.bf16.mxu0 0
  %1250 = vmatpush1.bf16.msra.mxu0 0
  %1251 = vmatprep.subr.bf16.mxu0 0
  %1252 = vmatpush1.bf16.msra.mxu0 0
  %1253 = vmatprep.subr.bf16.mxu0 0
  %1254 = vmatpush1.bf16.msra.mxu0 0
  %1255 = vmatprep.subr.bf16.mxu0 0
  %1256 = vmatpush1.bf16.msra.mxu0 0
  %1257 = vmatprep.subr.bf16.mxu0 0
  %1258 = vmatpush1.bf16.msra.mxu0 0
  %1259 = vmatprep.subr.bf16.mxu0 0
  %1260 = vmatpush1.bf16.msra.mxu0 0
  %1261 = vmatprep.subr.bf16.mxu0 0
  %1262 = vmatpush1.bf16.msra.mxu0 0
  %1263 = vmatprep.subr.bf16.mxu0 0
  %1264 = vmatpush1.bf16.msra.mxu0 0
  %1265 = vmatprep.mubr.bf16.mxu0 0
  %1266 = vmatmul.mubr.bf16.gmra.mrb[0].mxu0 %v1188
  %v1267 = vpop.f32.mrb[0].mxu0
  %v1268 = vadd.f32 %v958, %v1267
  %v1269 = vpop.f32.mrb[0].mxu0
  %v1270 = vadd.f32 %v962, %v1269
  %v1271 = vpop.f32.mrb[0].mxu0
  %v1272 = vadd.f32 %v958, %v1271
  %v1273 = vpop.f32.mrb[0].mxu0
  %v1274 = vadd.f32 %v962, %v1273
  %1275 = vdwg.mxu0
  %1276 = vmatprep.subr.bf16.mxu0 %v1128
  %1277 = vmatpush1.bf16.msra.mxu0 %v1127
  %1278 = vmatprep.subr.bf16.mxu0 %v1144
  %1279 = vmatpush1.bf16.msra.mxu0 %v1143
  %1280 = vmatprep.subr.bf16.mxu0 0
  %1281 = vmatpush1.bf16.msra.mxu0 0
  %1282 = vmatprep.subr.bf16.mxu0 0
  %1283 = vmatpush1.bf16.msra.mxu0 0
  %1284 = vmatprep.subr.bf16.mxu0 0
  %1285 = vmatpush1.bf16.msra.mxu0 0
  %1286 = vmatprep.subr.bf16.mxu0 0
  %1287 = vmatpush1.bf16.msra.mxu0 0
  %1288 = vmatprep.subr.bf16.mxu0 0
  %1289 = vmatpush1.bf16.msra.mxu0 0
  %1290 = vmatprep.subr.bf16.mxu0 0
  %1291 = vmatpush1.bf16.msra.mxu0 0
  %1292 = vmatprep.subr.bf16.mxu0 0
  %1293 = vmatpush1.bf16.msra.mxu0 0
  %1294 = vmatprep.subr.bf16.mxu0 0
  %1295 = vmatpush1.bf16.msra.mxu0 0
  %1296 = vmatprep.subr.bf16.mxu0 0
  %1297 = vmatpush1.bf16.msra.mxu0 0
  %1298 = vmatprep.subr.bf16.mxu0 0
  %1299 = vmatpush1.bf16.msra.mxu0 0
  %1300 = vmatprep.subr.bf16.mxu0 0
  %1301 = vmatpush1.bf16.msra.mxu0 0
  %1302 = vmatprep.subr.bf16.mxu0 0
  %1303 = vmatpush1.bf16.msra.mxu0 0
  %1304 = vmatprep.subr.bf16.mxu0 0
  %1305 = vmatpush1.bf16.msra.mxu0 0
  %1306 = vmatprep.subr.bf16.mxu0 0
  %1307 = vmatpush1.bf16.msra.mxu0 0
  %1308 = vmatprep.mubr.bf16.mxu0 0
  %1309 = vmatmul.mubr.bf16.gmra.mrb[0].mxu0 %v1188
  %v1310 = vpop.f32.mrb[0].mxu0
  %v1311 = vadd.f32 %v966, %v1310
  %v1312 = vpop.f32.mrb[0].mxu0
  %v1313 = vadd.f32 %v970, %v1312
  %v1314 = vpop.f32.mrb[0].mxu0
  %v1315 = vadd.f32 %v966, %v1314
  %v1316 = vpop.f32.mrb[0].mxu0
  %v1317 = vadd.f32 %v970, %v1316
  %1318 = vdwg.mxu0
  %1319 = vmatprep.subr.bf16.mxu0 %v1130
  %1320 = vmatpush1.bf16.msra.mxu0 %v1129
  %1321 = vmatprep.subr.bf16.mxu0 %v1146
  %1322 = vmatpush1.bf16.msra.mxu0 %v1145
  %1323 = vmatprep.subr.bf16.mxu0 0
  %1324 = vmatpush1.bf16.msra.mxu0 0
  %1325 = vmatprep.subr.bf16.mxu0 0
  %1326 = vmatpush1.bf16.msra.mxu0 0
  %1327 = vmatprep.subr.bf16.mxu0 0
  %1328 = vmatpush1.bf16.msra.mxu0 0
  %1329 = vmatprep.subr.bf16.mxu0 0
  %1330 = vmatpush1.bf16.msra.mxu0 0
  %1331 = vmatprep.subr.bf16.mxu0 0
  %1332 = vmatpush1.bf16.msra.mxu0 0
  %1333 = vmatprep.subr.bf16.mxu0 0
  %1334 = vmatpush1.bf16.msra.mxu0 0
  %1335 = vmatprep.subr.bf16.mxu0 0
  %1336 = vmatpush1.bf16.msra.mxu0 0
  %1337 = vmatprep.subr.bf16.mxu0 0
  %1338 = vmatpush1.bf16.msra.mxu0 0
  %1339 = vmatprep.subr.bf16.mxu0 0
  %1340 = vmatpush1.bf16.msra.mxu0 0
  %1341 = vmatprep.subr.bf16.mxu0 0
  %1342 = vmatpush1.bf16.msra.mxu0 0
  %1343 = vmatprep.subr.bf16.mxu0 0
  %1344 = vmatpush1.bf16.msra.mxu0 0
  %1345 = vmatprep.subr.bf16.mxu0 0
  %1346 = vmatpush1.bf16.msra.mxu0 0
  %1347 = vmatprep.subr.bf16.mxu0 0
  %1348 = vmatpush1.bf16.msra.mxu0 0
  %1349 = vmatprep.subr.bf16.mxu0 0
  %1350 = vmatpush1.bf16.msra.mxu0 0
  %1351 = vmatprep.mubr.bf16.mxu0 0
  %1352 = vmatmul.mubr.bf16.gmra.mrb[0].mxu0 %v1188
  %v1353 = vpop.f32.mrb[0].mxu0
  %v1354 = vadd.f32 %v974, %v1353
  %v1355 = vpop.f32.mrb[0].mxu0
  %v1356 = vadd.f32 %v978, %v1355
  %v1357 = vpop.f32.mrb[0].mxu0
  %v1358 = vadd.f32 %v974, %v1357
  %v1359 = vpop.f32.mrb[0].mxu0
  %v1360 = vadd.f32 %v978, %v1359
  %1361 = vdwg.mxu0
  %1362 = vmatprep.subr.bf16.mxu0 %v1132
  %1363 = vmatpush1.bf16.msra.mxu0 %v1131
  %1364 = vmatprep.subr.bf16.mxu0 %v1148
  %1365 = vmatpush1.bf16.msra.mxu0 %v1147
  %1366 = vmatprep.subr.bf16.mxu0 0
  %1367 = vmatpush1.bf16.msra.mxu0 0
  %1368 = vmatprep.subr.bf16.mxu0 0
  %1369 = vmatpush1.bf16.msra.mxu0 0
  %1370 = vmatprep.subr.bf16.mxu0 0
  %1371 = vmatpush1.bf16.msra.mxu0 0
  %1372 = vmatprep.subr.bf16.mxu0 0
  %1373 = vmatpush1.bf16.msra.mxu0 0
  %1374 = vmatprep.subr.bf16.mxu0 0
  %1375 = vmatpush1.bf16.msra.mxu0 0
  %1376 = vmatprep.subr.bf16.mxu0 0
  %1377 = vmatpush1.bf16.msra.mxu0 0
  %1378 = vmatprep.subr.bf16.mxu0 0
  %1379 = vmatpush1.bf16.msra.mxu0 0
  %1380 = vmatprep.subr.bf16.mxu0 0
  %1381 = vmatpush1.bf16.msra.mxu0 0
  %1382 = vmatprep.subr.bf16.mxu0 0
  %1383 = vmatpush1.bf16.msra.mxu0 0
  %1384 = vmatprep.subr.bf16.mxu0 0
  %1385 = vmatpush1.bf16.msra.mxu0 0
  %1386 = vmatprep.subr.bf16.mxu0 0
  %1387 = vmatpush1.bf16.msra.mxu0 0
  %1388 = vmatprep.subr.bf16.mxu0 0
  %1389 = vmatpush1.bf16.msra.mxu0 0
  %1390 = vmatprep.subr.bf16.mxu0 0
  %1391 = vmatpush1.bf16.msra.mxu0 0
  %1392 = vmatprep.subr.bf16.mxu0 0
  %1393 = vmatpush1.bf16.msra.mxu0 0
  %1394 = vmatprep.mubr.bf16.mxu0 0
  %1395 = vmatmul.mubr.bf16.gmra.mrb[0].mxu0 %v1188
  %v1396 = vpop.f32.mrb[0].mxu0
  %v1397 = vadd.f32 %v982, %v1396
  %v1398 = vpop.f32.mrb[0].mxu0
  %v1399 = vadd.f32 %v986, %v1398
  %v1400 = vpop.f32.mrb[0].mxu0
  %v1401 = vadd.f32 %v982, %v1400
  %v1402 = vpop.f32.mrb[0].mxu0
  %v1403 = vadd.f32 %v986, %v1402
  %1404 = vdwg.mxu0
  %1405 = vmatprep.subr.bf16.mxu0 %v1134
  %1406 = vmatpush1.bf16.msra.mxu0 %v1133
  %1407 = vmatprep.subr.bf16.mxu0 %v1150
  %1408 = vmatpush1.bf16.msra.mxu0 %v1149
  %1409 = vmatprep.subr.bf16.mxu0 0
  %1410 = vmatpush1.bf16.msra.mxu0 0
  %1411 = vmatprep.subr.bf16.mxu0 0
  %1412 = vmatpush1.bf16.msra.mxu0 0
  %1413 = vmatprep.subr.bf16.mxu0 0
  %1414 = vmatpush1.bf16.msra.mxu0 0
  %1415 = vmatprep.subr.bf16.mxu0 0
  %1416 = vmatpush1.bf16.msra.mxu0 0
  %1417 = vmatprep.subr.bf16.mxu0 0
  %1418 = vmatpush1.bf16.msra.mxu0 0
  %1419 = vmatprep.subr.bf16.mxu0 0
  %1420 = vmatpush1.bf16.msra.mxu0 0
  %1421 = vmatprep.subr.bf16.mxu0 0
  %1422 = vmatpush1.bf16.msra.mxu0 0
  %1423 = vmatprep.subr.bf16.mxu0 0
  %1424 = vmatpush1.bf16.msra.mxu0 0
  %1425 = vmatprep.subr.bf16.mxu0 0
  %1426 = vmatpush1.bf16.msra.mxu0 0
  %1427 = vmatprep.subr.bf16.mxu0 0
  %1428 = vmatpush1.bf16.msra.mxu0 0
  %1429 = vmatprep.subr.bf16.mxu0 0
  %1430 = vmatpush1.bf16.msra.mxu0 0
  %1431 = vmatprep.subr.bf16.mxu0 0
  %1432 = vmatpush1.bf16.msra.mxu0 0
  %1433 = vmatprep.subr.bf16.mxu0 0
  %1434 = vmatpush1.bf16.msra.mxu0 0
  %1435 = vmatprep.subr.bf16.mxu0 0
  %1436 = vmatpush1.bf16.msra.mxu0 0
  %1437 = vmatprep.mubr.bf16.mxu0 0
  %1438 = vmatmul.mubr.bf16.gmra.mrb[0].mxu0 %v1188
  %v1439 = vpop.f32.mrb[0].mxu0
  %v1440 = vadd.f32 %v990, %v1439
  %v1441 = vpop.f32.mrb[0].mxu0
  %v1442 = vadd.f32 %v994, %v1441
  %v1443 = vpop.f32.mrb[0].mxu0
  %v1444 = vadd.f32 %v990, %v1443
  %v1445 = vpop.f32.mrb[0].mxu0
  %v1446 = vadd.f32 %v994, %v1445
  %1447 = vdwg.mxu0
  %1448 = vmatprep.subr.bf16.mxu0 %v1136
  %1449 = vmatpush1.bf16.msra.mxu0 %v1135
  %1450 = vmatprep.subr.bf16.mxu0 %v1152
  %1451 = vmatpush1.bf16.msra.mxu0 %v1151
  %1452 = vmatprep.subr.bf16.mxu0 0
  %1453 = vmatpush1.bf16.msra.mxu0 0
  %1454 = vmatprep.subr.bf16.mxu0 0
  %1455 = vmatpush1.bf16.msra.mxu0 0
  %1456 = vmatprep.subr.bf16.mxu0 0
  %1457 = vmatpush1.bf16.msra.mxu0 0
  %1458 = vmatprep.subr.bf16.mxu0 0
  %1459 = vmatpush1.bf16.msra.mxu0 0
  %1460 = vmatprep.subr.bf16.mxu0 0
  %1461 = vmatpush1.bf16.msra.mxu0 0
  %1462 = vmatprep.subr.bf16.mxu0 0
  %1463 = vmatpush1.bf16.msra.mxu0 0
  %1464 = vmatprep.subr.bf16.mxu0 0
  %1465 = vmatpush1.bf16.msra.mxu0 0
  %1466 = vmatprep.subr.bf16.mxu0 0
  %1467 = vmatpush1.bf16.msra.mxu0 0
  %1468 = vmatprep.subr.bf16.mxu0 0
  %1469 = vmatpush1.bf16.msra.mxu0 0
  %1470 = vmatprep.subr.bf16.mxu0 0
  %1471 = vmatpush1.bf16.msra.mxu0 0
  %1472 = vmatprep.subr.bf16.mxu0 0
  %1473 = vmatpush1.bf16.msra.mxu0 0
  %1474 = vmatprep.subr.bf16.mxu0 0
  %1475 = vmatpush1.bf16.msra.mxu0 0
  %1476 = vmatprep.subr.bf16.mxu0 0
  %1477 = vmatpush1.bf16.msra.mxu0 0
  %1478 = vmatprep.subr.bf16.mxu0 0
  %1479 = vmatpush1.bf16.msra.mxu0 0
  %1480 = vmatprep.mubr.bf16.mxu0 0
  %1481 = vmatmul.mubr.bf16.gmra.mrb[0].mxu0 %v1188
  %v1482 = vpop.f32.mrb[0].mxu0
  %v1483 = vadd.f32 %v998, %v1482
  %v1484 = vpop.f32.mrb[0].mxu0
  %v1485 = vadd.f32 %v1002, %v1484
  %v1486 = vpop.f32.mrb[0].mxu0
  %v1487 = vadd.f32 %v998, %v1486
  %v1488 = vpop.f32.mrb[0].mxu0
  %v1489 = vadd.f32 %v1002, %v1488
  %1490 = vdwg.mxu0
  %1491 = vmatprep.subr.bf16.mxu0 %v1138
  %1492 = vmatpush1.bf16.msra.mxu0 %v1137
  %1493 = vmatprep.subr.bf16.mxu0 %v1154
  %1494 = vmatpush1.bf16.msra.mxu0 %v1153
  %1495 = vmatprep.subr.bf16.mxu0 0
  %1496 = vmatpush1.bf16.msra.mxu0 0
  %1497 = vmatprep.subr.bf16.mxu0 0
  %1498 = vmatpush1.bf16.msra.mxu0 0
  %1499 = vmatprep.subr.bf16.mxu0 0
  %1500 = vmatpush1.bf16.msra.mxu0 0
  %1501 = vmatprep.subr.bf16.mxu0 0
  %1502 = vmatpush1.bf16.msra.mxu0 0
  %1503 = vmatprep.subr.bf16.mxu0 0
  %1504 = vmatpush1.bf16.msra.mxu0 0
  %1505 = vmatprep.subr.bf16.mxu0 0
  %1506 = vmatpush1.bf16.msra.mxu0 0
  %1507 = vmatprep.subr.bf16.mxu0 0
  %1508 = vmatpush1.bf16.msra.mxu0 0
  %1509 = vmatprep.subr.bf16.mxu0 0
  %1510 = vmatpush1.bf16.msra.mxu0 0
  %1511 = vmatprep.subr.bf16.mxu0 0
  %1512 = vmatpush1.bf16.msra.mxu0 0
  %1513 = vmatprep.subr.bf16.mxu0 0
  %1514 = vmatpush1.bf16.msra.mxu0 0
  %1515 = vmatprep.subr.bf16.mxu0 0
  %1516 = vmatpush1.bf16.msra.mxu0 0
  %1517 = vmatprep.subr.bf16.mxu0 0
  %1518 = vmatpush1.bf16.msra.mxu0 0
  %1519 = vmatprep.subr.bf16.mxu0 0
  %1520 = vmatpush1.bf16.msra.mxu0 0
  %1521 = vmatprep.subr.bf16.mxu0 0
  %1522 = vmatpush1.bf16.msra.mxu0 0
  %1523 = vmatprep.mubr.bf16.mxu0 0
  %1524 = vmatmul.mubr.bf16.gmra.mrb[0].mxu0 %v1188
  %v1525 = vpop.f32.mrb[0].mxu0
  %v1526 = vadd.f32 %v1006, %v1525
  %v1527 = vpop.f32.mrb[0].mxu0
  %v1528 = vadd.f32 %v1010, %v1527
  %v1529 = vpop.f32.mrb[0].mxu0
  %v1530 = vadd.f32 %v1006, %v1529
  %v1531 = vpop.f32.mrb[0].mxu0
  %v1532 = vadd.f32 %v1010, %v1531
  %1533 = vdwg.mxu0
  %v1534 = vmax.f32 %v1225, 0.0
  %v1535 = vmax.f32 %v1227, 0.0
  %v1536 = vmax.f32 %v1268, 0.0
  %v1537 = vmax.f32 %v1270, 0.0
  %v1538 = vmax.f32 %v1311, 0.0
  %v1539 = vmax.f32 %v1313, 0.0
  %v1540 = vmax.f32 %v1354, 0.0
  %v1541 = vmax.f32 %v1356, 0.0
  %v1542 = vmax.f32 %v1397, 0.0
  %v1543 = vmax.f32 %v1399, 0.0
  %v1544 = vmax.f32 %v1440, 0.0
  %v1545 = vmax.f32 %v1442, 0.0
  %v1546 = vmax.f32 %v1483, 0.0
  %v1547 = vmax.f32 %v1485, 0.0
  %v1548 = vmax.f32 %v1526, 0.0
  %v1549 = vmax.f32 %v1528, 0.0
  %v1550 = vmax.f32 %v1229, 0.0
  %v1551 = vmax.f32 %v1231, 0.0
  %v1552 = vmax.f32 %v1272, 0.0
  %v1553 = vmax.f32 %v1274, 0.0
  %v1554 = vmax.f32 %v1315, 0.0
  %v1555 = vmax.f32 %v1317, 0.0
  %v1556 = vmax.f32 %v1358, 0.0
  %v1557 = vmax.f32 %v1360, 0.0
  %v1558 = vmax.f32 %v1401, 0.0
  %v1559 = vmax.f32 %v1403, 0.0
  %v1560 = vmax.f32 %v1444, 0.0
  %v1561 = vmax.f32 %v1446, 0.0
  %v1562 = vmax.f32 %v1487, 0.0
  %v1563 = vmax.f32 %v1489, 0.0
  %v1564 = vmax.f32 %v1530, 0.0
  %v1565 = vmax.f32 %v1532, 0.0
  %v1566 = vpack.c.bf16 %v1550, %v1534
  %v1567 = vpack.c.bf16 %v1551, %v1535
  %v1568 = vpack.c.bf16 %v1552, %v1536
  %v1569 = vpack.c.bf16 %v1553, %v1537
  %v1570 = vpack.c.bf16 %v1554, %v1538
  %v1571 = vpack.c.bf16 %v1555, %v1539
  %v1572 = vpack.c.bf16 %v1556, %v1540
  %v1573 = vpack.c.bf16 %v1557, %v1541
  %v1574 = vpack.c.bf16 %v1558, %v1542
  %v1575 = vpack.c.bf16 %v1559, %v1543
  %v1576 = vpack.c.bf16 %v1560, %v1544
  %v1577 = vpack.c.bf16 %v1561, %v1545
  %v1578 = vpack.c.bf16 %v1562, %v1546
  %v1579 = vpack.c.bf16 %v1563, %v1547
  %v1580 = vpack.c.bf16 %v1564, %v1548
  %v1581 = vpack.c.bf16 %v1565, %v1549
  %v1582 = vld [vmem:[%s9] sm:$0xf]
  %v1583 = vld [vmem:[%s9 + $0x4] sm:$0xf]
  %v1584 = vld [vmem:[%s9 + $0x8] sm:$0xf]
  %v1585 = vld [vmem:[%s9 + $0xc] sm:$0xf]
  %v1586 = vld [vmem:[%s9 + $0x10] sm:$0xf]
  %v1587 = vld [vmem:[%s9 + $0x14] sm:$0xf]
  %v1588 = vld [vmem:[%s9 + $0x18] sm:$0xf]
  %v1589 = vld [vmem:[%s9 + $0x1c] sm:$0xf]
  %v1590 = vld [vmem:[%s9 + $0x20] sm:$0xf]
  %v1591 = vld [vmem:[%s9 + $0x24] sm:$0xf]
  %v1592 = vld [vmem:[%s9 + $0x28] sm:$0xf]
  %v1593 = vld [vmem:[%s9 + $0x2c] sm:$0xf]
  %v1594 = vld [vmem:[%s9 + $0x30] sm:$0xf]
  %v1595 = vld [vmem:[%s9 + $0x34] sm:$0xf]
  %v1596 = vld [vmem:[%s9 + $0x38] sm:$0xf]
  %v1597 = vld [vmem:[%s9 + $0x3c] sm:$0xf]
  %v1598 = vld [vmem:[%s9 + $0x40] sm:$0xf]
  %v1599 = vld [vmem:[%s9 + $0x44] sm:$0xf]
  %v1600 = vld [vmem:[%s9 + $0x48] sm:$0xf]
  %v1601 = vld [vmem:[%s9 + $0x4c] sm:$0xf]
  %v1602 = vld [vmem:[%s9 + $0x50] sm:$0xf]
  %v1603 = vld [vmem:[%s9 + $0x54] sm:$0xf]
  %v1604 = vld [vmem:[%s9 + $0x58] sm:$0xf]
  %v1605 = vld [vmem:[%s9 + $0x5c] sm:$0xf]
  %v1606 = vld [vmem:[%s9 + $0x60] sm:$0xf]
  %v1607 = vld [vmem:[%s9 + $0x64] sm:$0xf]
  %v1608 = vld [vmem:[%s9 + $0x68] sm:$0xf]
  %v1609 = vld [vmem:[%s9 + $0x6c] sm:$0xf]
  %v1610 = vld [vmem:[%s9 + $0x70] sm:$0xf]
  %v1611 = vld [vmem:[%s9 + $0x74] sm:$0xf]
  %v1612 = vld [vmem:[%s9 + $0x78] sm:$0xf]
  %v1613 = vld [vmem:[%s9 + $0x7c] sm:$0xf]
  %v1614 = vld [vmem:[%s9 + $0x80] sm:$0xf]
  %v1615 = vld [vmem:[%s9 + $0x84] sm:$0xf]
  %v1616 = vld [vmem:[%s9 + $0x88] sm:$0xf]
  %v1617 = vld [vmem:[%s9 + $0x8c] sm:$0xf]
  %v1618 = vld [vmem:[%s9 + $0x90] sm:$0xf]
  %v1619 = vld [vmem:[%s9 + $0x94] sm:$0xf]
  %v1620 = vld [vmem:[%s9 + $0x98] sm:$0xf]
  %v1621 = vld [vmem:[%s9 + $0x9c] sm:$0xf]
  %v1622 = vld [vmem:[%s9 + $0xa0] sm:$0xf]
  %v1623 = vld [vmem:[%s9 + $0xa4] sm:$0xf]
  %v1624 = vld [vmem:[%s9 + $0xa8] sm:$0xf]
  %v1625 = vld [vmem:[%s9 + $0xac] sm:$0xf]
  %v1626 = vld [vmem:[%s9 + $0xb0] sm:$0xf]
  %v1627 = vld [vmem:[%s9 + $0xb4] sm:$0xf]
  %v1628 = vld [vmem:[%s9 + $0xb8] sm:$0xf]
  %v1629 = vld [vmem:[%s9 + $0xbc] sm:$0xf]
  %v1630 = vld [vmem:[%s9 + $0xc0] sm:$0xf]
  %v1631 = vld [vmem:[%s9 + $0xc4] sm:$0xf]
  %v1632 = vld [vmem:[%s9 + $0xc8] sm:$0xf]
  %v1633 = vld [vmem:[%s9 + $0xcc] sm:$0xf]
  %v1634 = vld [vmem:[%s9 + $0xd0] sm:$0xf]
  %v1635 = vld [vmem:[%s9 + $0xd4] sm:$0xf]
  %v1636 = vld [vmem:[%s9 + $0xd8] sm:$0xf]
  %v1637 = vld [vmem:[%s9 + $0xdc] sm:$0xf]
  %v1638 = vld [vmem:[%s9 + $0xe0] sm:$0xf]
  %v1639 = vld [vmem:[%s9 + $0xe4] sm:$0xf]
  %v1640 = vld [vmem:[%s9 + $0xe8] sm:$0xf]
  %v1641 = vld [vmem:[%s9 + $0xec] sm:$0xf]
  %v1642 = vld [vmem:[%s9 + $0xf0] sm:$0xf]
  %v1643 = vld [vmem:[%s9 + $0xf4] sm:$0xf]
  %v1644 = vld [vmem:[%s9 + $0xf8] sm:$0xf]
  %v1645 = vld [vmem:[%s9 + $0xfc] sm:$0xf]
  %v1646 = vld [vmem:[%s9 + $0x100] sm:$0xf]
  %v1647 = vld [vmem:[%s9 + $0x104] sm:$0xf]
  %v1648 = vld [vmem:[%s9 + $0x108] sm:$0xf]
  %v1649 = vld [vmem:[%s9 + $0x10c] sm:$0xf]
  %v1650 = vld [vmem:[%s9 + $0x110] sm:$0xf]
  %v1651 = vld [vmem:[%s9 + $0x114] sm:$0xf]
  %v1652 = vld [vmem:[%s9 + $0x118] sm:$0xf]
  %v1653 = vld [vmem:[%s9 + $0x11c] sm:$0xf]
  %v1654 = vld [vmem:[%s9 + $0x120] sm:$0xf]
  %v1655 = vld [vmem:[%s9 + $0x124] sm:$0xf]
  %v1656 = vld [vmem:[%s9 + $0x128] sm:$0xf]
  %v1657 = vld [vmem:[%s9 + $0x12c] sm:$0xf]
  %v1658 = vld [vmem:[%s9 + $0x130] sm:$0xf]
  %v1659 = vld [vmem:[%s9 + $0x134] sm:$0xf]
  %v1660 = vld [vmem:[%s9 + $0x138] sm:$0xf]
  %v1661 = vld [vmem:[%s9 + $0x13c] sm:$0xf]
  %v1662 = vld [vmem:[%s9 + $0x140] sm:$0xf]
  %v1663 = vld [vmem:[%s9 + $0x144] sm:$0xf]
  %v1664 = vld [vmem:[%s9 + $0x148] sm:$0xf]
  %v1665 = vld [vmem:[%s9 + $0x14c] sm:$0xf]
  %v1666 = vld [vmem:[%s9 + $0x150] sm:$0xf]
  %v1667 = vld [vmem:[%s9 + $0x154] sm:$0xf]
  %v1668 = vld [vmem:[%s9 + $0x158] sm:$0xf]
  %v1669 = vld [vmem:[%s9 + $0x15c] sm:$0xf]
  %v1670 = vld [vmem:[%s9 + $0x160] sm:$0xf]
  %v1671 = vld [vmem:[%s9 + $0x164] sm:$0xf]
  %v1672 = vld [vmem:[%s9 + $0x168] sm:$0xf]
  %v1673 = vld [vmem:[%s9 + $0x16c] sm:$0xf]
  %v1674 = vld [vmem:[%s9 + $0x170] sm:$0xf]
  %v1675 = vld [vmem:[%s9 + $0x174] sm:$0xf]
  %v1676 = vld [vmem:[%s9 + $0x178] sm:$0xf]
  %v1677 = vld [vmem:[%s9 + $0x17c] sm:$0xf]
  %v1678 = vld [vmem:[%s9 + $0x180] sm:$0xf]
  %v1679 = vld [vmem:[%s9 + $0x184] sm:$0xf]
  %v1680 = vld [vmem:[%s9 + $0x188] sm:$0xf]
  %v1681 = vld [vmem:[%s9 + $0x18c] sm:$0xf]
  %v1682 = vld [vmem:[%s9 + $0x190] sm:$0xf]
  %v1683 = vld [vmem:[%s9 + $0x194] sm:$0xf]
  %v1684 = vld [vmem:[%s9 + $0x198] sm:$0xf]
  %v1685 = vld [vmem:[%s9 + $0x19c] sm:$0xf]
  %v1686 = vld [vmem:[%s9 + $0x1a0] sm:$0xf]
  %v1687 = vld [vmem:[%s9 + $0x1a4] sm:$0xf]
  %v1688 = vld [vmem:[%s9 + $0x1a8] sm:$0xf]
  %v1689 = vld [vmem:[%s9 + $0x1ac] sm:$0xf]
  %v1690 = vld [vmem:[%s9 + $0x1b0] sm:$0xf]
  %v1691 = vld [vmem:[%s9 + $0x1b4] sm:$0xf]
  %v1692 = vld [vmem:[%s9 + $0x1b8] sm:$0xf]
  %v1693 = vld [vmem:[%s9 + $0x1bc] sm:$0xf]
  %v1694 = vld [vmem:[%s9 + $0x1c0] sm:$0xf]
  %v1695 = vld [vmem:[%s9 + $0x1c4] sm:$0xf]
  %v1696 = vld [vmem:[%s9 + $0x1c8] sm:$0xf]
  %v1697 = vld [vmem:[%s9 + $0x1cc] sm:$0xf]
  %v1698 = vld [vmem:[%s9 + $0x1d0] sm:$0xf]
  %v1699 = vld [vmem:[%s9 + $0x1d4] sm:$0xf]
  %v1700 = vld [vmem:[%s9 + $0x1d8] sm:$0xf]
  %v1701 = vld [vmem:[%s9 + $0x1dc] sm:$0xf]
  %v1702 = vld [vmem:[%s9 + $0x1e0] sm:$0xf]
  %v1703 = vld [vmem:[%s9 + $0x1e4] sm:$0xf]
  %v1704 = vld [vmem:[%s9 + $0x1e8] sm:$0xf]
  %v1705 = vld [vmem:[%s9 + $0x1ec] sm:$0xf]
  %v1706 = vld [vmem:[%s9 + $0x1f0] sm:$0xf]
  %v1707 = vld [vmem:[%s9 + $0x1f4] sm:$0xf]
  %v1708 = vld [vmem:[%s9 + $0x1f8] sm:$0xf]
  %v1709 = vld [vmem:[%s9 + $0x1fc] sm:$0xf]
  %v1710 = vld [vmem:[%s9 + $0x200] sm:$0xf]
  %v1711 = vld [vmem:[%s9 + $0x204] sm:$0xf]
  %v1712 = vld [vmem:[%s9 + $0x208] sm:$0xf]
  %v1713 = vld [vmem:[%s9 + $0x20c] sm:$0xf]
  %v1714 = vld [vmem:[%s9 + $0x210] sm:$0xf]
  %v1715 = vld [vmem:[%s9 + $0x214] sm:$0xf]
  %v1716 = vld [vmem:[%s9 + $0x218] sm:$0xf]
  %v1717 = vld [vmem:[%s9 + $0x21c] sm:$0xf]
  %v1718 = vld [vmem:[%s9 + $0x220] sm:$0xf]
  %v1719 = vld [vmem:[%s9 + $0x224] sm:$0xf]
  %v1720 = vld [vmem:[%s9 + $0x228] sm:$0xf]
  %v1721 = vld [vmem:[%s9 + $0x22c] sm:$0xf]
  %v1722 = vld [vmem:[%s9 + $0x230] sm:$0xf]
  %v1723 = vld [vmem:[%s9 + $0x234] sm:$0xf]
  %v1724 = vld [vmem:[%s9 + $0x238] sm:$0xf]
  %v1725 = vld [vmem:[%s9 + $0x23c] sm:$0xf]
  %v1726 = vld [vmem:[%s9 + $0x240] sm:$0xf]
  %v1727 = vld [vmem:[%s9 + $0x244] sm:$0xf]
  %v1728 = vld [vmem:[%s9 + $0x248] sm:$0xf]
  %v1729 = vld [vmem:[%s9 + $0x24c] sm:$0xf]
  %v1730 = vld [vmem:[%s9 + $0x250] sm:$0xf]
  %v1731 = vld [vmem:[%s9 + $0x254] sm:$0xf]
  %v1732 = vld [vmem:[%s9 + $0x258] sm:$0xf]
  %v1733 = vld [vmem:[%s9 + $0x25c] sm:$0xf]
  %v1734 = vld [vmem:[%s9 + $0x260] sm:$0xf]
  %v1735 = vld [vmem:[%s9 + $0x264] sm:$0xf]
  %v1736 = vld [vmem:[%s9 + $0x268] sm:$0xf]
  %v1737 = vld [vmem:[%s9 + $0x26c] sm:$0xf]
  %v1738 = vld [vmem:[%s9 + $0x270] sm:$0xf]
  %v1739 = vld [vmem:[%s9 + $0x274] sm:$0xf]
  %v1740 = vld [vmem:[%s9 + $0x278] sm:$0xf]
  %v1741 = vld [vmem:[%s9 + $0x27c] sm:$0xf]
  %v1742 = vld [vmem:[%s9 + $0x280] sm:$0xf]
  %v1743 = vld [vmem:[%s9 + $0x284] sm:$0xf]
  %v1744 = vld [vmem:[%s9 + $0x288] sm:$0xf]
  %v1745 = vld [vmem:[%s9 + $0x28c] sm:$0xf]
  %v1746 = vld [vmem:[%s9 + $0x290] sm:$0xf]
  %v1747 = vld [vmem:[%s9 + $0x294] sm:$0xf]
  %v1748 = vld [vmem:[%s9 + $0x298] sm:$0xf]
  %v1749 = vld [vmem:[%s9 + $0x29c] sm:$0xf]
  %v1750 = vld [vmem:[%s9 + $0x2a0] sm:$0xf]
  %v1751 = vld [vmem:[%s9 + $0x2a4] sm:$0xf]
  %v1752 = vld [vmem:[%s9 + $0x2a8] sm:$0xf]
  %v1753 = vld [vmem:[%s9 + $0x2ac] sm:$0xf]
  %v1754 = vld [vmem:[%s9 + $0x2b0] sm:$0xf]
  %v1755 = vld [vmem:[%s9 + $0x2b4] sm:$0xf]
  %v1756 = vld [vmem:[%s9 + $0x2b8] sm:$0xf]
  %v1757 = vld [vmem:[%s9 + $0x2bc] sm:$0xf]
  %v1758 = vld [vmem:[%s9 + $0x2c0] sm:$0xf]
  %v1759 = vld [vmem:[%s9 + $0x2c4] sm:$0xf]
  %v1760 = vld [vmem:[%s9 + $0x2c8] sm:$0xf]
  %v1761 = vld [vmem:[%s9 + $0x2cc] sm:$0xf]
  %v1762 = vld [vmem:[%s9 + $0x2d0] sm:$0xf]
  %v1763 = vld [vmem:[%s9 + $0x2d4] sm:$0xf]
  %v1764 = vld [vmem:[%s9 + $0x2d8] sm:$0xf]
  %v1765 = vld [vmem:[%s9 + $0x2dc] sm:$0xf]
  %v1766 = vld [vmem:[%s9 + $0x2e0] sm:$0xf]
  %v1767 = vld [vmem:[%s9 + $0x2e4] sm:$0xf]
  %v1768 = vld [vmem:[%s9 + $0x2e8] sm:$0xf]
  %v1769 = vld [vmem:[%s9 + $0x2ec] sm:$0xf]
  %v1770 = vld [vmem:[%s9 + $0x2f0] sm:$0xf]
  %v1771 = vld [vmem:[%s9 + $0x2f4] sm:$0xf]
  %v1772 = vld [vmem:[%s9 + $0x2f8] sm:$0xf]
  %v1773 = vld [vmem:[%s9 + $0x2fc] sm:$0xf]
  %v1774 = vld [vmem:[%s9 + $0x300] sm:$0xf]
  %v1775 = vld [vmem:[%s9 + $0x304] sm:$0xf]
  %v1776 = vld [vmem:[%s9 + $0x308] sm:$0xf]
  %v1777 = vld [vmem:[%s9 + $0x30c] sm:$0xf]
  %v1778 = vld [vmem:[%s9 + $0x310] sm:$0xf]
  %v1779 = vld [vmem:[%s9 + $0x314] sm:$0xf]
  %v1780 = vld [vmem:[%s9 + $0x318] sm:$0xf]
  %v1781 = vld [vmem:[%s9 + $0x31c] sm:$0xf]
  %v1782 = vld [vmem:[%s9 + $0x320] sm:$0xf]
  %v1783 = vld [vmem:[%s9 + $0x324] sm:$0xf]
  %v1784 = vld [vmem:[%s9 + $0x328] sm:$0xf]
  %v1785 = vld [vmem:[%s9 + $0x32c] sm:$0xf]
  %v1786 = vld [vmem:[%s9 + $0x330] sm:$0xf]
  %v1787 = vld [vmem:[%s9 + $0x334] sm:$0xf]
  %v1788 = vld [vmem:[%s9 + $0x338] sm:$0xf]
  %v1789 = vld [vmem:[%s9 + $0x33c] sm:$0xf]
  %v1790 = vld [vmem:[%s9 + $0x340] sm:$0xf]
  %v1791 = vld [vmem:[%s9 + $0x344] sm:$0xf]
  %v1792 = vld [vmem:[%s9 + $0x348] sm:$0xf]
  %v1793 = vld [vmem:[%s9 + $0x34c] sm:$0xf]
  %v1794 = vld [vmem:[%s9 + $0x350] sm:$0xf]
  %v1795 = vld [vmem:[%s9 + $0x354] sm:$0xf]
  %v1796 = vld [vmem:[%s9 + $0x358] sm:$0xf]
  %v1797 = vld [vmem:[%s9 + $0x35c] sm:$0xf]
  %v1798 = vld [vmem:[%s9 + $0x360] sm:$0xf]
  %v1799 = vld [vmem:[%s9 + $0x364] sm:$0xf]
  %v1800 = vld [vmem:[%s9 + $0x368] sm:$0xf]
  %v1801 = vld [vmem:[%s9 + $0x36c] sm:$0xf]
  %v1802 = vld [vmem:[%s9 + $0x370] sm:$0xf]
  %v1803 = vld [vmem:[%s9 + $0x374] sm:$0xf]
  %v1804 = vld [vmem:[%s9 + $0x378] sm:$0xf]
  %v1805 = vld [vmem:[%s9 + $0x37c] sm:$0xf]
  %v1806 = vld [vmem:[%s9 + $0x380] sm:$0xf]
  %v1807 = vld [vmem:[%s9 + $0x384] sm:$0xf]
  %v1808 = vld [vmem:[%s9 + $0x388] sm:$0xf]
  %v1809 = vld [vmem:[%s9 + $0x38c] sm:$0xf]
  %v1810 = vld [vmem:[%s9 + $0x390] sm:$0xf]
  %v1811 = vld [vmem:[%s9 + $0x394] sm:$0xf]
  %v1812 = vld [vmem:[%s9 + $0x398] sm:$0xf]
  %v1813 = vld [vmem:[%s9 + $0x39c] sm:$0xf]
  %v1814 = vld [vmem:[%s9 + $0x3a0] sm:$0xf]
  %v1815 = vld [vmem:[%s9 + $0x3a4] sm:$0xf]
  %v1816 = vld [vmem:[%s9 + $0x3a8] sm:$0xf]
  %v1817 = vld [vmem:[%s9 + $0x3ac] sm:$0xf]
  %v1818 = vld [vmem:[%s9 + $0x3b0] sm:$0xf]
  %v1819 = vld [vmem:[%s9 + $0x3b4] sm:$0xf]
  %v1820 = vld [vmem:[%s9 + $0x3b8] sm:$0xf]
  %v1821 = vld [vmem:[%s9 + $0x3bc] sm:$0xf]
  %v1822 = vld [vmem:[%s9 + $0x3c0] sm:$0xf]
  %v1823 = vld [vmem:[%s9 + $0x3c4] sm:$0xf]
  %v1824 = vld [vmem:[%s9 + $0x3c8] sm:$0xf]
  %v1825 = vld [vmem:[%s9 + $0x3cc] sm:$0xf]
  %v1826 = vld [vmem:[%s9 + $0x3d0] sm:$0xf]
  %v1827 = vld [vmem:[%s9 + $0x3d4] sm:$0xf]
  %v1828 = vld [vmem:[%s9 + $0x3d8] sm:$0xf]
  %v1829 = vld [vmem:[%s9 + $0x3dc] sm:$0xf]
  %v1830 = vld [vmem:[%s9 + $0x3e0] sm:$0xf]
  %v1831 = vld [vmem:[%s9 + $0x3e4] sm:$0xf]
  %v1832 = vld [vmem:[%s9 + $0x3e8] sm:$0xf]
  %v1833 = vld [vmem:[%s9 + $0x3ec] sm:$0xf]
  %v1834 = vld [vmem:[%s9 + $0x3f0] sm:$0xf]
  %v1835 = vld [vmem:[%s9 + $0x3f4] sm:$0xf]
  %v1836 = vld [vmem:[%s9 + $0x3f8] sm:$0xf]
  %v1837 = vld [vmem:[%s9 + $0x3fc] sm:$0xf]
  %v1838 = vld [vmem:[%s10] sm:$0x1]
  %v1840 = vlaneseq
  %v1841 = vshrl.u32 %v1840, 7
  %v1842 = vsub.s32 0, %v1841
  %v1843 = vrot.slane %v1838, %v1842
  %v2101 = vunpack.c.l.b16 %v1582
  %v2102 = vunpack.c.l.b16 %v1583
  %v2103 = vunpack.c.l.b16 %v1584
  %v2104 = vunpack.c.l.b16 %v1585
  %v2105 = vunpack.c.l.b16 %v1586
  %v2106 = vunpack.c.l.b16 %v1587
  %v2107 = vunpack.c.l.b16 %v1588
  %v2108 = vunpack.c.l.b16 %v1589
  %v2109 = vunpack.c.l.b16 %v1590
  %v2110 = vunpack.c.l.b16 %v1591
  %v2111 = vunpack.c.l.b16 %v1592
  %v2112 = vunpack.c.l.b16 %v1593
  %v2113 = vunpack.c.l.b16 %v1594
  %v2114 = vunpack.c.l.b16 %v1595
  %v2115 = vunpack.c.l.b16 %v1596
  %v2116 = vunpack.c.l.b16 %v1597
  %v2117 = vunpack.c.l.b16 %v1598
  %v2118 = vunpack.c.l.b16 %v1599
  %v2119 = vunpack.c.l.b16 %v1600
  %v2120 = vunpack.c.l.b16 %v1601
  %v2121 = vunpack.c.l.b16 %v1602
  %v2122 = vunpack.c.l.b16 %v1603
  %v2123 = vunpack.c.l.b16 %v1604
  %v2124 = vunpack.c.l.b16 %v1605
  %v2125 = vunpack.c.l.b16 %v1606
  %v2126 = vunpack.c.l.b16 %v1607
  %v2127 = vunpack.c.l.b16 %v1608
  %v2128 = vunpack.c.l.b16 %v1609
  %v2129 = vunpack.c.l.b16 %v1610
  %v2130 = vunpack.c.l.b16 %v1611
  %v2131 = vunpack.c.l.b16 %v1612
  %v2132 = vunpack.c.l.b16 %v1613
  %v2133 = vunpack.c.l.b16 %v1614
  %v2134 = vunpack.c.l.b16 %v1615
  %v2135 = vunpack.c.l.b16 %v1616
  %v2136 = vunpack.c.l.b16 %v1617
  %v2137 = vunpack.c.l.b16 %v1618
  %v2138 = vunpack.c.l.b16 %v1619
  %v2139 = vunpack.c.l.b16 %v1620
  %v2140 = vunpack.c.l.b16 %v1621
  %v2141 = vunpack.c.l.b16 %v1622
  %v2142 = vunpack.c.l.b16 %v1623
  %v2143 = vunpack.c.l.b16 %v1624
  %v2144 = vunpack.c.l.b16 %v1625
  %v2145 = vunpack.c.l.b16 %v1626
  %v2146 = vunpack.c.l.b16 %v1627
  %v2147 = vunpack.c.l.b16 %v1628
  %v2148 = vunpack.c.l.b16 %v1629
  %v2149 = vunpack.c.l.b16 %v1630
  %v2150 = vunpack.c.l.b16 %v1631
  %v2151 = vunpack.c.l.b16 %v1632
  %v2152 = vunpack.c.l.b16 %v1633
  %v2153 = vunpack.c.l.b16 %v1634
  %v2154 = vunpack.c.l.b16 %v1635
  %v2155 = vunpack.c.l.b16 %v1636
  %v2156 = vunpack.c.l.b16 %v1637
  %v2157 = vunpack.c.l.b16 %v1638
  %v2158 = vunpack.c.l.b16 %v1639
  %v2159 = vunpack.c.l.b16 %v1640
  %v2160 = vunpack.c.l.b16 %v1641
  %v2161 = vunpack.c.l.b16 %v1642
  %v2162 = vunpack.c.l.b16 %v1643
  %v2163 = vunpack.c.l.b16 %v1644
  %v2164 = vunpack.c.l.b16 %v1645
  %v2165 = vunpack.c.l.b16 %v1646
  %v2166 = vunpack.c.l.b16 %v1647
  %v2167 = vunpack.c.l.b16 %v1648
  %v2168 = vunpack.c.l.b16 %v1649
  %v2169 = vunpack.c.l.b16 %v1650
  %v2170 = vunpack.c.l.b16 %v1651
  %v2171 = vunpack.c.l.b16 %v1652
  %v2172 = vunpack.c.l.b16 %v1653
  %v2173 = vunpack.c.l.b16 %v1654
  %v2174 = vunpack.c.l.b16 %v1655
  %v2175 = vunpack.c.l.b16 %v1656
  %v2176 = vunpack.c.l.b16 %v1657
  %v2177 = vunpack.c.l.b16 %v1658
  %v2178 = vunpack.c.l.b16 %v1659
  %v2179 = vunpack.c.l.b16 %v1660
  %v2180 = vunpack.c.l.b16 %v1661
  %v2181 = vunpack.c.l.b16 %v1662
  %v2182 = vunpack.c.l.b16 %v1663
  %v2183 = vunpack.c.l.b16 %v1664
  %v2184 = vunpack.c.l.b16 %v1665
  %v2185 = vunpack.c.l.b16 %v1666
  %v2186 = vunpack.c.l.b16 %v1667
  %v2187 = vunpack.c.l.b16 %v1668
  %v2188 = vunpack.c.l.b16 %v1669
  %v2189 = vunpack.c.l.b16 %v1670
  %v2190 = vunpack.c.l.b16 %v1671
  %v2191 = vunpack.c.l.b16 %v1672
  %v2192 = vunpack.c.l.b16 %v1673
  %v2193 = vunpack.c.l.b16 %v1674
  %v2194 = vunpack.c.l.b16 %v1675
  %v2195 = vunpack.c.l.b16 %v1676
  %v2196 = vunpack.c.l.b16 %v1677
  %v2197 = vunpack.c.l.b16 %v1678
  %v2198 = vunpack.c.l.b16 %v1679
  %v2199 = vunpack.c.l.b16 %v1680
  %v2200 = vunpack.c.l.b16 %v1681
  %v2201 = vunpack.c.l.b16 %v1682
  %v2202 = vunpack.c.l.b16 %v1683
  %v2203 = vunpack.c.l.b16 %v1684
  %v2204 = vunpack.c.l.b16 %v1685
  %v2205 = vunpack.c.l.b16 %v1686
  %v2206 = vunpack.c.l.b16 %v1687
  %v2207 = vunpack.c.l.b16 %v1688
  %v2208 = vunpack.c.l.b16 %v1689
  %v2209 = vunpack.c.l.b16 %v1690
  %v2210 = vunpack.c.l.b16 %v1691
  %v2211 = vunpack.c.l.b16 %v1692
  %v2212 = vunpack.c.l.b16 %v1693
  %v2213 = vunpack.c.l.b16 %v1694
  %v2214 = vunpack.c.l.b16 %v1695
  %v2215 = vunpack.c.l.b16 %v1696
  %v2216 = vunpack.c.l.b16 %v1697
  %v2217 = vunpack.c.l.b16 %v1698
  %v2218 = vunpack.c.l.b16 %v1699
  %v2219 = vunpack.c.l.b16 %v1700
  %v2220 = vunpack.c.l.b16 %v1701
  %v2221 = vunpack.c.l.b16 %v1702
  %v2222 = vunpack.c.l.b16 %v1703
  %v2223 = vunpack.c.l.b16 %v1704
  %v2224 = vunpack.c.l.b16 %v1705
  %v2225 = vunpack.c.l.b16 %v1706
  %v2226 = vunpack.c.l.b16 %v1707
  %v2227 = vunpack.c.l.b16 %v1708
  %v2228 = vunpack.c.l.b16 %v1709
  %v2229 = vunpack.c.l.b16 %v1710
  %v2230 = vunpack.c.l.b16 %v1711
  %v2231 = vunpack.c.l.b16 %v1712
  %v2232 = vunpack.c.l.b16 %v1713
  %v2233 = vunpack.c.l.b16 %v1714
  %v2234 = vunpack.c.l.b16 %v1715
  %v2235 = vunpack.c.l.b16 %v1716
  %v2236 = vunpack.c.l.b16 %v1717
  %v2237 = vunpack.c.l.b16 %v1718
  %v2238 = vunpack.c.l.b16 %v1719
  %v2239 = vunpack.c.l.b16 %v1720
  %v2240 = vunpack.c.l.b16 %v1721
  %v2241 = vunpack.c.l.b16 %v1722
  %v2242 = vunpack.c.l.b16 %v1723
  %v2243 = vunpack.c.l.b16 %v1724
  %v2244 = vunpack.c.l.b16 %v1725
  %v2245 = vunpack.c.l.b16 %v1726
  %v2246 = vunpack.c.l.b16 %v1727
  %v2247 = vunpack.c.l.b16 %v1728
  %v2248 = vunpack.c.l.b16 %v1729
  %v2249 = vunpack.c.l.b16 %v1730
  %v2250 = vunpack.c.l.b16 %v1731
  %v2251 = vunpack.c.l.b16 %v1732
  %v2252 = vunpack.c.l.b16 %v1733
  %v2253 = vunpack.c.l.b16 %v1734
  %v2254 = vunpack.c.l.b16 %v1735
  %v2255 = vunpack.c.l.b16 %v1736
  %v2256 = vunpack.c.l.b16 %v1737
  %v2257 = vunpack.c.l.b16 %v1738
  %v2258 = vunpack.c.l.b16 %v1739
  %v2259 = vunpack.c.l.b16 %v1740
  %v2260 = vunpack.c.l.b16 %v1741
  %v2261 = vunpack.c.l.b16 %v1742
  %v2262 = vunpack.c.l.b16 %v1743
  %v2263 = vunpack.c.l.b16 %v1744
  %v2264 = vunpack.c.l.b16 %v1745
  %v2265 = vunpack.c.l.b16 %v1746
  %v2266 = vunpack.c.l.b16 %v1747
  %v2267 = vunpack.c.l.b16 %v1748
  %v2268 = vunpack.c.l.b16 %v1749
  %v2269 = vunpack.c.l.b16 %v1750
  %v2270 = vunpack.c.l.b16 %v1751
  %v2271 = vunpack.c.l.b16 %v1752
  %v2272 = vunpack.c.l.b16 %v1753
  %v2273 = vunpack.c.l.b16 %v1754
  %v2274 = vunpack.c.l.b16 %v1755
  %v2275 = vunpack.c.l.b16 %v1756
  %v2276 = vunpack.c.l.b16 %v1757
  %v2277 = vunpack.c.l.b16 %v1758
  %v2278 = vunpack.c.l.b16 %v1759
  %v2279 = vunpack.c.l.b16 %v1760
  %v2280 = vunpack.c.l.b16 %v1761
  %v2281 = vunpack.c.l.b16 %v1762
  %v2282 = vunpack.c.l.b16 %v1763
  %v2283 = vunpack.c.l.b16 %v1764
  %v2284 = vunpack.c.l.b16 %v1765
  %v2285 = vunpack.c.l.b16 %v1766
  %v2286 = vunpack.c.l.b16 %v1767
  %v2287 = vunpack.c.l.b16 %v1768
  %v2288 = vunpack.c.l.b16 %v1769
  %v2289 = vunpack.c.l.b16 %v1770
  %v2290 = vunpack.c.l.b16 %v1771
  %v2291 = vunpack.c.l.b16 %v1772
  %v2292 = vunpack.c.l.b16 %v1773
  %v2293 = vunpack.c.l.b16 %v1774
  %v2294 = vunpack.c.l.b16 %v1775
  %v2295 = vunpack.c.l.b16 %v1776
  %v2296 = vunpack.c.l.b16 %v1777
  %v2297 = vunpack.c.l.b16 %v1778
  %v2298 = vunpack.c.l.b16 %v1779
  %v2299 = vunpack.c.l.b16 %v1780
  %v2300 = vunpack.c.l.b16 %v1781
  %v2301 = vunpack.c.l.b16 %v1782
  %v2302 = vunpack.c.l.b16 %v1783
  %v2303 = vunpack.c.l.b16 %v1784
  %v2304 = vunpack.c.l.b16 %v1785
  %v2305 = vunpack.c.l.b16 %v1786
  %v2306 = vunpack.c.l.b16 %v1787
  %v2307 = vunpack.c.l.b16 %v1788
  %v2308 = vunpack.c.l.b16 %v1789
  %v2309 = vunpack.c.l.b16 %v1790
  %v2310 = vunpack.c.l.b16 %v1791
  %v2311 = vunpack.c.l.b16 %v1792
  %v2312 = vunpack.c.l.b16 %v1793
  %v2313 = vunpack.c.l.b16 %v1794
  %v2314 = vunpack.c.l.b16 %v1795
  %v2315 = vunpack.c.l.b16 %v1796
  %v2316 = vunpack.c.l.b16 %v1797
  %v2317 = vunpack.c.l.b16 %v1798
  %v2318 = vunpack.c.l.b16 %v1799
  %v2319 = vunpack.c.l.b16 %v1800
  %v2320 = vunpack.c.l.b16 %v1801
  %v2321 = vunpack.c.l.b16 %v1802
  %v2322 = vunpack.c.l.b16 %v1803
  %v2323 = vunpack.c.l.b16 %v1804
  %v2324 = vunpack.c.l.b16 %v1805
  %v2325 = vunpack.c.l.b16 %v1806
  %v2326 = vunpack.c.l.b16 %v1807
  %v2327 = vunpack.c.l.b16 %v1808
  %v2328 = vunpack.c.l.b16 %v1809
  %v2329 = vunpack.c.l.b16 %v1810
  %v2330 = vunpack.c.l.b16 %v1811
  %v2331 = vunpack.c.l.b16 %v1812
  %v2332 = vunpack.c.l.b16 %v1813
  %v2333 = vunpack.c.l.b16 %v1814
  %v2334 = vunpack.c.l.b16 %v1815
  %v2335 = vunpack.c.l.b16 %v1816
  %v2336 = vunpack.c.l.b16 %v1817
  %v2337 = vunpack.c.l.b16 %v1818
  %v2338 = vunpack.c.l.b16 %v1819
  %v2339 = vunpack.c.l.b16 %v1820
  %v2340 = vunpack.c.l.b16 %v1821
  %v2341 = vunpack.c.l.b16 %v1822
  %v2342 = vunpack.c.l.b16 %v1823
  %v2343 = vunpack.c.l.b16 %v1824
  %v2344 = vunpack.c.l.b16 %v1825
  %v2345 = vunpack.c.l.b16 %v1826
  %v2346 = vunpack.c.l.b16 %v1827
  %v2347 = vunpack.c.l.b16 %v1828
  %v2348 = vunpack.c.l.b16 %v1829
  %v2349 = vunpack.c.l.b16 %v1830
  %v2350 = vunpack.c.l.b16 %v1831
  %v2351 = vunpack.c.l.b16 %v1832
  %v2352 = vunpack.c.l.b16 %v1833
  %v2353 = vunpack.c.l.b16 %v1834
  %v2354 = vunpack.c.l.b16 %v1835
  %v2355 = vunpack.c.l.b16 %v1836
  %v2356 = vunpack.c.l.b16 %v1837
  %v2357 = vpack.c.b16 %v2102, %v2101
  %v2358 = vpack.c.b16 %v2104, %v2103
  %v2359 = vpack.c.b16 %v2106, %v2105
  %v2360 = vpack.c.b16 %v2108, %v2107
  %v2361 = vpack.c.b16 %v2110, %v2109
  %v2362 = vpack.c.b16 %v2112, %v2111
  %v2363 = vpack.c.b16 %v2114, %v2113
  %v2364 = vpack.c.b16 %v2116, %v2115
  %v2365 = vpack.c.b16 %v2118, %v2117
  %v2366 = vpack.c.b16 %v2120, %v2119
  %v2367 = vpack.c.b16 %v2122, %v2121
  %v2368 = vpack.c.b16 %v2124, %v2123
  %v2369 = vpack.c.b16 %v2126, %v2125
  %v2370 = vpack.c.b16 %v2128, %v2127
  %v2371 = vpack.c.b16 %v2130, %v2129
  %v2372 = vpack.c.b16 %v2132, %v2131
  %v2373 = vpack.c.b16 %v2134, %v2133
  %v2374 = vpack.c.b16 %v2136, %v2135
  %v2375 = vpack.c.b16 %v2138, %v2137
  %v2376 = vpack.c.b16 %v2140, %v2139
  %v2377 = vpack.c.b16 %v2142, %v2141
  %v2378 = vpack.c.b16 %v2144, %v2143
  %v2379 = vpack.c.b16 %v2146, %v2145
  %v2380 = vpack.c.b16 %v2148, %v2147
  %v2381 = vpack.c.b16 %v2150, %v2149
  %v2382 = vpack.c.b16 %v2152, %v2151
  %v2383 = vpack.c.b16 %v2154, %v2153
  %v2384 = vpack.c.b16 %v2156, %v2155
  %v2385 = vpack.c.b16 %v2158, %v2157
  %v2386 = vpack.c.b16 %v2160, %v2159
  %v2387 = vpack.c.b16 %v2162, %v2161
  %v2388 = vpack.c.b16 %v2164, %v2163
  %v2389 = vpack.c.b16 %v2166, %v2165
  %v2390 = vpack.c.b16 %v2168, %v2167
  %v2391 = vpack.c.b16 %v2170, %v2169
  %v2392 = vpack.c.b16 %v2172, %v2171
  %v2393 = vpack.c.b16 %v2174, %v2173
  %v2394 = vpack.c.b16 %v2176, %v2175
  %v2395 = vpack.c.b16 %v2178, %v2177
  %v2396 = vpack.c.b16 %v2180, %v2179
  %v2397 = vpack.c.b16 %v2182, %v2181
  %v2398 = vpack.c.b16 %v2184, %v2183
  %v2399 = vpack.c.b16 %v2186, %v2185
  %v2400 = vpack.c.b16 %v2188, %v2187
  %v2401 = vpack.c.b16 %v2190, %v2189
  %v2402 = vpack.c.b16 %v2192, %v2191
  %v2403 = vpack.c.b16 %v2194, %v2193
  %v2404 = vpack.c.b16 %v2196, %v2195
  %v2405 = vpack.c.b16 %v2198, %v2197
  %v2406 = vpack.c.b16 %v2200, %v2199
  %v2407 = vpack.c.b16 %v2202, %v2201
  %v2408 = vpack.c.b16 %v2204, %v2203
  %v2409 = vpack.c.b16 %v2206, %v2205
  %v2410 = vpack.c.b16 %v2208, %v2207
  %v2411 = vpack.c.b16 %v2210, %v2209
  %v2412 = vpack.c.b16 %v2212, %v2211
  %v2413 = vpack.c.b16 %v2214, %v2213
  %v2414 = vpack.c.b16 %v2216, %v2215
  %v2415 = vpack.c.b16 %v2218, %v2217
  %v2416 = vpack.c.b16 %v2220, %v2219
  %v2417 = vpack.c.b16 %v2222, %v2221
  %v2418 = vpack.c.b16 %v2224, %v2223
  %v2419 = vpack.c.b16 %v2226, %v2225
  %v2420 = vpack.c.b16 %v2228, %v2227
  %v2421 = vpack.c.b16 %v2230, %v2229
  %v2422 = vpack.c.b16 %v2232, %v2231
  %v2423 = vpack.c.b16 %v2234, %v2233
  %v2424 = vpack.c.b16 %v2236, %v2235
  %v2425 = vpack.c.b16 %v2238, %v2237
  %v2426 = vpack.c.b16 %v2240, %v2239
  %v2427 = vpack.c.b16 %v2242, %v2241
  %v2428 = vpack.c.b16 %v2244, %v2243
  %v2429 = vpack.c.b16 %v2246, %v2245
  %v2430 = vpack.c.b16 %v2248, %v2247
  %v2431 = vpack.c.b16 %v2250, %v2249
  %v2432 = vpack.c.b16 %v2252, %v2251
  %v2433 = vpack.c.b16 %v2254, %v2253
  %v2434 = vpack.c.b16 %v2256, %v2255
  %v2435 = vpack.c.b16 %v2258, %v2257
  %v2436 = vpack.c.b16 %v2260, %v2259
  %v2437 = vpack.c.b16 %v2262, %v2261
  %v2438 = vpack.c.b16 %v2264, %v2263
  %v2439 = vpack.c.b16 %v2266, %v2265
  %v2440 = vpack.c.b16 %v2268, %v2267
  %v2441 = vpack.c.b16 %v2270, %v2269
  %v2442 = vpack.c.b16 %v2272, %v2271
  %v2443 = vpack.c.b16 %v2274, %v2273
  %v2444 = vpack.c.b16 %v2276, %v2275
  %v2445 = vpack.c.b16 %v2278, %v2277
  %v2446 = vpack.c.b16 %v2280, %v2279
  %v2447 = vpack.c.b16 %v2282, %v2281
  %v2448 = vpack.c.b16 %v2284, %v2283
  %v2449 = vpack.c.b16 %v2286, %v2285
  %v2450 = vpack.c.b16 %v2288, %v2287
  %v2451 = vpack.c.b16 %v2290, %v2289
  %v2452 = vpack.c.b16 %v2292, %v2291
  %v2453 = vpack.c.b16 %v2294, %v2293
  %v2454 = vpack.c.b16 %v2296, %v2295
  %v2455 = vpack.c.b16 %v2298, %v2297
  %v2456 = vpack.c.b16 %v2300, %v2299
  %v2457 = vpack.c.b16 %v2302, %v2301
  %v2458 = vpack.c.b16 %v2304, %v2303
  %v2459 = vpack.c.b16 %v2306, %v2305
  %v2460 = vpack.c.b16 %v2308, %v2307
  %v2461 = vpack.c.b16 %v2310, %v2309
  %v2462 = vpack.c.b16 %v2312, %v2311
  %v2463 = vpack.c.b16 %v2314, %v2313
  %v2464 = vpack.c.b16 %v2316, %v2315
  %v2465 = vpack.c.b16 %v2318, %v2317
  %v2466 = vpack.c.b16 %v2320, %v2319
  %v2467 = vpack.c.b16 %v2322, %v2321
  %v2468 = vpack.c.b16 %v2324, %v2323
  %v2469 = vpack.c.b16 %v2326, %v2325
  %v2470 = vpack.c.b16 %v2328, %v2327
  %v2471 = vpack.c.b16 %v2330, %v2329
  %v2472 = vpack.c.b16 %v2332, %v2331
  %v2473 = vpack.c.b16 %v2334, %v2333
  %v2474 = vpack.c.b16 %v2336, %v2335
  %v2475 = vpack.c.b16 %v2338, %v2337
  %v2476 = vpack.c.b16 %v2340, %v2339
  %v2477 = vpack.c.b16 %v2342, %v2341
  %v2478 = vpack.c.b16 %v2344, %v2343
  %v2479 = vpack.c.b16 %v2346, %v2345
  %v2480 = vpack.c.b16 %v2348, %v2347
  %v2481 = vpack.c.b16 %v2350, %v2349
  %v2482 = vpack.c.b16 %v2352, %v2351
  %v2483 = vpack.c.b16 %v2354, %v2353
  %v2484 = vpack.c.b16 %v2356, %v2355
  %2613 = vmatprep.subr.bf16.mxu0 0
  %2614 = vmatpush1.bf16.msra.mxu0 %v2357
  %2615 = vmatprep.subr.bf16.mxu0 0
  %2616 = vmatpush1.bf16.msra.mxu0 %v2358
  %2617 = vmatprep.subr.bf16.mxu0 0
  %2618 = vmatpush1.bf16.msra.mxu0 %v2359
  %2619 = vmatprep.subr.bf16.mxu0 0
  %2620 = vmatpush1.bf16.msra.mxu0 %v2360
  %2621 = vmatprep.subr.bf16.mxu0 0
  %2622 = vmatpush1.bf16.msra.mxu0 %v2361
  %2623 = vmatprep.subr.bf16.mxu0 0
  %2624 = vmatpush1.bf16.msra.mxu0 %v2362
  %2625 = vmatprep.subr.bf16.mxu0 0
  %2626 = vmatpush1.bf16.msra.mxu0 %v2363
  %2627 = vmatprep.subr.bf16.mxu0 0
  %2628 = vmatpush1.bf16.msra.mxu0 %v2364
  %2629 = vmatprep.subr.bf16.mxu0 0
  %2630 = vmatpush1.bf16.msra.mxu0 %v2365
  %2631 = vmatprep.subr.bf16.mxu0 0
  %2632 = vmatpush1.bf16.msra.mxu0 %v2366
  %2633 = vmatprep.subr.bf16.mxu0 0
  %2634 = vmatpush1.bf16.msra.mxu0 %v2367
  %2635 = vmatprep.subr.bf16.mxu0 0
  %2636 = vmatpush1.bf16.msra.mxu0 %v2368
  %2637 = vmatprep.subr.bf16.mxu0 0
  %2638 = vmatpush1.bf16.msra.mxu0 %v2369
  %2639 = vmatprep.subr.bf16.mxu0 0
  %2640 = vmatpush1.bf16.msra.mxu0 %v2370
  %2641 = vmatprep.subr.bf16.mxu0 0
  %2642 = vmatpush1.bf16.msra.mxu0 %v2371
  %2643 = vmatprep.subr.bf16.mxu0 0
  %2644 = vmatpush1.bf16.msra.mxu0 %v2372
  %2645 = vmatprep.mubr.bf16.mxu0 %v1567
  %2646 = vmatmul.mubr.bf16.gmra.mrb[0].mxu0 %v1566
  %v2647 = vpop.f32.mrb[0].mxu0
  %v2648 = vadd.f32 %v1843, %v2647
  %v2649 = vpop.f32.mrb[0].mxu0
  %v2650 = vpop.f32.mrb[0].mxu0
  %v2651 = vadd.f32 %v1843, %v2650
  %v2652 = vpop.f32.mrb[0].mxu0
  %2653 = vdwg.mxu0
  %2654 = vmatprep.subr.bf16.mxu0 0
  %2655 = vmatpush1.bf16.msra.mxu0 %v2373
  %2656 = vmatprep.subr.bf16.mxu0 0
  %2657 = vmatpush1.bf16.msra.mxu0 %v2374
  %2658 = vmatprep.subr.bf16.mxu0 0
  %2659 = vmatpush1.bf16.msra.mxu0 %v2375
  %2660 = vmatprep.subr.bf16.mxu0 0
  %2661 = vmatpush1.bf16.msra.mxu0 %v2376
  %2662 = vmatprep.subr.bf16.mxu0 0
  %2663 = vmatpush1.bf16.msra.mxu0 %v2377
  %2664 = vmatprep.subr.bf16.mxu0 0
  %2665 = vmatpush1.bf16.msra.mxu0 %v2378
  %2666 = vmatprep.subr.bf16.mxu0 0
  %2667 = vmatpush1.bf16.msra.mxu0 %v2379
  %2668 = vmatprep.subr.bf16.mxu0 0
  %2669 = vmatpush1.bf16.msra.mxu0 %v2380
  %2670 = vmatprep.subr.bf16.mxu0 0
  %2671 = vmatpush1.bf16.msra.mxu0 %v2381
  %2672 = vmatprep.subr.bf16.mxu0 0
  %2673 = vmatpush1.bf16.msra.mxu0 %v2382
  %2674 = vmatprep.subr.bf16.mxu0 0
  %2675 = vmatpush1.bf16.msra.mxu0 %v2383
  %2676 = vmatprep.subr.bf16.mxu0 0
  %2677 = vmatpush1.bf16.msra.mxu0 %v2384
  %2678 = vmatprep.subr.bf16.mxu0 0
  %2679 = vmatpush1.bf16.msra.mxu0 %v2385
  %2680 = vmatprep.subr.bf16.mxu0 0
  %2681 = vmatpush1.bf16.msra.mxu0 %v2386
  %2682 = vmatprep.subr.bf16.mxu0 0
  %2683 = vmatpush1.bf16.msra.mxu0 %v2387
  %2684 = vmatprep.subr.bf16.mxu0 0
  %2685 = vmatpush1.bf16.msra.mxu0 %v2388
  %2686 = vmatprep.mubr.bf16.mxu0 %v1569
  %2687 = vmatmul.mubr.bf16.gmra.mrb[0].mxu0 %v1568
  %v2688 = vpop.f32.mrb[0].mxu0
  %v2689 = vadd.f32 %v2648, %v2688
  %v2690 = vpop.f32.mrb[0].mxu0
  %v2691 = vpop.f32.mrb[0].mxu0
  %v2692 = vadd.f32 %v2651, %v2691
  %v2693 = vpop.f32.mrb[0].mxu0
  %2694 = vdwg.mxu0
  %2695 = vmatprep.subr.bf16.mxu0 0
  %2696 = vmatpush1.bf16.msra.mxu0 %v2389
  %2697 = vmatprep.subr.bf16.mxu0 0
  %2698 = vmatpush1.bf16.msra.mxu0 %v2390
  %2699 = vmatprep.subr.bf16.mxu0 0
  %2700 = vmatpush1.bf16.msra.mxu0 %v2391
  %2701 = vmatprep.subr.bf16.mxu0 0
  %2702 = vmatpush1.bf16.msra.mxu0 %v2392
  %2703 = vmatprep.subr.bf16.mxu0 0
  %2704 = vmatpush1.bf16.msra.mxu0 %v2393
  %2705 = vmatprep.subr.bf16.mxu0 0
  %2706 = vmatpush1.bf16.msra.mxu0 %v2394
  %2707 = vmatprep.subr.bf16.mxu0 0
  %2708 = vmatpush1.bf16.msra.mxu0 %v2395
  %2709 = vmatprep.subr.bf16.mxu0 0
  %2710 = vmatpush1.bf16.msra.mxu0 %v2396
  %2711 = vmatprep.subr.bf16.mxu0 0
  %2712 = vmatpush1.bf16.msra.mxu0 %v2397
  %2713 = vmatprep.subr.bf16.mxu0 0
  %2714 = vmatpush1.bf16.msra.mxu0 %v2398
  %2715 = vmatprep.subr.bf16.mxu0 0
  %2716 = vmatpush1.bf16.msra.mxu0 %v2399
  %2717 = vmatprep.subr.bf16.mxu0 0
  %2718 = vmatpush1.bf16.msra.mxu0 %v2400
  %2719 = vmatprep.subr.bf16.mxu0 0
  %2720 = vmatpush1.bf16.msra.mxu0 %v2401
  %2721 = vmatprep.subr.bf16.mxu0 0
  %2722 = vmatpush1.bf16.msra.mxu0 %v2402
  %2723 = vmatprep.subr.bf16.mxu0 0
  %2724 = vmatpush1.bf16.msra.mxu0 %v2403
  %2725 = vmatprep.subr.bf16.mxu0 0
  %2726 = vmatpush1.bf16.msra.mxu0 %v2404
  %2727 = vmatprep.mubr.bf16.mxu0 %v1571
  %2728 = vmatmul.mubr.bf16.gmra.mrb[0].mxu0 %v1570
  %v2729 = vpop.f32.mrb[0].mxu0
  %v2730 = vadd.f32 %v2689, %v2729
  %v2731 = vpop.f32.mrb[0].mxu0
  %v2732 = vpop.f32.mrb[0].mxu0
  %v2733 = vadd.f32 %v2692, %v2732
  %v2734 = vpop.f32.mrb[0].mxu0
  %2735 = vdwg.mxu0
  %2736 = vmatprep.subr.bf16.mxu0 0
  %2737 = vmatpush1.bf16.msra.mxu0 %v2405
  %2738 = vmatprep.subr.bf16.mxu0 0
  %2739 = vmatpush1.bf16.msra.mxu0 %v2406
  %2740 = vmatprep.subr.bf16.mxu0 0
  %2741 = vmatpush1.bf16.msra.mxu0 %v2407
  %2742 = vmatprep.subr.bf16.mxu0 0
  %2743 = vmatpush1.bf16.msra.mxu0 %v2408
  %2744 = vmatprep.subr.bf16.mxu0 0
  %2745 = vmatpush1.bf16.msra.mxu0 %v2409
  %2746 = vmatprep.subr.bf16.mxu0 0
  %2747 = vmatpush1.bf16.msra.mxu0 %v2410
  %2748 = vmatprep.subr.bf16.mxu0 0
  %2749 = vmatpush1.bf16.msra.mxu0 %v2411
  %2750 = vmatprep.subr.bf16.mxu0 0
  %2751 = vmatpush1.bf16.msra.mxu0 %v2412
  %2752 = vmatprep.subr.bf16.mxu0 0
  %2753 = vmatpush1.bf16.msra.mxu0 %v2413
  %2754 = vmatprep.subr.bf16.mxu0 0
  %2755 = vmatpush1.bf16.msra.mxu0 %v2414
  %2756 = vmatprep.subr.bf16.mxu0 0
  %2757 = vmatpush1.bf16.msra.mxu0 %v2415
  %2758 = vmatprep.subr.bf16.mxu0 0
  %2759 = vmatpush1.bf16.msra.mxu0 %v2416
  %2760 = vmatprep.subr.bf16.mxu0 0
  %2761 = vmatpush1.bf16.msra.mxu0 %v2417
  %2762 = vmatprep.subr.bf16.mxu0 0
  %2763 = vmatpush1.bf16.msra.mxu0 %v2418
  %2764 = vmatprep.subr.bf16.mxu0 0
  %2765 = vmatpush1.bf16.msra.mxu0 %v2419
  %2766 = vmatprep.subr.bf16.mxu0 0
  %2767 = vmatpush1.bf16.msra.mxu0 %v2420
  %2768 = vmatprep.mubr.bf16.mxu0 %v1573
  %2769 = vmatmul.mubr.bf16.gmra.mrb[0].mxu0 %v1572
  %v2770 = vpop.f32.mrb[0].mxu0
  %v2771 = vadd.f32 %v2730, %v2770
  %v2772 = vpop.f32.mrb[0].mxu0
  %v2773 = vpop.f32.mrb[0].mxu0
  %v2774 = vadd.f32 %v2733, %v2773
  %v2775 = vpop.f32.mrb[0].mxu0
  %2776 = vdwg.mxu0
  %2777 = vmatprep.subr.bf16.mxu0 0
  %2778 = vmatpush1.bf16.msra.mxu0 %v2421
  %2779 = vmatprep.subr.bf16.mxu0 0
  %2780 = vmatpush1.bf16.msra.mxu0 %v2422
  %2781 = vmatprep.subr.bf16.mxu0 0
  %2782 = vmatpush1.bf16.msra.mxu0 %v2423
  %2783 = vmatprep.subr.bf16.mxu0 0
  %2784 = vmatpush1.bf16.msra.mxu0 %v2424
  %2785 = vmatprep.subr.bf16.mxu0 0
  %2786 = vmatpush1.bf16.msra.mxu0 %v2425
  %2787 = vmatprep.subr.bf16.mxu0 0
  %2788 = vmatpush1.bf16.msra.mxu0 %v2426
  %2789 = vmatprep.subr.bf16.mxu0 0
  %2790 = vmatpush1.bf16.msra.mxu0 %v2427
  %2791 = vmatprep.subr.bf16.mxu0 0
  %2792 = vmatpush1.bf16.msra.mxu0 %v2428
  %2793 = vmatprep.subr.bf16.mxu0 0
  %2794 = vmatpush1.bf16.msra.mxu0 %v2429
  %2795 = vmatprep.subr.bf16.mxu0 0
  %2796 = vmatpush1.bf16.msra.mxu0 %v2430
  %2797 = vmatprep.subr.bf16.mxu0 0
  %2798 = vmatpush1.bf16.msra.mxu0 %v2431
  %2799 = vmatprep.subr.bf16.mxu0 0
  %2800 = vmatpush1.bf16.msra.mxu0 %v2432
  %2801 = vmatprep.subr.bf16.mxu0 0
  %2802 = vmatpush1.bf16.msra.mxu0 %v2433
  %2803 = vmatprep.subr.bf16.mxu0 0
  %2804 = vmatpush1.bf16.msra.mxu0 %v2434
  %2805 = vmatprep.subr.bf16.mxu0 0
  %2806 = vmatpush1.bf16.msra.mxu0 %v2435
  %2807 = vmatprep.subr.bf16.mxu0 0
  %2808 = vmatpush1.bf16.msra.mxu0 %v2436
  %2809 = vmatprep.mubr.bf16.mxu0 %v1575
  %2810 = vmatmul.mubr.bf16.gmra.mrb[0].mxu0 %v1574
  %v2811 = vpop.f32.mrb[0].mxu0
  %v2812 = vadd.f32 %v2771, %v2811
  %v2813 = vpop.f32.mrb[0].mxu0
  %v2814 = vpop.f32.mrb[0].mxu0
  %v2815 = vadd.f32 %v2774, %v2814
  %v2816 = vpop.f32.mrb[0].mxu0
  %2817 = vdwg.mxu0
  %2818 = vmatprep.subr.bf16.mxu0 0
  %2819 = vmatpush1.bf16.msra.mxu0 %v2437
  %2820 = vmatprep.subr.bf16.mxu0 0
  %2821 = vmatpush1.bf16.msra.mxu0 %v2438
  %2822 = vmatprep.subr.bf16.mxu0 0
  %2823 = vmatpush1.bf16.msra.mxu0 %v2439
  %2824 = vmatprep.subr.bf16.mxu0 0
  %2825 = vmatpush1.bf16.msra.mxu0 %v2440
  %2826 = vmatprep.subr.bf16.mxu0 0
  %2827 = vmatpush1.bf16.msra.mxu0 %v2441
  %2828 = vmatprep.subr.bf16.mxu0 0
  %2829 = vmatpush1.bf16.msra.mxu0 %v2442
  %2830 = vmatprep.subr.bf16.mxu0 0
  %2831 = vmatpush1.bf16.msra.mxu0 %v2443
  %2832 = vmatprep.subr.bf16.mxu0 0
  %2833 = vmatpush1.bf16.msra.mxu0 %v2444
  %2834 = vmatprep.subr.bf16.mxu0 0
  %2835 = vmatpush1.bf16.msra.mxu0 %v2445
  %2836 = vmatprep.subr.bf16.mxu0 0
  %2837 = vmatpush1.bf16.msra.mxu0 %v2446
  %2838 = vmatprep.subr.bf16.mxu0 0
  %2839 = vmatpush1.bf16.msra.mxu0 %v2447
  %2840 = vmatprep.subr.bf16.mxu0 0
  %2841 = vmatpush1.bf16.msra.mxu0 %v2448
  %2842 = vmatprep.subr.bf16.mxu0 0
  %2843 = vmatpush1.bf16.msra.mxu0 %v2449
  %2844 = vmatprep.subr.bf16.mxu0 0
  %2845 = vmatpush1.bf16.msra.mxu0 %v2450
  %2846 = vmatprep.subr.bf16.mxu0 0
  %2847 = vmatpush1.bf16.msra.mxu0 %v2451
  %2848 = vmatprep.subr.bf16.mxu0 0
  %2849 = vmatpush1.bf16.msra.mxu0 %v2452
  %2850 = vmatprep.mubr.bf16.mxu0 %v1577
  %2851 = vmatmul.mubr.bf16.gmra.mrb[0].mxu0 %v1576
  %v2852 = vpop.f32.mrb[0].mxu0
  %v2853 = vadd.f32 %v2812, %v2852
  %v2854 = vpop.f32.mrb[0].mxu0
  %v2855 = vpop.f32.mrb[0].mxu0
  %v2856 = vadd.f32 %v2815, %v2855
  %v2857 = vpop.f32.mrb[0].mxu0
  %2858 = vdwg.mxu0
  %2859 = vmatprep.subr.bf16.mxu0 0
  %2860 = vmatpush1.bf16.msra.mxu0 %v2453
  %2861 = vmatprep.subr.bf16.mxu0 0
  %2862 = vmatpush1.bf16.msra.mxu0 %v2454
  %2863 = vmatprep.subr.bf16.mxu0 0
  %2864 = vmatpush1.bf16.msra.mxu0 %v2455
  %2865 = vmatprep.subr.bf16.mxu0 0
  %2866 = vmatpush1.bf16.msra.mxu0 %v2456
  %2867 = vmatprep.subr.bf16.mxu0 0
  %2868 = vmatpush1.bf16.msra.mxu0 %v2457
  %2869 = vmatprep.subr.bf16.mxu0 0
  %2870 = vmatpush1.bf16.msra.mxu0 %v2458
  %2871 = vmatprep.subr.bf16.mxu0 0
  %2872 = vmatpush1.bf16.msra.mxu0 %v2459
  %2873 = vmatprep.subr.bf16.mxu0 0
  %2874 = vmatpush1.bf16.msra.mxu0 %v2460
  %2875 = vmatprep.subr.bf16.mxu0 0
  %2876 = vmatpush1.bf16.msra.mxu0 %v2461
  %2877 = vmatprep.subr.bf16.mxu0 0
  %2878 = vmatpush1.bf16.msra.mxu0 %v2462
  %2879 = vmatprep.subr.bf16.mxu0 0
  %2880 = vmatpush1.bf16.msra.mxu0 %v2463
  %2881 = vmatprep.subr.bf16.mxu0 0
  %2882 = vmatpush1.bf16.msra.mxu0 %v2464
  %2883 = vmatprep.subr.bf16.mxu0 0
  %2884 = vmatpush1.bf16.msra.mxu0 %v2465
  %2885 = vmatprep.subr.bf16.mxu0 0
  %2886 = vmatpush1.bf16.msra.mxu0 %v2466
  %2887 = vmatprep.subr.bf16.mxu0 0
  %2888 = vmatpush1.bf16.msra.mxu0 %v2467
  %2889 = vmatprep.subr.bf16.mxu0 0
  %2890 = vmatpush1.bf16.msra.mxu0 %v2468
  %2891 = vmatprep.mubr.bf16.mxu0 %v1579
  %2892 = vmatmul.mubr.bf16.gmra.mrb[0].mxu0 %v1578
  %v2893 = vpop.f32.mrb[0].mxu0
  %v2894 = vadd.f32 %v2853, %v2893
  %v2895 = vpop.f32.mrb[0].mxu0
  %v2896 = vpop.f32.mrb[0].mxu0
  %v2897 = vadd.f32 %v2856, %v2896
  %v2898 = vpop.f32.mrb[0].mxu0
  %2899 = vdwg.mxu0
  %2900 = vmatprep.subr.bf16.mxu0 0
  %2901 = vmatpush1.bf16.msra.mxu0 %v2469
  %2902 = vmatprep.subr.bf16.mxu0 0
  %2903 = vmatpush1.bf16.msra.mxu0 %v2470
  %2904 = vmatprep.subr.bf16.mxu0 0
  %2905 = vmatpush1.bf16.msra.mxu0 %v2471
  %2906 = vmatprep.subr.bf16.mxu0 0
  %2907 = vmatpush1.bf16.msra.mxu0 %v2472
  %2908 = vmatprep.subr.bf16.mxu0 0
  %2909 = vmatpush1.bf16.msra.mxu0 %v2473
  %2910 = vmatprep.subr.bf16.mxu0 0
  %2911 = vmatpush1.bf16.msra.mxu0 %v2474
  %2912 = vmatprep.subr.bf16.mxu0 0
  %2913 = vmatpush1.bf16.msra.mxu0 %v2475
  %2914 = vmatprep.subr.bf16.mxu0 0
  %2915 = vmatpush1.bf16.msra.mxu0 %v2476
  %2916 = vmatprep.subr.bf16.mxu0 0
  %2917 = vmatpush1.bf16.msra.mxu0 %v2477
  %2918 = vmatprep.subr.bf16.mxu0 0
  %2919 = vmatpush1.bf16.msra.mxu0 %v2478
  %2920 = vmatprep.subr.bf16.mxu0 0
  %2921 = vmatpush1.bf16.msra.mxu0 %v2479
  %2922 = vmatprep.subr.bf16.mxu0 0
  %2923 = vmatpush1.bf16.msra.mxu0 %v2480
  %2924 = vmatprep.subr.bf16.mxu0 0
  %2925 = vmatpush1.bf16.msra.mxu0 %v2481
  %2926 = vmatprep.subr.bf16.mxu0 0
  %2927 = vmatpush1.bf16.msra.mxu0 %v2482
  %2928 = vmatprep.subr.bf16.mxu0 0
  %2929 = vmatpush1.bf16.msra.mxu0 %v2483
  %2930 = vmatprep.subr.bf16.mxu0 0
  %2931 = vmatpush1.bf16.msra.mxu0 %v2484
  %2932 = vmatprep.mubr.bf16.mxu0 %v1581
  %2933 = vmatmul.mubr.bf16.gmra.mrb[0].mxu0 %v1580
  %v2934 = vpop.f32.mrb[0].mxu0
  %v2935 = vadd.f32 %v2894, %v2934
  %v2936 = vpop.f32.mrb[0].mxu0
  %v2937 = vpop.f32.mrb[0].mxu0
  %v2938 = vadd.f32 %v2897, %v2937
  %v2939 = vpop.f32.mrb[0].mxu0
  %2940 = vdwg.mxu0
  %v2941 = vadd.f32 %v908, %v2935
  %v2942 = vadd.f32 %v909, %v2938
  %v2943 = vld [vmem:[%s11] sm:$0x1]
  %v2944 = vld [vmem:[%s12] sm:$0x1]
  %v2945 = vsel %vm71, %v2941, 0.0
  %2946 = vadd.xlane.f32.xlu0 %v2945
  %v2947 = vpop.xlane.xlu0 %2946
  %v2948 = vsel %vm71, %v2942, 0.0
  %2949 = vadd.xlane.f32.xlu0 %v2948
  %v2950 = vpop.xlane.xlu0 %2949
  %v2951 = vmul.f32 %v2947, %v873
  %v2952 = vmul.f32 %v2950, %v873
  %v2953 = vsub.f32 %v2941, %v2951
  %v2954 = vsub.f32 %v2942, %v2952
  %v2955 = vmul.f32 %v2953, %v2953
  %v2956 = vmul.f32 %v2954, %v2954
  %v2957 = vsel %vm71, %v2955, 0.0
  %2958 = vadd.xlane.f32.xlu0 %v2957
  %v2959 = vpop.xlane.xlu0 %2958
  %v2960 = vsel %vm71, %v2956, 0.0
  %2961 = vadd.xlane.f32.xlu0 %v2960
  %v2962 = vpop.xlane.xlu0 %2961
  %v2963 = vmul.f32 %v2959, %v873
  %v2964 = vmul.f32 %v2962, %v873
  %v2965 = vadd.f32 %v2963, 1e-05
  %v2966 = vadd.f32 %v2964, 1e-05
  %v2967 = vrsqrt.pop %v2965
  %v2968 = vrsqrt.pop %v2966
  %v2969 = vmul.f32 %v2953, %v2967
  %v2970 = vmul.f32 %v2954, %v2968
  %v2972 = vlaneseq
  %v2973 = vshrl.u32 %v2972, 7
  %v2974 = vsub.s32 0, %v2973
  %v2975 = vrot.slane %v2943, %v2974
  %v2977 = vmul.f32 %v2969, %v2975
  %v2978 = vmul.f32 %v2970, %v2975
  %v2980 = vlaneseq
  %v2981 = vshrl.u32 %v2980, 7
  %v2982 = vsub.s32 0, %v2981
  %v2983 = vrot.slane %v2944, %v2982
  %v2985 = vadd.f32 %v2977, %v2983
  %v2986 = vadd.f32 %v2978, %v2983
  %v2987 = vsel %vm71, %v2985, 0.0
  %v2988 = vrot.slane %v2987, 4
  %v2989 = vadd.f32 %v2987, %v2988
  %v2990 = vrot.slane %v2989, 2
  %v2991 = vadd.f32 %v2989, %v2990
  %v2992 = vrot.slane %v2991, 1
  %v2993 = vadd.f32 %v2991, %v2992
  %v2994 = vsel %vm71, %v2986, 0.0
  %v2995 = vrot.slane %v2994, 4
  %v2996 = vadd.f32 %v2994, %v2995
  %v2997 = vrot.slane %v2996, 2
  %v2998 = vadd.f32 %v2996, %v2997
  %v2999 = vrot.slane %v2998, 1
  %v3000 = vadd.f32 %v2998, %v2999
  %v3001 = vrcp.pop 8.0
  %v3002 = vmul.f32 %v2993, %v3001
  %v3003 = vmul.f32 %v3000, %v3001
  %vm3006 = vcmask 1041409
  %v3007 = vsel %vm3006, %v3003, %v3002
  %vm3009 = vcmask 254976
  %3010 = vst.msk [vmem:[%s13] sm:$0x3] %vm3009, %v3007
  // Predicated region
  $region54: #{lstm_transformer_ae.4} parent=0 // pred_check
    _
  $region55: #{lstm_transformer_ae.4} parent=0 // pred_check_branch
    %3012 = sbr.rel (0) target = $region57
  $region56: #{lstm_transformer_ae.4} parent=0 // pred_region
    _
  $region57: #{lstm_transformer_ae.4} parent=0 // pred_fallthru
    _
  // Predicated region
  $region58: #{lstm_transformer_ae.4} parent=0 // pred_check
    _
  $region59: #{lstm_transformer_ae.4} parent=0 // pred_check_branch
    %3014 = sbr.rel (0) target = $region61
  $region60: #{lstm_transformer_ae.4} parent=0 // pred_region
    _
  $region61: #{lstm_transformer_ae.4} parent=0 // pred_fallthru
    _

</llo_original>
